<compile_context>
chip_gen: v6e
topology: v6e:2x2x1
jax: 0.10.0
libtpu: 0.0.40
codegen_flags: <defaults>
</compile_context>

<pallas_src>
import functools

import jax
import jax.numpy as jnp
from jax.experimental import pallas as pl
from jax.experimental.pallas import tpu as pltpu


def _round_up(x, m):
    return ((x + m - 1) // m) * m


# ----------------------------------------------------------------------------
# Fused conv kernel: per grid step, accumulate shifted-slice matmuls.
# ----------------------------------------------------------------------------
def _conv2d_fused_kernel(*refs, kw, wp, s, head, fold_j, oc_axis,
                         assemble_once):
    # Ref layouts:
    #   xa_ref : (1, sblk, C)        main flattened input rows of this tile
    #   xh_ref : (1, hb, C)          small halo block (only when head > 0)
    #   w_ref  : (G, Kd, OCp|TOC)    one weight slab per tap group
    #   b_ref  : (1, OCp)            bias (f32, grid-resident)
    #   o_ref  : (1, TM, TOC)        lane-dense output tile
    #   win_ref: (sblk + hb, C)      persistent window scratch (head > 0)
    #   lhs_ref: (TM, kw*C)          folded-LHS scratch (fold_j only)
    if head > 0:
        if fold_j:
            xa_ref, xh_ref, w_ref, b_ref, o_ref, win_ref, lhs_ref = refs
        else:
            xa_ref, xh_ref, w_ref, b_ref, o_ref, win_ref = refs
    else:
        xa_ref, w_ref, b_ref, o_ref = refs

    _, tm, toc = o_ref.shape
    ocp = b_ref.shape[-1]
    sblk = xa_ref.shape[1]
    c = xa_ref.shape[2]
    oi = pl.program_id(oc_axis)

    # ---- assemble the overlapping input window (main rows + halo rows) -----
    if head > 0:
        hb = xh_ref.shape[1]

        def _fill():
            win_ref[0:sblk, :] = xa_ref[0]
            win_ref[sblk:sblk + hb, :] = xh_ref[0]

        if assemble_once:
            # Same window serves every oc tile of this (batch, row-tile);
            # the oc grid axis is marked "arbitrary" so this is safe.
            pl.when(oi == 0)(_fill)
        else:
            _fill()

        if s == 1:
            def rows(shift):
                return win_ref[shift:shift + tm, :]
        else:
            xw = win_ref[...]

            def rows(shift):
                return xw[shift:shift + s * (tm - 1) + 1:s, :]
    else:
        if s == 1:
            def rows(shift):
                return xa_ref[0, shift:shift + tm, :]
        else:
            xw = xa_ref[0]

            def rows(shift):
                return xw[shift:shift + s * (tm - 1) + 1:s, :]

    groups = w_ref.shape[0]
    resident_w = (w_ref.shape[-1] != toc)       # grid-resident slab: slice it
    off = pl.multiple_of(oi * toc, 128)

    acc = jnp.zeros((tm, toc), jnp.float32)
    for g in range(groups):                     # small static unroll
        if fold_j:
            # Fold the kw column taps of kernel row g into the contraction dim.
            base = g * wp
            for j in range(kw):
                lhs_ref[:, j * c:(j + 1) * c] = rows(base + j)
            lhs = lhs_ref[...]                  # (TM, kw*C)
        else:
            i, j = divmod(g, kw)
            lhs = rows(i * wp + j)              # (TM, C)
        if resident_w:
            wg = w_ref[g, :, pl.ds(off, toc)]
        else:
            wg = w_ref[g]
        acc = acc + jnp.dot(lhs, wg, preferred_element_type=jnp.float32)

    bvec = b_ref[:, pl.ds(off, toc)] if ocp != toc else b_ref[...]
    o_ref[0] = (acc + bvec).astype(o_ref.dtype)


# ----------------------------------------------------------------------------
# NHWC core wrapper (no input/output transposes).
# ----------------------------------------------------------------------------
@functools.partial(jax.jit, static_argnames=("stride", "padding", "compute_dtype"))
def conv2d_forward_nhwc(x_nhwc, weights, bias, *, stride, padding,
                        compute_dtype=None):
    """x_nhwc: (N,H,W,C); weights: (OC,C,KH,KW); bias: (OC,) -> (N,OH,OW,OC)."""
    n, h, w_in, c = x_nhwc.shape
    oc, c_w, kh, kw = weights.shape
    assert c_w == c
    s, p = stride, padding
    hp, wp0 = h + 2 * p, w_in + 2 * p
    oh = (hp - kh) // s + 1
    ow = (wp0 - kw) // s + 1
    out_dtype = x_nhwc.dtype

    # ---- device-dependent defaults ------------------------------------------
    try:
        kind = jax.devices()[0].device_kind.lower()
    except Exception:  # pragma: no cover
        kind = ""
    is_v5e = ("v5e" in kind) or ("v5 lite" in kind) or ("v5lite" in kind)
    is_v7 = "v7" in kind
    budget = (12 << 20) if is_v5e else (22 << 20)       # per-step working set
    tm_target = 256 if is_v5e else (512 if is_v7 else 1024)
    default_scoped = (16 << 20) if is_v5e else (32 << 20)
    phys_cap = (56 << 20) if is_v7 else (100 << 20)

    # ---- width alignment: keep per-tap row shifts i*Wp sublane-aligned ------
    wpa = _round_up(wp0, 8)
    wp = wpa if (wpa != wp0 and (wpa - wp0) * 4 <= wp0) else wp0

    # ---- pad + flatten spatial (one-time layout work) -----------------------
    x_pad = jnp.pad(x_nhwc, ((0, 0), (p, p), (p, p + (wp - wp0)), (0, 0)))
    x_flat = x_pad.reshape(n, hp * wp, c)                 # (N, Hp*Wp, C)

    # ---- lane-dense weights / bias -------------------------------------------
    ocp = _round_up(oc, 128)
    w_taps = jnp.transpose(weights, (2, 3, 1, 0)).reshape(kh * kw, c, oc)
    w_taps = jnp.pad(w_taps, ((0, 0), (0, 0), (0, ocp - oc)))
    b_row = jnp.pad(bias, (0, ocp - oc)).reshape(1, ocp).astype(jnp.float32)

    if compute_dtype is not None:     # e.g. jnp.bfloat16 on v6e/v7x (opt-in)
        x_flat = x_flat.astype(compute_dtype)
        w_taps = w_taps.astype(compute_dtype)
    itm = jnp.dtype(x_flat.dtype).itemsize
    out_itm = jnp.dtype(out_dtype).itemsize

    # ---- row tiling / halo ----------------------------------------------------
    m_needed = oh * wp
    head = max((kh - 1) * wp + kw - s, 0)        # extra rows beyond s*tm
    hb = _round_up(head, 8) if head > 0 else 0   # halo block (multiple of 8)

    # Tap folding along kernel columns for small C (raises MXU contraction).
    fold_j = (kw > 1) and (c < 128) and (head > 0)
    if fold_j:
        groups, kdim = kh, kw * c
        w_mm = w_taps.reshape(kh, kw * c, ocp)
    else:
        groups, kdim = kh * kw, c
        w_mm = w_taps

    if head > 0:
        tm = max(hb, _round_up(min(tm_target, _round_up(m_needed, 8)), hb))
        tm_floor = hb
    else:
        tm = max(8, min(_round_up(tm_target, 8), _round_up(m_needed, 8)))
        tm_floor = 8

    toc = 256 if ((not is_v5e) and ocp % 256 == 0) else 128
    w_full_bytes = 2 * groups * kdim * ocp * itm
    resident = w_full_bytes <= min(6 << 20, budget // 3)

    def _step_bytes(tm_, toc_, resident_):
        sblk_ = s * tm_
        bts = 2 * sblk_ * c * itm + 2 * ocp * 4           # xa (x2 buf) + bias
        if head > 0:
            bts += 2 * hb * c * itm                        # halo block
            bts += (sblk_ + hb) * c * itm                  # window scratch
        if fold_j:
            bts += tm_ * kdim * itm                        # folded-LHS scratch
        bts += 2 * groups * kdim * (ocp if resident_ else toc_) * itm
        bts += 2 * tm_ * toc_ * out_itm                    # output block
        bts += tm_ * toc_ * 4                              # f32 accumulator
        bts += 2 * tm_ * max(kdim, c) * 4                  # misc temporaries
        return bts

    # Fallback order: toc 256->128, drop weight residency, shrink tm,
    # finally raise vmem_limit_bytes explicitly (never fail silently).
    while _step_bytes(tm, toc, resident) > budget:
        if toc > 128:
            toc = 128
        elif resident and w_full_bytes > budget // 3:
            resident = False
        elif tm > tm_floor:
            q = hb if head > 0 else 8
            tm = max(tm_floor, ((tm // 2 + q - 1) // q) * q)
        else:
            break

    n_oc = ocp // toc
    sblk = s * tm
    m_pad = _round_up(m_needed, tm)
    n_m = m_pad // tm
    l_rows = max(n_m + (1 if head > 0 else 0), pl.cdiv(hp * wp, sblk)) * sblk
    x_flat = jnp.pad(x_flat, ((0, 0), (0, l_rows - hp * wp), (0, 0)))

    step_bytes = _step_bytes(tm, toc, resident)
    vmem_limit = None
    if int(1.3 * step_bytes) + (2 << 20) > default_scoped:
        vmem_limit = int(min(phys_cap, int(1.3 * step_bytes) + (8 << 20)))

    # ---- grid / specs ---------------------------------------------------------
    if resident:
        # Weights DMA'd once and kept resident; oc axis innermost + "arbitrary"
        # so the per-(b, t) window scratch is reused across oc tiles.
        grid = (n, n_m, n_oc)
        oc_axis, assemble_once = 2, True
        dims = ("parallel", "parallel", "arbitrary")
        xa_spec = pl.BlockSpec((1, sblk, c), lambda b, t, o: (b, t, 0))
        w_spec = pl.BlockSpec((groups, kdim, ocp), lambda b, t, o: (0, 0, 0))
        b_spec = pl.BlockSpec((1, ocp), lambda b, t, o: (0, 0))
        o_spec = pl.BlockSpec((1, tm, toc), lambda b, t, o: (b, t, o))
        if head > 0:
            hr = sblk // hb
            xh_spec = pl.BlockSpec((1, hb, c),
                                   lambda b, t, o: (b, (t + 1) * hr, 0))
    else:
        # Weight block index constant across the innermost (row-tile) axis so
        # Pallas skips re-DMA; weights streamed once per (batch, oc-tile).
        grid = (n, n_oc, n_m)
        oc_axis, assemble_once = 1, False
        dims = ("parallel", "parallel", "parallel")
        xa_spec = pl.BlockSpec((1, sblk, c), lambda b, o, t: (b, t, 0))
        w_spec = pl.BlockSpec((groups, kdim, toc), lambda b, o, t: (0, 0, o))
        b_spec = pl.BlockSpec((1, ocp), lambda b, o, t: (0, 0))
        o_spec = pl.BlockSpec((1, tm, toc), lambda b, o, t: (b, t, o))
        if head > 0:
            hr = sblk // hb
            xh_spec = pl.BlockSpec((1, hb, c),
                                   lambda b, o, t: (b, (t + 1) * hr, 0))

    if head > 0:
        in_specs = [xa_spec, xh_spec, w_spec, b_spec]
        operands = (x_flat, x_flat, w_mm, b_row)
        scratch = [pltpu.VMEM((sblk + hb, c), x_flat.dtype)]
        if fold_j:
            scratch.append(pltpu.VMEM((tm, kdim), x_flat.dtype))
    else:
        in_specs = [xa_spec, w_spec, b_spec]
        operands = (x_flat, w_mm, b_row)
        scratch = []

    flops = 2 * n * m_pad * kh * kw * c * ocp
    bytes_accessed = (
        (1 if resident else n_oc) * n
        * (l_rows + (n_m * hb if head > 0 else 0)) * c * itm
        + (1 if resident else n) * groups * kdim * ocp * itm
        + n * m_pad * ocp * out_itm + ocp * 4)

    kernel = functools.partial(
        _conv2d_fused_kernel, kw=kw, wp=wp, s=s, head=head, fold_j=fold_j,
        oc_axis=oc_axis, assemble_once=assemble_once)

    out_flat = pl.pallas_call(
        kernel,
        out_shape=jax.ShapeDtypeStruct((n, m_pad, ocp), out_dtype),
        grid_spec=pltpu.PrefetchScalarGridSpec(
            num_scalar_prefetch=0,
            grid=grid,
            in_specs=in_specs,
            out_specs=o_spec,
            scratch_shapes=scratch),
        compiler_params=pltpu.CompilerParams(
            dimension_semantics=dims,
            vmem_limit_bytes=vmem_limit),
        cost_estimate=pl.CostEstimate(flops=int(flops), transcendentals=0,
                                      bytes_accessed=int(bytes_accessed)),
    )(*operands)

    # Slice off junk rows/columns (flattened-width layout) and OC padding.
    out = out_flat[:, :oh * wp, :].reshape(n, oh, wp, ocp)[:, :, :ow, :oc]
    return out


# ----------------------------------------------------------------------------
# NCHW wrapper (PyTorch F.conv2d layout): transpose once per side.
# ----------------------------------------------------------------------------
@functools.partial(jax.jit, static_argnames=("stride", "padding", "compute_dtype"))
def conv2d_forward(x, weights, bias, *, stride, padding, compute_dtype=None):
    """x: (N, C, H, W); weights: (OC, C, KH, KW); bias: (OC,) -> (N, OC, OH, OW)."""
    y = conv2d_forward_nhwc(jnp.transpose(x, (0, 2, 3, 1)), weights, bias,
                            stride=stride, padding=padding,
                            compute_dtype=compute_dtype)
    return jnp.transpose(y, (0, 3, 1, 2))


# ----------------------------------------------------------------------------
# Conv2D module equivalent (forward pass only)
# ----------------------------------------------------------------------------
class Conv2DPallas:
    def __init__(self, in_channels, out_channels, kernel_size, stride, padding,
                 key=None):
        self.in_channels = in_channels
        self.out_channels = out_channels
        self.kernel_size = kernel_size
        self.stride = stride
        self.padding = padding
        if key is None:
            key = jax.random.PRNGKey(0)
        w_key, b_key = jax.random.split(key)
        fan_in = in_channels * kernel_size * kernel_size
        bound = 1.0 / (fan_in ** 0.5)
        # W: (OC, C, KH, KW), b: (OC,) — kaiming-uniform-style init.
        self.W = jax.random.uniform(
            w_key, (out_channels, in_channels, kernel_size, kernel_size),
            dtype=jnp.float32, minval=-bound, maxval=bound)
        self.b = jax.random.uniform(
            b_key, (out_channels,), dtype=jnp.float32,
            minval=-bound, maxval=bound)

    def forward(self, X):
        """X: (N, C, H, W) float32 -> (N, OC, OH, OW) float32."""
        return conv2d_forward(X, self.W, self.b, stride=self.stride,
                              padding=self.padding)

    __call__ = forward
    # TODO(synk): backward / zero_grad / apply_grad of the reference module are
    # training-only and not implemented here (forward pass only).


# ----------------------------------------------------------------------------
if __name__ == "__main__":
    key = jax.random.PRNGKey(0)
    x_key, p_key = jax.random.split(key)

    # Small shapes consistent with a Conv2D forward.
    N, C, H, W = 2, 4, 16, 16
    OC, K, S, P = 8, 3, 1, 1

    x = jax.random.normal(x_key, (N, C, H, W), dtype=jnp.float32)

    conv = Conv2DPallas(C, OC, K, S, P, key=p_key)
    y = jax.block_until_ready(conv(x))

    # Sanity check against XLA's conv (same semantics as F.conv2d).
    y_ref = jax.lax.conv_general_dilated(
        x, conv.W, window_strides=(S, S), padding=[(P, P), (P, P)],
        dimension_numbers=("NCHW", "OIHW", "NCHW"),
    ) + conv.b.reshape(1, OC, 1, 1)

    assert y.shape == (N, OC, H, W), y.shape
    assert jnp.allclose(y, y_ref, atol=1e-4, rtol=1e-4), (
        float(jnp.max(jnp.abs(y - y_ref))))

    print("KERNEL_OK")
</pallas_src>

<mosaic_0001>
module attributes {stable_mosaic.version = 11 : i64} {
  func.func @_conv2d_fused_kernel(%arg0: i32, %arg1: i32, %arg2: i32, %arg3: memref<1x320x4xf32, #tpu.memory_space<vmem>>, %arg4: memref<1x40x4xf32, #tpu.memory_space<vmem>>, %arg5: memref<3x12x128xf32, #tpu.memory_space<vmem>>, %arg6: memref<1x128xf32, #tpu.memory_space<vmem>>, %arg7: memref<1x320x128xf32, #tpu.memory_space<vmem>>, %arg8: memref<360x4xf32, #tpu.memory_space<vmem>>, %arg9: memref<320x12xf32, #tpu.memory_space<vmem>>) attributes {dimension_semantics = [#tpu.dimension_semantics<parallel>, #tpu.dimension_semantics<parallel>, #tpu.dimension_semantics<arbitrary>], iteration_bounds = array<i64: 2, 1, 1>, scalar_prefetch = 0 : i64, scratch_operands = 2 : i64, tpu.core_type = #tpu.core_type<tc>, window_params = [{transform_indices = @transform_0, window_bounds = array<i64: 1, 320, 4>}, {transform_indices = @transform_1, window_bounds = array<i64: 1, 40, 4>}, {pipeline_mode = #tpu.pipeline_mode<synchronous>, transform_indices = @transform_2, window_bounds = array<i64: 3, 12, 128>}, {pipeline_mode = #tpu.pipeline_mode<synchronous>, transform_indices = @transform_3, window_bounds = array<i64: 1, 128>}, {transform_indices = @transform_4, window_bounds = array<i64: 1, 320, 128>}]} {
    %c0_i32 = arith.constant 0 : i32
    %0 = arith.cmpi eq, %arg2, %c0_i32 : i32
    %1 = arith.extui %0 : i1 to i32
    %c0_i32_0 = arith.constant 0 : i32
    %2 = arith.cmpi ne, %1, %c0_i32_0 : i32
    scf.if %2 {
      %c0_49 = arith.constant 0 : index
      %c0_50 = arith.constant 0 : index
      %c0_51 = arith.constant 0 : index
      %43 = vector.load %arg3[%c0_49, %c0_50, %c0_51] : memref<1x320x4xf32, #tpu.memory_space<vmem>>, vector<1x320x4xf32>
      %44 = vector.shape_cast %43 : vector<1x320x4xf32> to vector<320x4xf32>
      %c0_52 = arith.constant 0 : index
      %c0_53 = arith.constant 0 : index
      %45 = vector.load %arg8[%c0_52, %c0_53] : memref<360x4xf32, #tpu.memory_space<vmem>>, vector<320x4xf32>
      tpu.vector_store %arg8[%c0_52, %c0_53], %44 {strides = array<i32>} : memref<360x4xf32, #tpu.memory_space<vmem>>, vector<320x4xf32>,
      %c0_54 = arith.constant 0 : index
      %c0_55 = arith.constant 0 : index
      %c0_56 = arith.constant 0 : index
      %46 = vector.load %arg4[%c0_54, %c0_55, %c0_56] : memref<1x40x4xf32, #tpu.memory_space<vmem>>, vector<1x40x4xf32>
      %47 = vector.shape_cast %46 : vector<1x40x4xf32> to vector<40x4xf32>
      %c320 = arith.constant 320 : index
      %c0_57 = arith.constant 0 : index
      %48 = vector.load %arg8[%c320, %c0_57] : memref<360x4xf32, #tpu.memory_space<vmem>>, vector<40x4xf32>
      tpu.vector_store %arg8[%c320, %c0_57], %47 {strides = array<i32>} : memref<360x4xf32, #tpu.memory_space<vmem>>, vector<40x4xf32>,
    } else {
    }
    %cst = arith.constant 0.000000e+00 : f32
    %3 = vector.broadcast %cst : f32 to vector<320x128xf32>
    %c0 = arith.constant 0 : index
    %c0_1 = arith.constant 0 : index
    %4 = vector.load %arg8[%c0, %c0_1] : memref<360x4xf32, #tpu.memory_space<vmem>>, vector<320x4xf32>
    %c0_2 = arith.constant 0 : index
    %c0_3 = arith.constant 0 : index
    %5 = vector.load %arg9[%c0_2, %c0_3] : memref<320x12xf32, #tpu.memory_space<vmem>>, vector<320x4xf32>
    tpu.vector_store %arg9[%c0_2, %c0_3], %4 {strides = array<i32>} : memref<320x12xf32, #tpu.memory_space<vmem>>, vector<320x4xf32>,
    %c1 = arith.constant 1 : index
    %c0_4 = arith.constant 0 : index
    %6 = vector.load %arg8[%c1, %c0_4] : memref<360x4xf32, #tpu.memory_space<vmem>>, vector<320x4xf32>
    %c0_5 = arith.constant 0 : index
    %c4 = arith.constant 4 : index
    %7 = vector.load %arg9[%c0_5, %c4] : memref<320x12xf32, #tpu.memory_space<vmem>>, vector<320x4xf32>
    tpu.vector_store %arg9[%c0_5, %c4], %6 {strides = array<i32>} : memref<320x12xf32, #tpu.memory_space<vmem>>, vector<320x4xf32>,
    %c2 = arith.constant 2 : index
    %c0_6 = arith.constant 0 : index
    %8 = vector.load %arg8[%c2, %c0_6] : memref<360x4xf32, #tpu.memory_space<vmem>>, vector<320x4xf32>
    %c0_7 = arith.constant 0 : index
    %c8 = arith.constant 8 : index
    %9 = vector.load %arg9[%c0_7, %c8] : memref<320x12xf32, #tpu.memory_space<vmem>>, vector<320x4xf32>
    tpu.vector_store %arg9[%c0_7, %c8], %8 {strides = array<i32>} : memref<320x12xf32, #tpu.memory_space<vmem>>, vector<320x4xf32>,
    %c0_8 = arith.constant 0 : index
    %c0_9 = arith.constant 0 : index
    %10 = vector.load %arg9[%c0_8, %c0_9] : memref<320x12xf32, #tpu.memory_space<vmem>>, vector<320x12xf32>
    %c0_10 = arith.constant 0 : index
    %c0_11 = arith.constant 0 : index
    %c0_12 = arith.constant 0 : index
    %11 = vector.load %arg5[%c0_10, %c0_11, %c0_12] : memref<3x12x128xf32, #tpu.memory_space<vmem>>, vector<1x12x128xf32>
    %12 = vector.shape_cast %11 : vector<1x12x128xf32> to vector<12x128xf32>
    %cst_13 = arith.constant dense<0.000000e+00> : vector<320x128xf32>
    %13 = tpu.matmul %10, %12, %cst_13 {dimension_numbers = #tpu.dot_dimension_numbers<[1], [0], [0], [1], [0, 0, 1, 1], [], []>} : vector<320x12xf32>, vector<12x128xf32>, vector<320x128xf32> -> vector<320x128xf32>
    %14 = arith.addf %3, %13 : vector<320x128xf32>
    %c18 = arith.constant 18 : index
    %c0_14 = arith.constant 0 : index
    %15 = vector.load %arg8[%c18, %c0_14] : memref<360x4xf32, #tpu.memory_space<vmem>>, vector<320x4xf32>
    %c0_15 = arith.constant 0 : index
    %c0_16 = arith.constant 0 : index
    %16 = vector.load %arg9[%c0_15, %c0_16] : memref<320x12xf32, #tpu.memory_space<vmem>>, vector<320x4xf32>
    tpu.vector_store %arg9[%c0_15, %c0_16], %15 {strides = array<i32>} : memref<320x12xf32, #tpu.memory_space<vmem>>, vector<320x4xf32>,
    %c19 = arith.constant 19 : index
    %c0_17 = arith.constant 0 : index
    %17 = vector.load %arg8[%c19, %c0_17] : memref<360x4xf32, #tpu.memory_space<vmem>>, vector<320x4xf32>
    %c0_18 = arith.constant 0 : index
    %c4_19 = arith.constant 4 : index
    %18 = vector.load %arg9[%c0_18, %c4_19] : memref<320x12xf32, #tpu.memory_space<vmem>>, vector<320x4xf32>
    tpu.vector_store %arg9[%c0_18, %c4_19], %17 {strides = array<i32>} : memref<320x12xf32, #tpu.memory_space<vmem>>, vector<320x4xf32>,
    %c20 = arith.constant 20 : index
    %c0_20 = arith.constant 0 : index
    %19 = vector.load %arg8[%c20, %c0_20] : memref<360x4xf32, #tpu.memory_space<vmem>>, vector<320x4xf32>
    %c0_21 = arith.constant 0 : index
    %c8_22 = arith.constant 8 : index
    %20 = vector.load %arg9[%c0_21, %c8_22] : memref<320x12xf32, #tpu.memory_space<vmem>>, vector<320x4xf32>
    tpu.vector_store %arg9[%c0_21, %c8_22], %19 {strides = array<i32>} : memref<320x12xf32, #tpu.memory_space<vmem>>, vector<320x4xf32>,
    %c0_23 = arith.constant 0 : index
    %c0_24 = arith.constant 0 : index
    %21 = vector.load %arg9[%c0_23, %c0_24] : memref<320x12xf32, #tpu.memory_space<vmem>>, vector<320x12xf32>
    %c1_25 = arith.constant 1 : index
    %c0_26 = arith.constant 0 : index
    %c0_27 = arith.constant 0 : index
    %22 = vector.load %arg5[%c1_25, %c0_26, %c0_27] : memref<3x12x128xf32, #tpu.memory_space<vmem>>, vector<1x12x128xf32>
    %23 = vector.shape_cast %22 : vector<1x12x128xf32> to vector<12x128xf32>
    %cst_28 = arith.constant dense<0.000000e+00> : vector<320x128xf32>
    %24 = tpu.matmul %21, %23, %cst_28 {dimension_numbers = #tpu.dot_dimension_numbers<[1], [0], [0], [1], [0, 0, 1, 1], [], []>} : vector<320x12xf32>, vector<12x128xf32>, vector<320x128xf32> -> vector<320x128xf32>
    %25 = arith.addf %14, %24 : vector<320x128xf32>
    %c36 = arith.constant 36 : index
    %c0_29 = arith.constant 0 : index
    %26 = vector.load %arg8[%c36, %c0_29] : memref<360x4xf32, #tpu.memory_space<vmem>>, vector<320x4xf32>
    %c0_30 = arith.constant 0 : index
    %c0_31 = arith.constant 0 : index
    %27 = vector.load %arg9[%c0_30, %c0_31] : memref<320x12xf32, #tpu.memory_space<vmem>>, vector<320x4xf32>
    tpu.vector_store %arg9[%c0_30, %c0_31], %26 {strides = array<i32>} : memref<320x12xf32, #tpu.memory_space<vmem>>, vector<320x4xf32>,
    %c37 = arith.constant 37 : index
    %c0_32 = arith.constant 0 : index
    %28 = vector.load %arg8[%c37, %c0_32] : memref<360x4xf32, #tpu.memory_space<vmem>>, vector<320x4xf32>
    %c0_33 = arith.constant 0 : index
    %c4_34 = arith.constant 4 : index
    %29 = vector.load %arg9[%c0_33, %c4_34] : memref<320x12xf32, #tpu.memory_space<vmem>>, vector<320x4xf32>
    tpu.vector_store %arg9[%c0_33, %c4_34], %28 {strides = array<i32>} : memref<320x12xf32, #tpu.memory_space<vmem>>, vector<320x4xf32>,
    %c38 = arith.constant 38 : index
    %c0_35 = arith.constant 0 : index
    %30 = vector.load %arg8[%c38, %c0_35] : memref<360x4xf32, #tpu.memory_space<vmem>>, vector<320x4xf32>
    %c0_36 = arith.constant 0 : index
    %c8_37 = arith.constant 8 : index
    %31 = vector.load %arg9[%c0_36, %c8_37] : memref<320x12xf32, #tpu.memory_space<vmem>>, vector<320x4xf32>
    tpu.vector_store %arg9[%c0_36, %c8_37], %30 {strides = array<i32>} : memref<320x12xf32, #tpu.memory_space<vmem>>, vector<320x4xf32>,
    %c0_38 = arith.constant 0 : index
    %c0_39 = arith.constant 0 : index
    %32 = vector.load %arg9[%c0_38, %c0_39] : memref<320x12xf32, #tpu.memory_space<vmem>>, vector<320x12xf32>
    %c2_40 = arith.constant 2 : index
    %c0_41 = arith.constant 0 : index
    %c0_42 = arith.constant 0 : index
    %33 = vector.load %arg5[%c2_40, %c0_41, %c0_42] : memref<3x12x128xf32, #tpu.memory_space<vmem>>, vector<1x12x128xf32>
    %34 = vector.shape_cast %33 : vector<1x12x128xf32> to vector<12x128xf32>
    %cst_43 = arith.constant dense<0.000000e+00> : vector<320x128xf32>
    %35 = tpu.matmul %32, %34, %cst_43 {dimension_numbers = #tpu.dot_dimension_numbers<[1], [0], [0], [1], [0, 0, 1, 1], [], []>} : vector<320x12xf32>, vector<12x128xf32>, vector<320x128xf32> -> vector<320x128xf32>
    %36 = arith.addf %25, %35 : vector<320x128xf32>
    %c0_44 = arith.constant 0 : index
    %c0_45 = arith.constant 0 : index
    %37 = vector.load %arg6[%c0_44, %c0_45] : memref<1x128xf32, #tpu.memory_space<vmem>>, vector<1x128xf32>
    %38 = vector.broadcast %37 : vector<1x128xf32> to vector<320x128xf32>
    %39 = arith.addf %36, %38 : vector<320x128xf32>
    %c0_46 = arith.constant 0 : index
    %c0_47 = arith.constant 0 : index
    %c0_48 = arith.constant 0 : index
    %40 = vector.load %arg7[%c0_46, %c0_47, %c0_48] : memref<1x320x128xf32, #tpu.memory_space<vmem>>, vector<1x320x128xf32>
    %41 = vector.shape_cast %40 : vector<1x320x128xf32> to vector<320x128xf32>
    %42 = vector.shape_cast %39 : vector<320x128xf32> to vector<1x320x128xf32>
    tpu.vector_store %arg7[%c0_46, %c0_47, %c0_48], %42 {strides = array<i32>} : memref<1x320x128xf32, #tpu.memory_space<vmem>>, vector<1x320x128xf32>,
    return
  }
  func.func @transform_0(%arg0: i32, %arg1: i32, %arg2: i32) -> (i32, i32, i32) {
    %c0_i32 = arith.constant 0 : i32
    %c0_i32_0 = arith.constant 0 : i32
    return %arg0, %arg1, %c0_i32 : i32, i32, i32
  }
  func.func @transform_1(%arg0: i32, %arg1: i32, %arg2: i32) -> (i32, i32, i32) {
    %c1_i32 = arith.constant 1 : i32
    %0 = arith.addi %arg1, %c1_i32 : i32
    %c8_i32 = arith.constant 8 : i32
    %1 = arith.muli %0, %c8_i32 : i32
    %c0_i32 = arith.constant 0 : i32
    %c0_i32_0 = arith.constant 0 : i32
    return %arg0, %1, %c0_i32 : i32, i32, i32
  }
  func.func @transform_2(%arg0: i32, %arg1: i32, %arg2: i32) -> (i32, i32, i32) {
    %c0_i32 = arith.constant 0 : i32
    %c0_i32_0 = arith.constant 0 : i32
    %c0_i32_1 = arith.constant 0 : i32
    %c0_i32_2 = arith.constant 0 : i32
    return %c0_i32, %c0_i32_0, %c0_i32_1 : i32, i32, i32
  }
  func.func @transform_3(%arg0: i32, %arg1: i32, %arg2: i32) -> (i32, i32) {
    %c0_i32 = arith.constant 0 : i32
    %c0_i32_0 = arith.constant 0 : i32
    %c0_i32_1 = arith.constant 0 : i32
    return %c0_i32, %c0_i32_0 : i32, i32
  }
  func.func @transform_4(%arg0: i32, %arg1: i32, %arg2: i32) -> (i32, i32, i32) {
    %c0_i32 = arith.constant 0 : i32
    return %arg0, %arg1, %arg2 : i32, i32, i32
  }
}

</mosaic_0001>

<llo_original>
// kernel: conv2d_forward_nhwc.1
$region0: #{conv2d_forward_nhwc.1}
  #allocation0 [shape = 'u32[]', space=smem, size = 0x4, offset = 0x4, fixed_abs, tag = 'smem constant byte address 0x4 - core index']
  #allocation1 [shape = 'u32[144,128]{1,0:T(1,128)}', space=vmem, size = 0x12000, scoped, tag = 'internal scratch']
  #allocation2 [shape = 'f32[360,4]{1,0:T(8,128)}', space=vmem, size = 0x2d000, scoped, tag = 'scratch operand']
  #allocation3 [shape = 'f32[320,12]{1,0:T(8,128)}', space=vmem, size = 0x28000, scoped, tag = 'scratch operand']
  %s0 = inlined_call_operand.vmem [shape: f32[2,640,4], index: 0, kind: input, shape index: {}, may-alias: {0,1}]
  %s1 = inlined_call_operand.vmem [shape: f32[2,640,4], index: 1, kind: input, shape index: {}, may-alias: {0,1}]
  %s2 = inlined_call_operand.vmem [shape: f32[3,12,128], index: 2, kind: input, shape index: {}]
  %s3 = inlined_call_operand.vmem [shape: f32[1,128], index: 3, kind: input, shape index: {}]
  %s4 = inlined_call_operand.vmem [shape: f32[2,320,128], index: 4, kind: output, shape index: {}]
  %s5 = sld [smem:[#allocation0]]
  $region53: #{conv2d_forward_nhwc.1} parent=0
    _
  %s7 = ssub.s32 1, %s5
  %s8 = scalar_select 0, %s7, %s5
  loop: start=0, step=1, limit=4
  $region2: #{conv2d_forward_nhwc.1} parent=0 // loop_pre_header
    _
  $region3: #{conv2d_forward_nhwc.1} parent=0 // loop_header
    %s10 = sphi 0, %s14
    %p11 = scmp.ge.s32.totalorder %s10, 4
    %s17 = sphi 0, %s36
    %s18 = sphi 0, %s32
    %s19 = sphi 0, %s28
    %s20 = sphi 0, %s17
    %s21 = sphi 0, %s18
    %s22 = sphi 0, %s19
    %s23 = sphi 0, %s20
    %s24 = sphi 0, %s21
    %s25 = sphi 0, %s22
    %s41 = sphi 0, %s43
    %s44 = sphi 0, %s41
    %s45 = sphi 0, %s44
    %s61 = sphi 0, %s45
    %s73 = sphi 0, %s75
    %s76 = sphi 0, %s73
    %s77 = sphi 0, %s76
    %s93 = sphi 0, %s77
    %s97 = sphi 0, %s97
    %s99 = sphi 0, %s97
    %s100 = sphi 0, %s99
    %s114 = sphi 0, %s100
    %s118 = sphi 0, %s118
    %s120 = sphi 0, %s118
    %s121 = sphi 0, %s120
    %s135 = sphi 0, %s121
    %s145 = sphi 0, %s147
    %s148 = sphi 0, %s145
    %s149 = sphi 0, %s148
    %s165 = sphi 0, %s149
  $region4: #{conv2d_forward_nhwc.1} parent=0 // loop_header_branch
    %13 = sbr.rel (%p11) target = $region8
  $region5: #{conv2d_forward_nhwc.1} parent=0 // loop_body
    %s15 = ssub.s32 %s10, 1
    %s16 = ssub.s32 %s10, 2
    %s26 = sadd.s32 1, %s19
    %p27 = scmp.ge.s32.totalorder %s26, 1
    %s28 = scalar_select %p27, 0, %s26
    %s29 = sadd.s32 1, %s18
    %s30 = scalar_select %p27, %s29, %s18
    %p31 = scmp.ge.s32.totalorder %s30, 1
    %s32 = scalar_select %p31, 0, %s30
    %s33 = sadd.s32 1, %s17
    %s34 = scalar_select %p31, %s33, %s17
    %p35 = scmp.ge.s32.totalorder %s34, 2
    %s36 = scalar_select %p35, 0, %s34
    %s37 = ssub.s32 %s17, %s36
    %s38 = ssub.s32 %s18, %s32
    %s39 = sor.u32 %s37, %s38
    %p40 = scmp.eq.s32.totalorder %s39, 0
    %s42 = sadd.s32 %s41, 1
    %s43 = scalar_select %p40, %s41, %s42
    %p46 = pneg %p40
    %p47 = scmp.eq.s32.totalorder %s10, 1
    %p48 = por %p46, %p47
    %p49 = scmp.ne.s32.totalorder %s41, %s44
    %p50 = scmp.eq.s32.totalorder %s10, 0
    %p51 = por %p49, %p50
    %p52 = scmp.ne.s32.totalorder %s41, %s44
    %p53 = scmp.eq.s32.totalorder %s15, 1
    %p54 = por %p52, %p53
    %p55 = scmp.ne.s32.totalorder %s44, %s45
    %p56 = scmp.eq.s32.totalorder %s15, 0
    %p57 = por %p55, %p56
    %p58 = scmp.ne.s32.totalorder %s44, %s45
    %p59 = scmp.eq.s32.totalorder %s16, 1
    %p60 = por %p58, %p59
    %p62 = scmp.ne.s32.totalorder %s45, %s61
    %p63 = scmp.eq.s32.totalorder %s16, 0
    %p64 = por %p62, %p63
    %s65 = sadd.s32 %s18, 1
    %s66 = smul.u32 %s65, 8
    %s67 = sadd.s32 %s32, 1
    %s68 = smul.u32 %s67, 8
    %s69 = ssub.s32 %s17, %s36
    %s70 = ssub.s32 %s66, %s68
    %s71 = sor.u32 %s69, %s70
    %p72 = scmp.eq.s32.totalorder %s71, 0
    %s74 = sadd.s32 %s73, 1
    %s75 = scalar_select %p72, %s73, %s74
    %p78 = pneg %p72
    %p79 = scmp.eq.s32.totalorder %s10, 1
    %p80 = por %p78, %p79
    %p81 = scmp.ne.s32.totalorder %s73, %s76
    %p82 = scmp.eq.s32.totalorder %s10, 0
    %p83 = por %p81, %p82
    %p84 = scmp.ne.s32.totalorder %s73, %s76
    %p85 = scmp.eq.s32.totalorder %s15, 1
    %p86 = por %p84, %p85
    %p87 = scmp.ne.s32.totalorder %s76, %s77
    %p88 = scmp.eq.s32.totalorder %s15, 0
    %p89 = por %p87, %p88
    %p90 = scmp.ne.s32.totalorder %s76, %s77
    %p91 = scmp.eq.s32.totalorder %s16, 1
    %p92 = por %p90, %p91
    %p94 = scmp.ne.s32.totalorder %s77, %s93
    %p95 = scmp.eq.s32.totalorder %s16, 0
    %p96 = por %p94, %p95
    %s98 = sadd.s32 %s97, 1
    %p101 = scmp.eq.s32.totalorder %s10, 1
    %p102 = scmp.ne.s32.totalorder %s97, %s99
    %p103 = scmp.eq.s32.totalorder %s10, 0
    %p104 = por %p102, %p103
    %p105 = scmp.ne.s32.totalorder %s97, %s99
    %p106 = scmp.eq.s32.totalorder %s15, 1
    %p107 = por %p105, %p106
    %p108 = scmp.ne.s32.totalorder %s99, %s100
    %p109 = scmp.eq.s32.totalorder %s15, 0
    %p110 = por %p108, %p109
    %p111 = scmp.ne.s32.totalorder %s99, %s100
    %p112 = scmp.eq.s32.totalorder %s16, 1
    %p113 = por %p111, %p112
    %p115 = scmp.ne.s32.totalorder %s100, %s114
    %p116 = scmp.eq.s32.totalorder %s16, 0
    %p117 = por %p115, %p116
    %s119 = sadd.s32 %s118, 1
    %p122 = scmp.eq.s32.totalorder %s10, 1
    %p123 = scmp.ne.s32.totalorder %s118, %s120
    %p124 = scmp.eq.s32.totalorder %s10, 0
    %p125 = por %p123, %p124
    %p126 = scmp.ne.s32.totalorder %s118, %s120
    %p127 = scmp.eq.s32.totalorder %s15, 1
    %p128 = por %p126, %p127
    %p129 = scmp.ne.s32.totalorder %s120, %s121
    %p130 = scmp.eq.s32.totalorder %s15, 0
    %p131 = por %p129, %p130
    %p132 = scmp.ne.s32.totalorder %s120, %s121
    %p133 = scmp.eq.s32.totalorder %s16, 1
    %p134 = por %p132, %p133
    %p136 = scmp.ne.s32.totalorder %s121, %s135
    %p137 = scmp.eq.s32.totalorder %s16, 0
    %p138 = por %p136, %p137
    %s139 = ssub.s32 %s17, %s36
    %s140 = ssub.s32 %s18, %s32
    %s141 = sor.u32 %s139, %s140
    %s142 = ssub.s32 %s19, %s28
    %s143 = sor.u32 %s141, %s142
    %p144 = scmp.eq.s32.totalorder %s143, 0
    %s146 = sadd.s32 %s145, 1
    %s147 = scalar_select %p144, %s145, %s146
    %p150 = pneg %p144
    %p151 = scmp.eq.s32.totalorder %s10, 1
    %p152 = por %p150, %p151
    %p153 = scmp.ne.s32.totalorder %s145, %s148
    %p154 = scmp.eq.s32.totalorder %s10, 0
    %p155 = por %p153, %p154
    %p156 = scmp.ne.s32.totalorder %s145, %s148
    %p157 = scmp.eq.s32.totalorder %s15, 1
    %p158 = por %p156, %p157
    %p159 = scmp.ne.s32.totalorder %s148, %s149
    %p160 = scmp.eq.s32.totalorder %s15, 0
    %p161 = por %p159, %p160
    %p162 = scmp.ne.s32.totalorder %s148, %s149
    %p163 = scmp.eq.s32.totalorder %s16, 1
    %p164 = por %p162, %p163
    %p166 = scmp.ne.s32.totalorder %s149, %s165
    %p167 = scmp.eq.s32.totalorder %s16, 0
    %p168 = por %p166, %p167
    %p169 = scmp.le.s32.totalorder 1, %s10
    %p170 = scmp.lt.s32.totalorder %s10, 3
    %p171 = pnand %p169, %p170
    %p172 = pneg %p171
    // Predicated region
    $region9: #{conv2d_forward_nhwc.1} parent=5 // pred_check
      _
    $region10: #{conv2d_forward_nhwc.1} parent=5 // pred_check_branch
      %174 = sbr.rel (%p171) target = $region12
    $region11: #{conv2d_forward_nhwc.1} parent=5 // pred_region
      %s175 = ssub.s32 %s10, 1
      // Predicated region
      $region13: #{conv2d_forward_nhwc.1} parent=11 // pred_check
        %p176 = pneg %p110
      $region14: #{conv2d_forward_nhwc.1} parent=11 // pred_check_branch
        %178 = sbr.rel (%p176) target = $region16
      $region15: #{conv2d_forward_nhwc.1} parent=11 // pred_region
        _
      $region16: #{conv2d_forward_nhwc.1} parent=11 // pred_fallthru
        _
      // Predicated region
      $region17: #{conv2d_forward_nhwc.1} parent=11 // pred_check
        %p179 = pneg %p131
      $region18: #{conv2d_forward_nhwc.1} parent=11 // pred_check_branch
        %181 = sbr.rel (%p179) target = $region20
      $region19: #{conv2d_forward_nhwc.1} parent=11 // pred_region
        _
      $region20: #{conv2d_forward_nhwc.1} parent=11 // pred_fallthru
        _
    $region12: #{conv2d_forward_nhwc.1} parent=5 // pred_fallthru
      _
    %p182 = scmp.lt.s32.totalorder %s10, 2
    // Predicated region
    $region21: #{conv2d_forward_nhwc.1} parent=5 // pred_check
      %p183 = pneg %p182
    $region22: #{conv2d_forward_nhwc.1} parent=5 // pred_check_branch
      %185 = sbr.rel (%p183) target = $region24
    $region23: #{conv2d_forward_nhwc.1} parent=5 // pred_region
      // Predicated region
      $region25: #{conv2d_forward_nhwc.1} parent=23 // pred_check
        %p186 = pneg %p51
      $region26: #{conv2d_forward_nhwc.1} parent=23 // pred_check_branch
        %188 = sbr.rel (%p186) target = $region28
      $region27: #{conv2d_forward_nhwc.1} parent=23 // pred_region
        %s189 = smul.u32 40, %s18
        %p190 = scmp.lt.s32.totalorder %s17, 1
        %s191 = scalar_select %p190, %s17, 1
        %p192 = scmp.lt.s32.totalorder %s189, 79
        %s193 = scalar_select %p192, %s189, 79
        %s194 = smul.addr %s191, 80
        %s195 = sadd.s32 %s193, %s194
        %s196 = smul.addr %s195, 8
        %s197 = scalar_lea.vmem %s0, %s196
        %s198 = smul.u32 40, %s18
      $region28: #{conv2d_forward_nhwc.1} parent=23 // pred_fallthru
        _
      // Predicated region
      $region29: #{conv2d_forward_nhwc.1} parent=23 // pred_check
        %p199 = pneg %p83
      $region30: #{conv2d_forward_nhwc.1} parent=23 // pred_check_branch
        %201 = sbr.rel (%p199) target = $region32
      $region31: #{conv2d_forward_nhwc.1} parent=23 // pred_region
        %s202 = sadd.s32 %s18, 1
        %s203 = smul.u32 %s202, 8
        %s204 = smul.u32 5, %s203
        %p205 = scmp.lt.s32.totalorder %s17, 1
        %s206 = scalar_select %p205, %s17, 1
        %p207 = scmp.lt.s32.totalorder %s204, 79
        %s208 = scalar_select %p207, %s204, 79
        %s209 = smul.addr %s206, 80
        %s210 = sadd.s32 %s208, %s209
        %s211 = smul.addr %s210, 8
        %s212 = scalar_lea.vmem %s1, %s211
        %s213 = sadd.s32 %s18, 1
        %s214 = smul.u32 %s213, 8
        %s215 = smul.u32 5, %s214
      $region32: #{conv2d_forward_nhwc.1} parent=23 // pred_fallthru
        _
    $region24: #{conv2d_forward_nhwc.1} parent=5 // pred_fallthru
      _
    %p216 = scmp.le.s32.totalorder 1, %s10
    %p217 = scmp.lt.s32.totalorder %s10, 3
    %p218 = pnand %p216, %p217
    %p219 = pneg %p218
    // Predicated region
    $region33: #{conv2d_forward_nhwc.1} parent=5 // pred_check
      _
    $region34: #{conv2d_forward_nhwc.1} parent=5 // pred_check_branch
      %221 = sbr.rel (%p218) target = $region36
    $region35: #{conv2d_forward_nhwc.1} parent=5 // pred_region
      %s222 = ssub.s32 %s10, 1
      %s223 = smul.u32 40, %s21
      %p224 = scmp.lt.s32.totalorder %s20, 1
      %s225 = scalar_select %p224, %s20, 1
      %p226 = scmp.lt.s32.totalorder %s223, 79
      %s227 = scalar_select %p226, %s223, 79
      %s228 = smul.addr %s225, 80
      %s229 = sadd.s32 %s227, %s228
      %s230 = smul.addr %s229, 8
      %s231 = scalar_lea.vmem %s0, %s230
      %p232 = pneg %p57
      %p233 = pneg %p54
      %s234 = sadd.s32 %s21, 1
      %s235 = smul.u32 %s234, 8
      %s236 = smul.u32 5, %s235
      %p237 = scmp.lt.s32.totalorder %s20, 1
      %s238 = scalar_select %p237, %s20, 1
      %p239 = scmp.lt.s32.totalorder %s236, 79
      %s240 = scalar_select %p239, %s236, 79
      %s241 = smul.addr %s238, 80
      %s242 = sadd.s32 %s240, %s241
      %s243 = smul.addr %s242, 8
      %s244 = scalar_lea.vmem %s1, %s243
      %p245 = pneg %p89
      %p246 = pneg %p86
      %p247 = pneg %p110
      %p248 = pneg %p107
      %p249 = pneg %p131
      %p250 = pneg %p128
      %p251 = pneg %p161
      %p252 = pneg %p158
      %s253 = smul.u32 40, %s21
      %p254 = scmp.lt.s32.totalorder %s20, 1
      %s255 = scalar_select %p254, %s20, 1
      %p256 = scmp.lt.s32.totalorder %s253, 39
      %s257 = scalar_select %p256, %s253, 39
      %p258 = scmp.lt.s32.totalorder %s22, 0
      %s259 = scalar_select %p258, %s22, 0
      %s260 = sadd.s32 %s259, %s257
      %s261 = smul.addr %s255, 40
      %s262 = sadd.s32 %s260, %s261
      %s263 = smul.addr %s262, 8
      %s264 = scalar_lea.vmem %s4, %s263
      %s265 = smul.u32 40, %s21
      %p266 = scmp.lt.s32.totalorder %s20, 1
      %s267 = scalar_select %p266, %s20, 1
      %p268 = scmp.lt.s32.totalorder %s265, 79
      %s269 = scalar_select %p268, %s265, 79
      %s270 = smul.addr %s267, 80
      %s271 = sadd.s32 %s269, %s270
      %s272 = smul.addr %s271, 8
      %s273 = scalar_lea.vmem %s0, %s272
      %s274 = smul.u32 40, %s21
      %s275 = sadd.s32 %s21, 1
      %s276 = smul.u32 %s275, 8
      %s277 = smul.u32 5, %s276
      %p278 = scmp.lt.s32.totalorder %s20, 1
      %s279 = scalar_select %p278, %s20, 1
      %p280 = scmp.lt.s32.totalorder %s277, 79
      %s281 = scalar_select %p280, %s277, 79
      %s282 = smul.addr %s279, 80
      %s283 = sadd.s32 %s281, %s282
      %s284 = smul.addr %s283, 8
      %s285 = scalar_lea.vmem %s1, %s284
      %s286 = sadd.s32 %s21, 1
      %s287 = smul.u32 %s286, 8
      %s288 = smul.u32 5, %s287
      %s289 = smul.u32 40, %s21
      %p290 = scmp.lt.s32.totalorder %s20, 1
      %s291 = scalar_select %p290, %s20, 1
      %p292 = scmp.lt.s32.totalorder %s289, 39
      %s293 = scalar_select %p292, %s289, 39
      %p294 = scmp.lt.s32.totalorder %s22, 0
      %s295 = scalar_select %p294, %s22, 0
      %s296 = sadd.s32 %s295, %s293
      %s297 = smul.addr %s291, 40
      %s298 = sadd.s32 %s296, %s297
      %s299 = smul.addr %s298, 8
      %s300 = scalar_lea.vmem %s4, %s299
      %s301 = smul.u32 40, %s21
      %p302 = scmp.eq.s32.totalorder %s22, 0
      // Predicated region
      $region37: #{conv2d_forward_nhwc.1} parent=35 // pred_check
        %p303 = pneg %p302
      $region38: #{conv2d_forward_nhwc.1} parent=35 // pred_check_branch
        %305 = sbr.rel (%p303) target = $region40
      $region39: #{conv2d_forward_nhwc.1} parent=35 // pred_region
        %v306 = vld [vmem:[%s273] sm:$0xff]
        %v307 = vld [vmem:[%s273 + $0x8] sm:$0xff]
        %v308 = vld [vmem:[%s273 + $0x10] sm:$0xff]
        %v309 = vld [vmem:[%s273 + $0x18] sm:$0xff]
        %v310 = vld [vmem:[%s273 + $0x20] sm:$0xff]
        %v311 = vld [vmem:[%s273 + $0x28] sm:$0xff]
        %v312 = vld [vmem:[%s273 + $0x30] sm:$0xff]
        %v313 = vld [vmem:[%s273 + $0x38] sm:$0xff]
        %v314 = vld [vmem:[%s273 + $0x40] sm:$0xff]
        %v315 = vld [vmem:[%s273 + $0x48] sm:$0xff]
        %v316 = vld [vmem:[%s273 + $0x50] sm:$0xff]
        %v317 = vld [vmem:[%s273 + $0x58] sm:$0xff]
        %v318 = vld [vmem:[%s273 + $0x60] sm:$0xff]
        %v319 = vld [vmem:[%s273 + $0x68] sm:$0xff]
        %v320 = vld [vmem:[%s273 + $0x70] sm:$0xff]
        %v321 = vld [vmem:[%s273 + $0x78] sm:$0xff]
        %v322 = vld [vmem:[%s273 + $0x80] sm:$0xff]
        %v323 = vld [vmem:[%s273 + $0x88] sm:$0xff]
        %v324 = vld [vmem:[%s273 + $0x90] sm:$0xff]
        %v325 = vld [vmem:[%s273 + $0x98] sm:$0xff]
        %v326 = vld [vmem:[%s273 + $0xa0] sm:$0xff]
        %v327 = vld [vmem:[%s273 + $0xa8] sm:$0xff]
        %v328 = vld [vmem:[%s273 + $0xb0] sm:$0xff]
        %v329 = vld [vmem:[%s273 + $0xb8] sm:$0xff]
        %v330 = vld [vmem:[%s273 + $0xc0] sm:$0xff]
        %v331 = vld [vmem:[%s273 + $0xc8] sm:$0xff]
        %v332 = vld [vmem:[%s273 + $0xd0] sm:$0xff]
        %v333 = vld [vmem:[%s273 + $0xd8] sm:$0xff]
        %v334 = vld [vmem:[%s273 + $0xe0] sm:$0xff]
        %v335 = vld [vmem:[%s273 + $0xe8] sm:$0xff]
        %v336 = vld [vmem:[%s273 + $0xf0] sm:$0xff]
        %v337 = vld [vmem:[%s273 + $0xf8] sm:$0xff]
        %v338 = vld [vmem:[%s273 + $0x100] sm:$0xff]
        %v339 = vld [vmem:[%s273 + $0x108] sm:$0xff]
        %v340 = vld [vmem:[%s273 + $0x110] sm:$0xff]
        %v341 = vld [vmem:[%s273 + $0x118] sm:$0xff]
        %v342 = vld [vmem:[%s273 + $0x120] sm:$0xff]
        %v343 = vld [vmem:[%s273 + $0x128] sm:$0xff]
        %v344 = vld [vmem:[%s273 + $0x130] sm:$0xff]
        %v345 = vld [vmem:[%s273 + $0x138] sm:$0xff]
        %vm346 = vcmask 31744
        %347 = vst.msk [vmem:[#allocation2] sm:$0xff] %vm346, %v306
        %348 = vst.msk [vmem:[#allocation2 + $0x8] sm:$0xff] %vm346, %v307
        %349 = vst.msk [vmem:[#allocation2 + $0x10] sm:$0xff] %vm346, %v308
        %350 = vst.msk [vmem:[#allocation2 + $0x18] sm:$0xff] %vm346, %v309
        %351 = vst.msk [vmem:[#allocation2 + $0x20] sm:$0xff] %vm346, %v310
        %352 = vst.msk [vmem:[#allocation2 + $0x28] sm:$0xff] %vm346, %v311
        %353 = vst.msk [vmem:[#allocation2 + $0x30] sm:$0xff] %vm346, %v312
        %354 = vst.msk [vmem:[#allocation2 + $0x38] sm:$0xff] %vm346, %v313
        %355 = vst.msk [vmem:[#allocation2 + $0x40] sm:$0xff] %vm346, %v314
        %356 = vst.msk [vmem:[#allocation2 + $0x48] sm:$0xff] %vm346, %v315
        %357 = vst.msk [vmem:[#allocation2 + $0x50] sm:$0xff] %vm346, %v316
        %358 = vst.msk [vmem:[#allocation2 + $0x58] sm:$0xff] %vm346, %v317
        %359 = vst.msk [vmem:[#allocation2 + $0x60] sm:$0xff] %vm346, %v318
        %360 = vst.msk [vmem:[#allocation2 + $0x68] sm:$0xff] %vm346, %v319
        %361 = vst.msk [vmem:[#allocation2 + $0x70] sm:$0xff] %vm346, %v320
        %362 = vst.msk [vmem:[#allocation2 + $0x78] sm:$0xff] %vm346, %v321
        %363 = vst.msk [vmem:[#allocation2 + $0x80] sm:$0xff] %vm346, %v322
        %364 = vst.msk [vmem:[#allocation2 + $0x88] sm:$0xff] %vm346, %v323
        %365 = vst.msk [vmem:[#allocation2 + $0x90] sm:$0xff] %vm346, %v324
        %366 = vst.msk [vmem:[#allocation2 + $0x98] sm:$0xff] %vm346, %v325
        %367 = vst.msk [vmem:[#allocation2 + $0xa0] sm:$0xff] %vm346, %v326
        %368 = vst.msk [vmem:[#allocation2 + $0xa8] sm:$0xff] %vm346, %v327
        %369 = vst.msk [vmem:[#allocation2 + $0xb0] sm:$0xff] %vm346, %v328
        %370 = vst.msk [vmem:[#allocation2 + $0xb8] sm:$0xff] %vm346, %v329
        %371 = vst.msk [vmem:[#allocation2 + $0xc0] sm:$0xff] %vm346, %v330
        %372 = vst.msk [vmem:[#allocation2 + $0xc8] sm:$0xff] %vm346, %v331
        %373 = vst.msk [vmem:[#allocation2 + $0xd0] sm:$0xff] %vm346, %v332
        %374 = vst.msk [vmem:[#allocation2 + $0xd8] sm:$0xff] %vm346, %v333
        %375 = vst.msk [vmem:[#allocation2 + $0xe0] sm:$0xff] %vm346, %v334
        %376 = vst.msk [vmem:[#allocation2 + $0xe8] sm:$0xff] %vm346, %v335
        %377 = vst.msk [vmem:[#allocation2 + $0xf0] sm:$0xff] %vm346, %v336
        %378 = vst.msk [vmem:[#allocation2 + $0xf8] sm:$0xff] %vm346, %v337
        %379 = vst.msk [vmem:[#allocation2 + $0x100] sm:$0xff] %vm346, %v338
        %380 = vst.msk [vmem:[#allocation2 + $0x108] sm:$0xff] %vm346, %v339
        %381 = vst.msk [vmem:[#allocation2 + $0x110] sm:$0xff] %vm346, %v340
        %382 = vst.msk [vmem:[#allocation2 + $0x118] sm:$0xff] %vm346, %v341
        %383 = vst.msk [vmem:[#allocation2 + $0x120] sm:$0xff] %vm346, %v342
        %384 = vst.msk [vmem:[#allocation2 + $0x128] sm:$0xff] %vm346, %v343
        %385 = vst.msk [vmem:[#allocation2 + $0x130] sm:$0xff] %vm346, %v344
        %386 = vst.msk [vmem:[#allocation2 + $0x138] sm:$0xff] %vm346, %v345
        %v387 = vld [vmem:[%s285] sm:$0xff]
        %v388 = vld [vmem:[%s285 + $0x8] sm:$0xff]
        %v389 = vld [vmem:[%s285 + $0x10] sm:$0xff]
        %v390 = vld [vmem:[%s285 + $0x18] sm:$0xff]
        %v391 = vld [vmem:[%s285 + $0x20] sm:$0xff]
        %392 = vst.msk [vmem:[#allocation2 + $0x140] sm:$0xff] %vm346, %v387
        %393 = vst.msk [vmem:[#allocation2 + $0x148] sm:$0xff] %vm346, %v388
        %394 = vst.msk [vmem:[#allocation2 + $0x150] sm:$0xff] %vm346, %v389
        %395 = vst.msk [vmem:[#allocation2 + $0x158] sm:$0xff] %vm346, %v390
        %396 = vst.msk [vmem:[#allocation2 + $0x160] sm:$0xff] %vm346, %v391
      $region40: #{conv2d_forward_nhwc.1} parent=35 // pred_fallthru
        _
      %v397 = vld [vmem:[#allocation2] sm:$0xff]
      %v398 = vld [vmem:[#allocation2 + $0x8] sm:$0xff]
      %v399 = vld [vmem:[#allocation2 + $0x10] sm:$0xff]
      %v400 = vld [vmem:[#allocation2 + $0x18] sm:$0xff]
      %v401 = vld [vmem:[#allocation2 + $0x20] sm:$0xff]
      %v402 = vld [vmem:[#allocation2 + $0x28] sm:$0xff]
      %v403 = vld [vmem:[#allocation2 + $0x30] sm:$0xff]
      %v404 = vld [vmem:[#allocation2 + $0x38] sm:$0xff]
      %v405 = vld [vmem:[#allocation2 + $0x40] sm:$0xff]
      %v406 = vld [vmem:[#allocation2 + $0x48] sm:$0xff]
      %v407 = vld [vmem:[#allocation2 + $0x50] sm:$0xff]
      %v408 = vld [vmem:[#allocation2 + $0x58] sm:$0xff]
      %v409 = vld [vmem:[#allocation2 + $0x60] sm:$0xff]
      %v410 = vld [vmem:[#allocation2 + $0x68] sm:$0xff]
      %v411 = vld [vmem:[#allocation2 + $0x70] sm:$0xff]
      %v412 = vld [vmem:[#allocation2 + $0x78] sm:$0xff]
      %v413 = vld [vmem:[#allocation2 + $0x80] sm:$0xff]
      %v414 = vld [vmem:[#allocation2 + $0x88] sm:$0xff]
      %v415 = vld [vmem:[#allocation2 + $0x90] sm:$0xff]
      %v416 = vld [vmem:[#allocation2 + $0x98] sm:$0xff]
      %v417 = vld [vmem:[#allocation2 + $0xa0] sm:$0xff]
      %v418 = vld [vmem:[#allocation2 + $0xa8] sm:$0xff]
      %v419 = vld [vmem:[#allocation2 + $0xb0] sm:$0xff]
      %v420 = vld [vmem:[#allocation2 + $0xb8] sm:$0xff]
      %v421 = vld [vmem:[#allocation2 + $0xc0] sm:$0xff]
      %v422 = vld [vmem:[#allocation2 + $0xc8] sm:$0xff]
      %v423 = vld [vmem:[#allocation2 + $0xd0] sm:$0xff]
      %v424 = vld [vmem:[#allocation2 + $0xd8] sm:$0xff]
      %v425 = vld [vmem:[#allocation2 + $0xe0] sm:$0xff]
      %v426 = vld [vmem:[#allocation2 + $0xe8] sm:$0xff]
      %v427 = vld [vmem:[#allocation2 + $0xf0] sm:$0xff]
      %v428 = vld [vmem:[#allocation2 + $0xf8] sm:$0xff]
      %v429 = vld [vmem:[#allocation2 + $0x100] sm:$0xff]
      %v430 = vld [vmem:[#allocation2 + $0x108] sm:$0xff]
      %v431 = vld [vmem:[#allocation2 + $0x110] sm:$0xff]
      %v432 = vld [vmem:[#allocation2 + $0x118] sm:$0xff]
      %v433 = vld [vmem:[#allocation2 + $0x120] sm:$0xff]
      %v434 = vld [vmem:[#allocation2 + $0x128] sm:$0xff]
      %v435 = vld [vmem:[#allocation2 + $0x130] sm:$0xff]
      %v436 = vld [vmem:[#allocation2 + $0x138] sm:$0xff]
      %vm437 = vcmask 31744
      %438 = vst.msk [vmem:[#allocation3] sm:$0xff] %vm437, %v397
      %439 = vst.msk [vmem:[#allocation3 + $0x8] sm:$0xff] %vm437, %v398
      %440 = vst.msk [vmem:[#allocation3 + $0x10] sm:$0xff] %vm437, %v399
      %441 = vst.msk [vmem:[#allocation3 + $0x18] sm:$0xff] %vm437, %v400
      %442 = vst.msk [vmem:[#allocation3 + $0x20] sm:$0xff] %vm437, %v401
      %443 = vst.msk [vmem:[#allocation3 + $0x28] sm:$0xff] %vm437, %v402
      %444 = vst.msk [vmem:[#allocation3 + $0x30] sm:$0xff] %vm437, %v403
      %445 = vst.msk [vmem:[#allocation3 + $0x38] sm:$0xff] %vm437, %v404
      %446 = vst.msk [vmem:[#allocation3 + $0x40] sm:$0xff] %vm437, %v405
      %447 = vst.msk [vmem:[#allocation3 + $0x48] sm:$0xff] %vm437, %v406
      %448 = vst.msk [vmem:[#allocation3 + $0x50] sm:$0xff] %vm437, %v407
      %449 = vst.msk [vmem:[#allocation3 + $0x58] sm:$0xff] %vm437, %v408
      %450 = vst.msk [vmem:[#allocation3 + $0x60] sm:$0xff] %vm437, %v409
      %451 = vst.msk [vmem:[#allocation3 + $0x68] sm:$0xff] %vm437, %v410
      %452 = vst.msk [vmem:[#allocation3 + $0x70] sm:$0xff] %vm437, %v411
      %453 = vst.msk [vmem:[#allocation3 + $0x78] sm:$0xff] %vm437, %v412
      %454 = vst.msk [vmem:[#allocation3 + $0x80] sm:$0xff] %vm437, %v413
      %455 = vst.msk [vmem:[#allocation3 + $0x88] sm:$0xff] %vm437, %v414
      %456 = vst.msk [vmem:[#allocation3 + $0x90] sm:$0xff] %vm437, %v415
      %457 = vst.msk [vmem:[#allocation3 + $0x98] sm:$0xff] %vm437, %v416
      %458 = vst.msk [vmem:[#allocation3 + $0xa0] sm:$0xff] %vm437, %v417
      %459 = vst.msk [vmem:[#allocation3 + $0xa8] sm:$0xff] %vm437, %v418
      %460 = vst.msk [vmem:[#allocation3 + $0xb0] sm:$0xff] %vm437, %v419
      %461 = vst.msk [vmem:[#allocation3 + $0xb8] sm:$0xff] %vm437, %v420
      %462 = vst.msk [vmem:[#allocation3 + $0xc0] sm:$0xff] %vm437, %v421
      %463 = vst.msk [vmem:[#allocation3 + $0xc8] sm:$0xff] %vm437, %v422
      %464 = vst.msk [vmem:[#allocation3 + $0xd0] sm:$0xff] %vm437, %v423
      %465 = vst.msk [vmem:[#allocation3 + $0xd8] sm:$0xff] %vm437, %v424
      %466 = vst.msk [vmem:[#allocation3 + $0xe0] sm:$0xff] %vm437, %v425
      %467 = vst.msk [vmem:[#allocation3 + $0xe8] sm:$0xff] %vm437, %v426
      %468 = vst.msk [vmem:[#allocation3 + $0xf0] sm:$0xff] %vm437, %v427
      %469 = vst.msk [vmem:[#allocation3 + $0xf8] sm:$0xff] %vm437, %v428
      %470 = vst.msk [vmem:[#allocation3 + $0x100] sm:$0xff] %vm437, %v429
      %471 = vst.msk [vmem:[#allocation3 + $0x108] sm:$0xff] %vm437, %v430
      %472 = vst.msk [vmem:[#allocation3 + $0x110] sm:$0xff] %vm437, %v431
      %473 = vst.msk [vmem:[#allocation3 + $0x118] sm:$0xff] %vm437, %v432
      %474 = vst.msk [vmem:[#allocation3 + $0x120] sm:$0xff] %vm437, %v433
      %475 = vst.msk [vmem:[#allocation3 + $0x128] sm:$0xff] %vm437, %v434
      %476 = vst.msk [vmem:[#allocation3 + $0x130] sm:$0xff] %vm437, %v435
      %477 = vst.msk [vmem:[#allocation3 + $0x138] sm:$0xff] %vm437, %v436
      %v478 = vld [vmem:[#allocation2 + $0x1] sm:$0xff]
      %v479 = vld [vmem:[#allocation2 + $0x9] sm:$0xff]
      %v480 = vld [vmem:[#allocation2 + $0x11] sm:$0xff]
      %v481 = vld [vmem:[#allocation2 + $0x19] sm:$0xff]
      %v482 = vld [vmem:[#allocation2 + $0x21] sm:$0xff]
      %v483 = vld [vmem:[#allocation2 + $0x29] sm:$0xff]
      %v484 = vld [vmem:[#allocation2 + $0x31] sm:$0xff]
      %v485 = vld [vmem:[#allocation2 + $0x39] sm:$0xff]
      %v486 = vld [vmem:[#allocation2 + $0x41] sm:$0xff]
      %v487 = vld [vmem:[#allocation2 + $0x49] sm:$0xff]
      %v488 = vld [vmem:[#allocation2 + $0x51] sm:$0xff]
      %v489 = vld [vmem:[#allocation2 + $0x59] sm:$0xff]
      %v490 = vld [vmem:[#allocation2 + $0x61] sm:$0xff]
      %v491 = vld [vmem:[#allocation2 + $0x69] sm:$0xff]
      %v492 = vld [vmem:[#allocation2 + $0x71] sm:$0xff]
      %v493 = vld [vmem:[#allocation2 + $0x79] sm:$0xff]
      %v494 = vld [vmem:[#allocation2 + $0x81] sm:$0xff]
      %v495 = vld [vmem:[#allocation2 + $0x89] sm:$0xff]
      %v496 = vld [vmem:[#allocation2 + $0x91] sm:$0xff]
      %v497 = vld [vmem:[#allocation2 + $0x99] sm:$0xff]
      %v498 = vld [vmem:[#allocation2 + $0xa1] sm:$0xff]
      %v499 = vld [vmem:[#allocation2 + $0xa9] sm:$0xff]
      %v500 = vld [vmem:[#allocation2 + $0xb1] sm:$0xff]
      %v501 = vld [vmem:[#allocation2 + $0xb9] sm:$0xff]
      %v502 = vld [vmem:[#allocation2 + $0xc1] sm:$0xff]
      %v503 = vld [vmem:[#allocation2 + $0xc9] sm:$0xff]
      %v504 = vld [vmem:[#allocation2 + $0xd1] sm:$0xff]
      %v505 = vld [vmem:[#allocation2 + $0xd9] sm:$0xff]
      %v506 = vld [vmem:[#allocation2 + $0xe1] sm:$0xff]
      %v507 = vld [vmem:[#allocation2 + $0xe9] sm:$0xff]
      %v508 = vld [vmem:[#allocation2 + $0xf1] sm:$0xff]
      %v509 = vld [vmem:[#allocation2 + $0xf9] sm:$0xff]
      %v510 = vld [vmem:[#allocation2 + $0x101] sm:$0xff]
      %v511 = vld [vmem:[#allocation2 + $0x109] sm:$0xff]
      %v512 = vld [vmem:[#allocation2 + $0x111] sm:$0xff]
      %v513 = vld [vmem:[#allocation2 + $0x119] sm:$0xff]
      %v514 = vld [vmem:[#allocation2 + $0x121] sm:$0xff]
      %v515 = vld [vmem:[#allocation2 + $0x129] sm:$0xff]
      %v516 = vld [vmem:[#allocation2 + $0x131] sm:$0xff]
      %v517 = vld [vmem:[#allocation2 + $0x139] sm:$0xff]
      %558 = vrot.lane.b32.xlu0 %v478, 4
      %v559 = vpop.permute.xlu0 %558
      %560 = vrot.lane.b32.xlu0 %v479, 4
      %v561 = vpop.permute.xlu0 %560
      %562 = vrot.lane.b32.xlu0 %v480, 4
      %v563 = vpop.permute.xlu0 %562
      %564 = vrot.lane.b32.xlu0 %v481, 4
      %v565 = vpop.permute.xlu0 %564
      %566 = vrot.lane.b32.xlu0 %v482, 4
      %v567 = vpop.permute.xlu0 %566
      %568 = vrot.lane.b32.xlu0 %v483, 4
      %v569 = vpop.permute.xlu0 %568
      %570 = vrot.lane.b32.xlu0 %v484, 4
      %v571 = vpop.permute.xlu0 %570
      %572 = vrot.lane.b32.xlu0 %v485, 4
      %v573 = vpop.permute.xlu0 %572
      %574 = vrot.lane.b32.xlu0 %v486, 4
      %v575 = vpop.permute.xlu0 %574
      %576 = vrot.lane.b32.xlu0 %v487, 4
      %v577 = vpop.permute.xlu0 %576
      %578 = vrot.lane.b32.xlu0 %v488, 4
      %v579 = vpop.permute.xlu0 %578
      %580 = vrot.lane.b32.xlu0 %v489, 4
      %v581 = vpop.permute.xlu0 %580
      %582 = vrot.lane.b32.xlu0 %v490, 4
      %v583 = vpop.permute.xlu0 %582
      %584 = vrot.lane.b32.xlu0 %v491, 4
      %v585 = vpop.permute.xlu0 %584
      %586 = vrot.lane.b32.xlu0 %v492, 4
      %v587 = vpop.permute.xlu0 %586
      %588 = vrot.lane.b32.xlu0 %v493, 4
      %v589 = vpop.permute.xlu0 %588
      %590 = vrot.lane.b32.xlu0 %v494, 4
      %v591 = vpop.permute.xlu0 %590
      %592 = vrot.lane.b32.xlu0 %v495, 4
      %v593 = vpop.permute.xlu0 %592
      %594 = vrot.lane.b32.xlu0 %v496, 4
      %v595 = vpop.permute.xlu0 %594
      %596 = vrot.lane.b32.xlu0 %v497, 4
      %v597 = vpop.permute.xlu0 %596
      %598 = vrot.lane.b32.xlu0 %v498, 4
      %v599 = vpop.permute.xlu0 %598
      %600 = vrot.lane.b32.xlu0 %v499, 4
      %v601 = vpop.permute.xlu0 %600
      %602 = vrot.lane.b32.xlu0 %v500, 4
      %v603 = vpop.permute.xlu0 %602
      %604 = vrot.lane.b32.xlu0 %v501, 4
      %v605 = vpop.permute.xlu0 %604
      %606 = vrot.lane.b32.xlu0 %v502, 4
      %v607 = vpop.permute.xlu0 %606
      %608 = vrot.lane.b32.xlu0 %v503, 4
      %v609 = vpop.permute.xlu0 %608
      %610 = vrot.lane.b32.xlu0 %v504, 4
      %v611 = vpop.permute.xlu0 %610
      %612 = vrot.lane.b32.xlu0 %v505, 4
      %v613 = vpop.permute.xlu0 %612
      %614 = vrot.lane.b32.xlu0 %v506, 4
      %v615 = vpop.permute.xlu0 %614
      %616 = vrot.lane.b32.xlu0 %v507, 4
      %v617 = vpop.permute.xlu0 %616
      %618 = vrot.lane.b32.xlu0 %v508, 4
      %v619 = vpop.permute.xlu0 %618
      %620 = vrot.lane.b32.xlu0 %v509, 4
      %v621 = vpop.permute.xlu0 %620
      %622 = vrot.lane.b32.xlu0 %v510, 4
      %v623 = vpop.permute.xlu0 %622
      %624 = vrot.lane.b32.xlu0 %v511, 4
      %v625 = vpop.permute.xlu0 %624
      %626 = vrot.lane.b32.xlu0 %v512, 4
      %v627 = vpop.permute.xlu0 %626
      %628 = vrot.lane.b32.xlu0 %v513, 4
      %v629 = vpop.permute.xlu0 %628
      %630 = vrot.lane.b32.xlu0 %v514, 4
      %v631 = vpop.permute.xlu0 %630
      %632 = vrot.lane.b32.xlu0 %v515, 4
      %v633 = vpop.permute.xlu0 %632
      %634 = vrot.lane.b32.xlu0 %v516, 4
      %v635 = vpop.permute.xlu0 %634
      %636 = vrot.lane.b32.xlu0 %v517, 4
      %v637 = vpop.permute.xlu0 %636
      %vm678 = vcmask 64544
      %679 = vst.msk [vmem:[#allocation3] sm:$0xff] %vm678, %v559
      %680 = vst.msk [vmem:[#allocation3 + $0x8] sm:$0xff] %vm678, %v561
      %681 = vst.msk [vmem:[#allocation3 + $0x10] sm:$0xff] %vm678, %v563
      %682 = vst.msk [vmem:[#allocation3 + $0x18] sm:$0xff] %vm678, %v565
      %683 = vst.msk [vmem:[#allocation3 + $0x20] sm:$0xff] %vm678, %v567
      %684 = vst.msk [vmem:[#allocation3 + $0x28] sm:$0xff] %vm678, %v569
      %685 = vst.msk [vmem:[#allocation3 + $0x30] sm:$0xff] %vm678, %v571
      %686 = vst.msk [vmem:[#allocation3 + $0x38] sm:$0xff] %vm678, %v573
      %687 = vst.msk [vmem:[#allocation3 + $0x40] sm:$0xff] %vm678, %v575
      %688 = vst.msk [vmem:[#allocation3 + $0x48] sm:$0xff] %vm678, %v577
      %689 = vst.msk [vmem:[#allocation3 + $0x50] sm:$0xff] %vm678, %v579
      %690 = vst.msk [vmem:[#allocation3 + $0x58] sm:$0xff] %vm678, %v581
      %691 = vst.msk [vmem:[#allocation3 + $0x60] sm:$0xff] %vm678, %v583
      %692 = vst.msk [vmem:[#allocation3 + $0x68] sm:$0xff] %vm678, %v585
      %693 = vst.msk [vmem:[#allocation3 + $0x70] sm:$0xff] %vm678, %v587
      %694 = vst.msk [vmem:[#allocation3 + $0x78] sm:$0xff] %vm678, %v589
      %695 = vst.msk [vmem:[#allocation3 + $0x80] sm:$0xff] %vm678, %v591
      %696 = vst.msk [vmem:[#allocation3 + $0x88] sm:$0xff] %vm678, %v593
      %697 = vst.msk [vmem:[#allocation3 + $0x90] sm:$0xff] %vm678, %v595
      %698 = vst.msk [vmem:[#allocation3 + $0x98] sm:$0xff] %vm678, %v597
      %699 = vst.msk [vmem:[#allocation3 + $0xa0] sm:$0xff] %vm678, %v599
      %700 = vst.msk [vmem:[#allocation3 + $0xa8] sm:$0xff] %vm678, %v601
      %701 = vst.msk [vmem:[#allocation3 + $0xb0] sm:$0xff] %vm678, %v603
      %702 = vst.msk [vmem:[#allocation3 + $0xb8] sm:$0xff] %vm678, %v605
      %703 = vst.msk [vmem:[#allocation3 + $0xc0] sm:$0xff] %vm678, %v607
      %704 = vst.msk [vmem:[#allocation3 + $0xc8] sm:$0xff] %vm678, %v609
      %705 = vst.msk [vmem:[#allocation3 + $0xd0] sm:$0xff] %vm678, %v611
      %706 = vst.msk [vmem:[#allocation3 + $0xd8] sm:$0xff] %vm678, %v613
      %707 = vst.msk [vmem:[#allocation3 + $0xe0] sm:$0xff] %vm678, %v615
      %708 = vst.msk [vmem:[#allocation3 + $0xe8] sm:$0xff] %vm678, %v617
      %709 = vst.msk [vmem:[#allocation3 + $0xf0] sm:$0xff] %vm678, %v619
      %710 = vst.msk [vmem:[#allocation3 + $0xf8] sm:$0xff] %vm678, %v621
      %711 = vst.msk [vmem:[#allocation3 + $0x100] sm:$0xff] %vm678, %v623
      %712 = vst.msk [vmem:[#allocation3 + $0x108] sm:$0xff] %vm678, %v625
      %713 = vst.msk [vmem:[#allocation3 + $0x110] sm:$0xff] %vm678, %v627
      %714 = vst.msk [vmem:[#allocation3 + $0x118] sm:$0xff] %vm678, %v629
      %715 = vst.msk [vmem:[#allocation3 + $0x120] sm:$0xff] %vm678, %v631
      %716 = vst.msk [vmem:[#allocation3 + $0x128] sm:$0xff] %vm678, %v633
      %717 = vst.msk [vmem:[#allocation3 + $0x130] sm:$0xff] %vm678, %v635
      %718 = vst.msk [vmem:[#allocation3 + $0x138] sm:$0xff] %vm678, %v637
      %v719 = vld [vmem:[#allocation2 + $0x2] sm:$0xff]
      %v720 = vld [vmem:[#allocation2 + $0xa] sm:$0xff]
      %v721 = vld [vmem:[#allocation2 + $0x12] sm:$0xff]
      %v722 = vld [vmem:[#allocation2 + $0x1a] sm:$0xff]
      %v723 = vld [vmem:[#allocation2 + $0x22] sm:$0xff]
      %v724 = vld [vmem:[#allocation2 + $0x2a] sm:$0xff]
      %v725 = vld [vmem:[#allocation2 + $0x32] sm:$0xff]
      %v726 = vld [vmem:[#allocation2 + $0x3a] sm:$0xff]
      %v727 = vld [vmem:[#allocation2 + $0x42] sm:$0xff]
      %v728 = vld [vmem:[#allocation2 + $0x4a] sm:$0xff]
      %v729 = vld [vmem:[#allocation2 + $0x52] sm:$0xff]
      %v730 = vld [vmem:[#allocation2 + $0x5a] sm:$0xff]
      %v731 = vld [vmem:[#allocation2 + $0x62] sm:$0xff]
      %v732 = vld [vmem:[#allocation2 + $0x6a] sm:$0xff]
      %v733 = vld [vmem:[#allocation2 + $0x72] sm:$0xff]
      %v734 = vld [vmem:[#allocation2 + $0x7a] sm:$0xff]
      %v735 = vld [vmem:[#allocation2 + $0x82] sm:$0xff]
      %v736 = vld [vmem:[#allocation2 + $0x8a] sm:$0xff]
      %v737 = vld [vmem:[#allocation2 + $0x92] sm:$0xff]
      %v738 = vld [vmem:[#allocation2 + $0x9a] sm:$0xff]
      %v739 = vld [vmem:[#allocation2 + $0xa2] sm:$0xff]
      %v740 = vld [vmem:[#allocation2 + $0xaa] sm:$0xff]
      %v741 = vld [vmem:[#allocation2 + $0xb2] sm:$0xff]
      %v742 = vld [vmem:[#allocation2 + $0xba] sm:$0xff]
      %v743 = vld [vmem:[#allocation2 + $0xc2] sm:$0xff]
      %v744 = vld [vmem:[#allocation2 + $0xca] sm:$0xff]
      %v745 = vld [vmem:[#allocation2 + $0xd2] sm:$0xff]
      %v746 = vld [vmem:[#allocation2 + $0xda] sm:$0xff]
      %v747 = vld [vmem:[#allocation2 + $0xe2] sm:$0xff]
      %v748 = vld [vmem:[#allocation2 + $0xea] sm:$0xff]
      %v749 = vld [vmem:[#allocation2 + $0xf2] sm:$0xff]
      %v750 = vld [vmem:[#allocation2 + $0xfa] sm:$0xff]
      %v751 = vld [vmem:[#allocation2 + $0x102] sm:$0xff]
      %v752 = vld [vmem:[#allocation2 + $0x10a] sm:$0xff]
      %v753 = vld [vmem:[#allocation2 + $0x112] sm:$0xff]
      %v754 = vld [vmem:[#allocation2 + $0x11a] sm:$0xff]
      %v755 = vld [vmem:[#allocation2 + $0x122] sm:$0xff]
      %v756 = vld [vmem:[#allocation2 + $0x12a] sm:$0xff]
      %v757 = vld [vmem:[#allocation2 + $0x132] sm:$0xff]
      %v758 = vld [vmem:[#allocation2 + $0x13a] sm:$0xff]
      %799 = vrot.lane.b32.xlu0 %v719, 8
      %v800 = vpop.permute.xlu0 %799
      %801 = vrot.lane.b32.xlu0 %v720, 8
      %v802 = vpop.permute.xlu0 %801
      %803 = vrot.lane.b32.xlu0 %v721, 8
      %v804 = vpop.permute.xlu0 %803
      %805 = vrot.lane.b32.xlu0 %v722, 8
      %v806 = vpop.permute.xlu0 %805
      %807 = vrot.lane.b32.xlu0 %v723, 8
      %v808 = vpop.permute.xlu0 %807
      %809 = vrot.lane.b32.xlu0 %v724, 8
      %v810 = vpop.permute.xlu0 %809
      %811 = vrot.lane.b32.xlu0 %v725, 8
      %v812 = vpop.permute.xlu0 %811
      %813 = vrot.lane.b32.xlu0 %v726, 8
      %v814 = vpop.permute.xlu0 %813
      %815 = vrot.lane.b32.xlu0 %v727, 8
      %v816 = vpop.permute.xlu0 %815
      %817 = vrot.lane.b32.xlu0 %v728, 8
      %v818 = vpop.permute.xlu0 %817
      %819 = vrot.lane.b32.xlu0 %v729, 8
      %v820 = vpop.permute.xlu0 %819
      %821 = vrot.lane.b32.xlu0 %v730, 8
      %v822 = vpop.permute.xlu0 %821
      %823 = vrot.lane.b32.xlu0 %v731, 8
      %v824 = vpop.permute.xlu0 %823
      %825 = vrot.lane.b32.xlu0 %v732, 8
      %v826 = vpop.permute.xlu0 %825
      %827 = vrot.lane.b32.xlu0 %v733, 8
      %v828 = vpop.permute.xlu0 %827
      %829 = vrot.lane.b32.xlu0 %v734, 8
      %v830 = vpop.permute.xlu0 %829
      %831 = vrot.lane.b32.xlu0 %v735, 8
      %v832 = vpop.permute.xlu0 %831
      %833 = vrot.lane.b32.xlu0 %v736, 8
      %v834 = vpop.permute.xlu0 %833
      %835 = vrot.lane.b32.xlu0 %v737, 8
      %v836 = vpop.permute.xlu0 %835
      %837 = vrot.lane.b32.xlu0 %v738, 8
      %v838 = vpop.permute.xlu0 %837
      %839 = vrot.lane.b32.xlu0 %v739, 8
      %v840 = vpop.permute.xlu0 %839
      %841 = vrot.lane.b32.xlu0 %v740, 8
      %v842 = vpop.permute.xlu0 %841
      %843 = vrot.lane.b32.xlu0 %v741, 8
      %v844 = vpop.permute.xlu0 %843
      %845 = vrot.lane.b32.xlu0 %v742, 8
      %v846 = vpop.permute.xlu0 %845
      %847 = vrot.lane.b32.xlu0 %v743, 8
      %v848 = vpop.permute.xlu0 %847
      %849 = vrot.lane.b32.xlu0 %v744, 8
      %v850 = vpop.permute.xlu0 %849
      %851 = vrot.lane.b32.xlu0 %v745, 8
      %v852 = vpop.permute.xlu0 %851
      %853 = vrot.lane.b32.xlu0 %v746, 8
      %v854 = vpop.permute.xlu0 %853
      %855 = vrot.lane.b32.xlu0 %v747, 8
      %v856 = vpop.permute.xlu0 %855
      %857 = vrot.lane.b32.xlu0 %v748, 8
      %v858 = vpop.permute.xlu0 %857
      %859 = vrot.lane.b32.xlu0 %v749, 8
      %v860 = vpop.permute.xlu0 %859
      %861 = vrot.lane.b32.xlu0 %v750, 8
      %v862 = vpop.permute.xlu0 %861
      %863 = vrot.lane.b32.xlu0 %v751, 8
      %v864 = vpop.permute.xlu0 %863
      %865 = vrot.lane.b32.xlu0 %v752, 8
      %v866 = vpop.permute.xlu0 %865
      %867 = vrot.lane.b32.xlu0 %v753, 8
      %v868 = vpop.permute.xlu0 %867
      %869 = vrot.lane.b32.xlu0 %v754, 8
      %v870 = vpop.permute.xlu0 %869
      %871 = vrot.lane.b32.xlu0 %v755, 8
      %v872 = vpop.permute.xlu0 %871
      %873 = vrot.lane.b32.xlu0 %v756, 8
      %v874 = vpop.permute.xlu0 %873
      %875 = vrot.lane.b32.xlu0 %v757, 8
      %v876 = vpop.permute.xlu0 %875
      %877 = vrot.lane.b32.xlu0 %v758, 8
      %v878 = vpop.permute.xlu0 %877
      %vm919 = vcmask 97344
      %920 = vst.msk [vmem:[#allocation3] sm:$0xff] %vm919, %v800
      %921 = vst.msk [vmem:[#allocation3 + $0x8] sm:$0xff] %vm919, %v802
      %922 = vst.msk [vmem:[#allocation3 + $0x10] sm:$0xff] %vm919, %v804
      %923 = vst.msk [vmem:[#allocation3 + $0x18] sm:$0xff] %vm919, %v806
      %924 = vst.msk [vmem:[#allocation3 + $0x20] sm:$0xff] %vm919, %v808
      %925 = vst.msk [vmem:[#allocation3 + $0x28] sm:$0xff] %vm919, %v810
      %926 = vst.msk [vmem:[#allocation3 + $0x30] sm:$0xff] %vm919, %v812
      %927 = vst.msk [vmem:[#allocation3 + $0x38] sm:$0xff] %vm919, %v814
      %928 = vst.msk [vmem:[#allocation3 + $0x40] sm:$0xff] %vm919, %v816
      %929 = vst.msk [vmem:[#allocation3 + $0x48] sm:$0xff] %vm919, %v818
      %930 = vst.msk [vmem:[#allocation3 + $0x50] sm:$0xff] %vm919, %v820
      %931 = vst.msk [vmem:[#allocation3 + $0x58] sm:$0xff] %vm919, %v822
      %932 = vst.msk [vmem:[#allocation3 + $0x60] sm:$0xff] %vm919, %v824
      %933 = vst.msk [vmem:[#allocation3 + $0x68] sm:$0xff] %vm919, %v826
      %934 = vst.msk [vmem:[#allocation3 + $0x70] sm:$0xff] %vm919, %v828
      %935 = vst.msk [vmem:[#allocation3 + $0x78] sm:$0xff] %vm919, %v830
      %936 = vst.msk [vmem:[#allocation3 + $0x80] sm:$0xff] %vm919, %v832
      %937 = vst.msk [vmem:[#allocation3 + $0x88] sm:$0xff] %vm919, %v834
      %938 = vst.msk [vmem:[#allocation3 + $0x90] sm:$0xff] %vm919, %v836
      %939 = vst.msk [vmem:[#allocation3 + $0x98] sm:$0xff] %vm919, %v838
      %940 = vst.msk [vmem:[#allocation3 + $0xa0] sm:$0xff] %vm919, %v840
      %941 = vst.msk [vmem:[#allocation3 + $0xa8] sm:$0xff] %vm919, %v842
      %942 = vst.msk [vmem:[#allocation3 + $0xb0] sm:$0xff] %vm919, %v844
      %943 = vst.msk [vmem:[#allocation3 + $0xb8] sm:$0xff] %vm919, %v846
      %944 = vst.msk [vmem:[#allocation3 + $0xc0] sm:$0xff] %vm919, %v848
      %945 = vst.msk [vmem:[#allocation3 + $0xc8] sm:$0xff] %vm919, %v850
      %946 = vst.msk [vmem:[#allocation3 + $0xd0] sm:$0xff] %vm919, %v852
      %947 = vst.msk [vmem:[#allocation3 + $0xd8] sm:$0xff] %vm919, %v854
      %948 = vst.msk [vmem:[#allocation3 + $0xe0] sm:$0xff] %vm919, %v856
      %949 = vst.msk [vmem:[#allocation3 + $0xe8] sm:$0xff] %vm919, %v858
      %950 = vst.msk [vmem:[#allocation3 + $0xf0] sm:$0xff] %vm919, %v860
      %951 = vst.msk [vmem:[#allocation3 + $0xf8] sm:$0xff] %vm919, %v862
      %952 = vst.msk [vmem:[#allocation3 + $0x100] sm:$0xff] %vm919, %v864
      %953 = vst.msk [vmem:[#allocation3 + $0x108] sm:$0xff] %vm919, %v866
      %954 = vst.msk [vmem:[#allocation3 + $0x110] sm:$0xff] %vm919, %v868
      %955 = vst.msk [vmem:[#allocation3 + $0x118] sm:$0xff] %vm919, %v870
      %956 = vst.msk [vmem:[#allocation3 + $0x120] sm:$0xff] %vm919, %v872
      %957 = vst.msk [vmem:[#allocation3 + $0x128] sm:$0xff] %vm919, %v874
      %958 = vst.msk [vmem:[#allocation3 + $0x130] sm:$0xff] %vm919, %v876
      %959 = vst.msk [vmem:[#allocation3 + $0x138] sm:$0xff] %vm919, %v878
      %v960 = vld [vmem:[#allocation3] sm:$0xff]
      %v961 = vld [vmem:[#allocation3 + $0x8] sm:$0xff]
      %v962 = vld [vmem:[#allocation3 + $0x10] sm:$0xff]
      %v963 = vld [vmem:[#allocation3 + $0x18] sm:$0xff]
      %v964 = vld [vmem:[#allocation3 + $0x20] sm:$0xff]
      %v965 = vld [vmem:[#allocation3 + $0x28] sm:$0xff]
      %v966 = vld [vmem:[#allocation3 + $0x30] sm:$0xff]
      %v967 = vld [vmem:[#allocation3 + $0x38] sm:$0xff]
      %v968 = vld [vmem:[#allocation3 + $0x40] sm:$0xff]
      %v969 = vld [vmem:[#allocation3 + $0x48] sm:$0xff]
      %v970 = vld [vmem:[#allocation3 + $0x50] sm:$0xff]
      %v971 = vld [vmem:[#allocation3 + $0x58] sm:$0xff]
      %v972 = vld [vmem:[#allocation3 + $0x60] sm:$0xff]
      %v973 = vld [vmem:[#allocation3 + $0x68] sm:$0xff]
      %v974 = vld [vmem:[#allocation3 + $0x70] sm:$0xff]
      %v975 = vld [vmem:[#allocation3 + $0x78] sm:$0xff]
      %v976 = vld [vmem:[#allocation3 + $0x80] sm:$0xff]
      %v977 = vld [vmem:[#allocation3 + $0x88] sm:$0xff]
      %v978 = vld [vmem:[#allocation3 + $0x90] sm:$0xff]
      %v979 = vld [vmem:[#allocation3 + $0x98] sm:$0xff]
      %v980 = vld [vmem:[#allocation3 + $0xa0] sm:$0xff]
      %v981 = vld [vmem:[#allocation3 + $0xa8] sm:$0xff]
      %v982 = vld [vmem:[#allocation3 + $0xb0] sm:$0xff]
      %v983 = vld [vmem:[#allocation3 + $0xb8] sm:$0xff]
      %v984 = vld [vmem:[#allocation3 + $0xc0] sm:$0xff]
      %v985 = vld [vmem:[#allocation3 + $0xc8] sm:$0xff]
      %v986 = vld [vmem:[#allocation3 + $0xd0] sm:$0xff]
      %v987 = vld [vmem:[#allocation3 + $0xd8] sm:$0xff]
      %v988 = vld [vmem:[#allocation3 + $0xe0] sm:$0xff]
      %v989 = vld [vmem:[#allocation3 + $0xe8] sm:$0xff]
      %v990 = vld [vmem:[#allocation3 + $0xf0] sm:$0xff]
      %v991 = vld [vmem:[#allocation3 + $0xf8] sm:$0xff]
      %v992 = vld [vmem:[#allocation3 + $0x100] sm:$0xff]
      %v993 = vld [vmem:[#allocation3 + $0x108] sm:$0xff]
      %v994 = vld [vmem:[#allocation3 + $0x110] sm:$0xff]
      %v995 = vld [vmem:[#allocation3 + $0x118] sm:$0xff]
      %v996 = vld [vmem:[#allocation3 + $0x120] sm:$0xff]
      %v997 = vld [vmem:[#allocation3 + $0x128] sm:$0xff]
      %v998 = vld [vmem:[#allocation3 + $0x130] sm:$0xff]
      %v999 = vld [vmem:[#allocation3 + $0x138] sm:$0xff]
      %v1000 = vld [vmem:[%s2] sm:$0xff]
      %v1001 = vld [vmem:[%s2 + $0x8] sm:$0xf]
      %v1002 = vld [vmem:[#allocation2 + $0x12] sm:$0xff]
      %v1003 = vld [vmem:[#allocation2 + $0x1a] sm:$0xff]
      %v1004 = vld [vmem:[#allocation2 + $0x22] sm:$0xff]
      %v1005 = vld [vmem:[#allocation2 + $0x2a] sm:$0xff]
      %v1006 = vld [vmem:[#allocation2 + $0x32] sm:$0xff]
      %v1007 = vld [vmem:[#allocation2 + $0x3a] sm:$0xff]
      %v1008 = vld [vmem:[#allocation2 + $0x42] sm:$0xff]
      %v1009 = vld [vmem:[#allocation2 + $0x4a] sm:$0xff]
      %v1010 = vld [vmem:[#allocation2 + $0x52] sm:$0xff]
      %v1011 = vld [vmem:[#allocation2 + $0x5a] sm:$0xff]
      %v1012 = vld [vmem:[#allocation2 + $0x62] sm:$0xff]
      %v1013 = vld [vmem:[#allocation2 + $0x6a] sm:$0xff]
      %v1014 = vld [vmem:[#allocation2 + $0x72] sm:$0xff]
      %v1015 = vld [vmem:[#allocation2 + $0x7a] sm:$0xff]
      %v1016 = vld [vmem:[#allocation2 + $0x82] sm:$0xff]
      %v1017 = vld [vmem:[#allocation2 + $0x8a] sm:$0xff]
      %v1018 = vld [vmem:[#allocation2 + $0x92] sm:$0xff]
      %v1019 = vld [vmem:[#allocation2 + $0x9a] sm:$0xff]
      %v1020 = vld [vmem:[#allocation2 + $0xa2] sm:$0xff]
      %v1021 = vld [vmem:[#allocation2 + $0xaa] sm:$0xff]
      %v1022 = vld [vmem:[#allocation2 + $0xb2] sm:$0xff]
      %v1023 = vld [vmem:[#allocation2 + $0xba] sm:$0xff]
      %v1024 = vld [vmem:[#allocation2 + $0xc2] sm:$0xff]
      %v1025 = vld [vmem:[#allocation2 + $0xca] sm:$0xff]
      %v1026 = vld [vmem:[#allocation2 + $0xd2] sm:$0xff]
      %v1027 = vld [vmem:[#allocation2 + $0xda] sm:$0xff]
      %v1028 = vld [vmem:[#allocation2 + $0xe2] sm:$0xff]
      %v1029 = vld [vmem:[#allocation2 + $0xea] sm:$0xff]
      %v1030 = vld [vmem:[#allocation2 + $0xf2] sm:$0xff]
      %v1031 = vld [vmem:[#allocation2 + $0xfa] sm:$0xff]
      %v1032 = vld [vmem:[#allocation2 + $0x102] sm:$0xff]
      %v1033 = vld [vmem:[#allocation2 + $0x10a] sm:$0xff]
      %v1034 = vld [vmem:[#allocation2 + $0x112] sm:$0xff]
      %v1035 = vld [vmem:[#allocation2 + $0x11a] sm:$0xff]
      %v1036 = vld [vmem:[#allocation2 + $0x122] sm:$0xff]
      %v1037 = vld [vmem:[#allocation2 + $0x12a] sm:$0xff]
      %v1038 = vld [vmem:[#allocation2 + $0x132] sm:$0xff]
      %v1039 = vld [vmem:[#allocation2 + $0x13a] sm:$0xff]
      %v1040 = vld [vmem:[#allocation2 + $0x142] sm:$0xff]
      %v1041 = vld [vmem:[#allocation2 + $0x14a] sm:$0xff]
      %1042 = vst.msk [vmem:[#allocation3] sm:$0xff] %vm437, %v1002
      %1043 = vst.msk [vmem:[#allocation3 + $0x8] sm:$0xff] %vm437, %v1003
      %1044 = vst.msk [vmem:[#allocation3 + $0x10] sm:$0xff] %vm437, %v1004
      %1045 = vst.msk [vmem:[#allocation3 + $0x18] sm:$0xff] %vm437, %v1005
      %1046 = vst.msk [vmem:[#allocation3 + $0x20] sm:$0xff] %vm437, %v1006
      %1047 = vst.msk [vmem:[#allocation3 + $0x28] sm:$0xff] %vm437, %v1007
      %1048 = vst.msk [vmem:[#allocation3 + $0x30] sm:$0xff] %vm437, %v1008
      %1049 = vst.msk [vmem:[#allocation3 + $0x38] sm:$0xff] %vm437, %v1009
      %1050 = vst.msk [vmem:[#allocation3 + $0x40] sm:$0xff] %vm437, %v1010
      %1051 = vst.msk [vmem:[#allocation3 + $0x48] sm:$0xff] %vm437, %v1011
      %1052 = vst.msk [vmem:[#allocation3 + $0x50] sm:$0xff] %vm437, %v1012
      %1053 = vst.msk [vmem:[#allocation3 + $0x58] sm:$0xff] %vm437, %v1013
      %1054 = vst.msk [vmem:[#allocation3 + $0x60] sm:$0xff] %vm437, %v1014
      %1055 = vst.msk [vmem:[#allocation3 + $0x68] sm:$0xff] %vm437, %v1015
      %1056 = vst.msk [vmem:[#allocation3 + $0x70] sm:$0xff] %vm437, %v1016
      %1057 = vst.msk [vmem:[#allocation3 + $0x78] sm:$0xff] %vm437, %v1017
      %1058 = vst.msk [vmem:[#allocation3 + $0x80] sm:$0xff] %vm437, %v1018
      %1059 = vst.msk [vmem:[#allocation3 + $0x88] sm:$0xff] %vm437, %v1019
      %1060 = vst.msk [vmem:[#allocation3 + $0x90] sm:$0xff] %vm437, %v1020
      %1061 = vst.msk [vmem:[#allocation3 + $0x98] sm:$0xff] %vm437, %v1021
      %1062 = vst.msk [vmem:[#allocation3 + $0xa0] sm:$0xff] %vm437, %v1022
      %1063 = vst.msk [vmem:[#allocation3 + $0xa8] sm:$0xff] %vm437, %v1023
      %1064 = vst.msk [vmem:[#allocation3 + $0xb0] sm:$0xff] %vm437, %v1024
      %1065 = vst.msk [vmem:[#allocation3 + $0xb8] sm:$0xff] %vm437, %v1025
      %1066 = vst.msk [vmem:[#allocation3 + $0xc0] sm:$0xff] %vm437, %v1026
      %1067 = vst.msk [vmem:[#allocation3 + $0xc8] sm:$0xff] %vm437, %v1027
      %1068 = vst.msk [vmem:[#allocation3 + $0xd0] sm:$0xff] %vm437, %v1028
      %1069 = vst.msk [vmem:[#allocation3 + $0xd8] sm:$0xff] %vm437, %v1029
      %1070 = vst.msk [vmem:[#allocation3 + $0xe0] sm:$0xff] %vm437, %v1030
      %1071 = vst.msk [vmem:[#allocation3 + $0xe8] sm:$0xff] %vm437, %v1031
      %1072 = vst.msk [vmem:[#allocation3 + $0xf0] sm:$0xff] %vm437, %v1032
      %1073 = vst.msk [vmem:[#allocation3 + $0xf8] sm:$0xff] %vm437, %v1033
      %1074 = vst.msk [vmem:[#allocation3 + $0x100] sm:$0xff] %vm437, %v1034
      %1075 = vst.msk [vmem:[#allocation3 + $0x108] sm:$0xff] %vm437, %v1035
      %1076 = vst.msk [vmem:[#allocation3 + $0x110] sm:$0xff] %vm437, %v1036
      %1077 = vst.msk [vmem:[#allocation3 + $0x118] sm:$0xff] %vm437, %v1037
      %1078 = vst.msk [vmem:[#allocation3 + $0x120] sm:$0xff] %vm437, %v1038
      %1079 = vst.msk [vmem:[#allocation3 + $0x128] sm:$0xff] %vm437, %v1039
      %1080 = vst.msk [vmem:[#allocation3 + $0x130] sm:$0xff] %vm437, %v1040
      %1081 = vst.msk [vmem:[#allocation3 + $0x138] sm:$0xff] %vm437, %v1041
      %v1082 = vld [vmem:[#allocation2 + $0x13] sm:$0xff]
      %v1083 = vld [vmem:[#allocation2 + $0x1b] sm:$0xff]
      %v1084 = vld [vmem:[#allocation2 + $0x23] sm:$0xff]
      %v1085 = vld [vmem:[#allocation2 + $0x2b] sm:$0xff]
      %v1086 = vld [vmem:[#allocation2 + $0x33] sm:$0xff]
      %v1087 = vld [vmem:[#allocation2 + $0x3b] sm:$0xff]
      %v1088 = vld [vmem:[#allocation2 + $0x43] sm:$0xff]
      %v1089 = vld [vmem:[#allocation2 + $0x4b] sm:$0xff]
      %v1090 = vld [vmem:[#allocation2 + $0x53] sm:$0xff]
      %v1091 = vld [vmem:[#allocation2 + $0x5b] sm:$0xff]
      %v1092 = vld [vmem:[#allocation2 + $0x63] sm:$0xff]
      %v1093 = vld [vmem:[#allocation2 + $0x6b] sm:$0xff]
      %v1094 = vld [vmem:[#allocation2 + $0x73] sm:$0xff]
      %v1095 = vld [vmem:[#allocation2 + $0x7b] sm:$0xff]
      %v1096 = vld [vmem:[#allocation2 + $0x83] sm:$0xff]
      %v1097 = vld [vmem:[#allocation2 + $0x8b] sm:$0xff]
      %v1098 = vld [vmem:[#allocation2 + $0x93] sm:$0xff]
      %v1099 = vld [vmem:[#allocation2 + $0x9b] sm:$0xff]
      %v1100 = vld [vmem:[#allocation2 + $0xa3] sm:$0xff]
      %v1101 = vld [vmem:[#allocation2 + $0xab] sm:$0xff]
      %v1102 = vld [vmem:[#allocation2 + $0xb3] sm:$0xff]
      %v1103 = vld [vmem:[#allocation2 + $0xbb] sm:$0xff]
      %v1104 = vld [vmem:[#allocation2 + $0xc3] sm:$0xff]
      %v1105 = vld [vmem:[#allocation2 + $0xcb] sm:$0xff]
      %v1106 = vld [vmem:[#allocation2 + $0xd3] sm:$0xff]
      %v1107 = vld [vmem:[#allocation2 + $0xdb] sm:$0xff]
      %v1108 = vld [vmem:[#allocation2 + $0xe3] sm:$0xff]
      %v1109 = vld [vmem:[#allocation2 + $0xeb] sm:$0xff]
      %v1110 = vld [vmem:[#allocation2 + $0xf3] sm:$0xff]
      %v1111 = vld [vmem:[#allocation2 + $0xfb] sm:$0xff]
      %v1112 = vld [vmem:[#allocation2 + $0x103] sm:$0xff]
      %v1113 = vld [vmem:[#allocation2 + $0x10b] sm:$0xff]
      %v1114 = vld [vmem:[#allocation2 + $0x113] sm:$0xff]
      %v1115 = vld [vmem:[#allocation2 + $0x11b] sm:$0xff]
      %v1116 = vld [vmem:[#allocation2 + $0x123] sm:$0xff]
      %v1117 = vld [vmem:[#allocation2 + $0x12b] sm:$0xff]
      %v1118 = vld [vmem:[#allocation2 + $0x133] sm:$0xff]
      %v1119 = vld [vmem:[#allocation2 + $0x13b] sm:$0xff]
      %v1120 = vld [vmem:[#allocation2 + $0x143] sm:$0xff]
      %v1121 = vld [vmem:[#allocation2 + $0x14b] sm:$0xff]
      %1162 = vrot.lane.b32.xlu0 %v1082, 4
      %v1163 = vpop.permute.xlu0 %1162
      %1164 = vrot.lane.b32.xlu0 %v1083, 4
      %v1165 = vpop.permute.xlu0 %1164
      %1166 = vrot.lane.b32.xlu0 %v1084, 4
      %v1167 = vpop.permute.xlu0 %1166
      %1168 = vrot.lane.b32.xlu0 %v1085, 4
      %v1169 = vpop.permute.xlu0 %1168
      %1170 = vrot.lane.b32.xlu0 %v1086, 4
      %v1171 = vpop.permute.xlu0 %1170
      %1172 = vrot.lane.b32.xlu0 %v1087, 4
      %v1173 = vpop.permute.xlu0 %1172
      %1174 = vrot.lane.b32.xlu0 %v1088, 4
      %v1175 = vpop.permute.xlu0 %1174
      %1176 = vrot.lane.b32.xlu0 %v1089, 4
      %v1177 = vpop.permute.xlu0 %1176
      %1178 = vrot.lane.b32.xlu0 %v1090, 4
      %v1179 = vpop.permute.xlu0 %1178
      %1180 = vrot.lane.b32.xlu0 %v1091, 4
      %v1181 = vpop.permute.xlu0 %1180
      %1182 = vrot.lane.b32.xlu0 %v1092, 4
      %v1183 = vpop.permute.xlu0 %1182
      %1184 = vrot.lane.b32.xlu0 %v1093, 4
      %v1185 = vpop.permute.xlu0 %1184
      %1186 = vrot.lane.b32.xlu0 %v1094, 4
      %v1187 = vpop.permute.xlu0 %1186
      %1188 = vrot.lane.b32.xlu0 %v1095, 4
      %v1189 = vpop.permute.xlu0 %1188
      %1190 = vrot.lane.b32.xlu0 %v1096, 4
      %v1191 = vpop.permute.xlu0 %1190
      %1192 = vrot.lane.b32.xlu0 %v1097, 4
      %v1193 = vpop.permute.xlu0 %1192
      %1194 = vrot.lane.b32.xlu0 %v1098, 4
      %v1195 = vpop.permute.xlu0 %1194
      %1196 = vrot.lane.b32.xlu0 %v1099, 4
      %v1197 = vpop.permute.xlu0 %1196
      %1198 = vrot.lane.b32.xlu0 %v1100, 4
      %v1199 = vpop.permute.xlu0 %1198
      %1200 = vrot.lane.b32.xlu0 %v1101, 4
      %v1201 = vpop.permute.xlu0 %1200
      %1202 = vrot.lane.b32.xlu0 %v1102, 4
      %v1203 = vpop.permute.xlu0 %1202
      %1204 = vrot.lane.b32.xlu0 %v1103, 4
      %v1205 = vpop.permute.xlu0 %1204
      %1206 = vrot.lane.b32.xlu0 %v1104, 4
      %v1207 = vpop.permute.xlu0 %1206
      %1208 = vrot.lane.b32.xlu0 %v1105, 4
      %v1209 = vpop.permute.xlu0 %1208
      %1210 = vrot.lane.b32.xlu0 %v1106, 4
      %v1211 = vpop.permute.xlu0 %1210
      %1212 = vrot.lane.b32.xlu0 %v1107, 4
      %v1213 = vpop.permute.xlu0 %1212
      %1214 = vrot.lane.b32.xlu0 %v1108, 4
      %v1215 = vpop.permute.xlu0 %1214
      %1216 = vrot.lane.b32.xlu0 %v1109, 4
      %v1217 = vpop.permute.xlu0 %1216
      %1218 = vrot.lane.b32.xlu0 %v1110, 4
      %v1219 = vpop.permute.xlu0 %1218
      %1220 = vrot.lane.b32.xlu0 %v1111, 4
      %v1221 = vpop.permute.xlu0 %1220
      %1222 = vrot.lane.b32.xlu0 %v1112, 4
      %v1223 = vpop.permute.xlu0 %1222
      %1224 = vrot.lane.b32.xlu0 %v1113, 4
      %v1225 = vpop.permute.xlu0 %1224
      %1226 = vrot.lane.b32.xlu0 %v1114, 4
      %v1227 = vpop.permute.xlu0 %1226
      %1228 = vrot.lane.b32.xlu0 %v1115, 4
      %v1229 = vpop.permute.xlu0 %1228
      %1230 = vrot.lane.b32.xlu0 %v1116, 4
      %v1231 = vpop.permute.xlu0 %1230
      %1232 = vrot.lane.b32.xlu0 %v1117, 4
      %v1233 = vpop.permute.xlu0 %1232
      %1234 = vrot.lane.b32.xlu0 %v1118, 4
      %v1235 = vpop.permute.xlu0 %1234
      %1236 = vrot.lane.b32.xlu0 %v1119, 4
      %v1237 = vpop.permute.xlu0 %1236
      %1238 = vrot.lane.b32.xlu0 %v1120, 4
      %v1239 = vpop.permute.xlu0 %1238
      %1240 = vrot.lane.b32.xlu0 %v1121, 4
      %v1241 = vpop.permute.xlu0 %1240
      %1282 = vst.msk [vmem:[#allocation3] sm:$0xff] %vm678, %v1163
      %1283 = vst.msk [vmem:[#allocation3 + $0x8] sm:$0xff] %vm678, %v1165
      %1284 = vst.msk [vmem:[#allocation3 + $0x10] sm:$0xff] %vm678, %v1167
      %1285 = vst.msk [vmem:[#allocation3 + $0x18] sm:$0xff] %vm678, %v1169
      %1286 = vst.msk [vmem:[#allocation3 + $0x20] sm:$0xff] %vm678, %v1171
      %1287 = vst.msk [vmem:[#allocation3 + $0x28] sm:$0xff] %vm678, %v1173
      %1288 = vst.msk [vmem:[#allocation3 + $0x30] sm:$0xff] %vm678, %v1175
      %1289 = vst.msk [vmem:[#allocation3 + $0x38] sm:$0xff] %vm678, %v1177
      %1290 = vst.msk [vmem:[#allocation3 + $0x40] sm:$0xff] %vm678, %v1179
      %1291 = vst.msk [vmem:[#allocation3 + $0x48] sm:$0xff] %vm678, %v1181
      %1292 = vst.msk [vmem:[#allocation3 + $0x50] sm:$0xff] %vm678, %v1183
      %1293 = vst.msk [vmem:[#allocation3 + $0x58] sm:$0xff] %vm678, %v1185
      %1294 = vst.msk [vmem:[#allocation3 + $0x60] sm:$0xff] %vm678, %v1187
      %1295 = vst.msk [vmem:[#allocation3 + $0x68] sm:$0xff] %vm678, %v1189
      %1296 = vst.msk [vmem:[#allocation3 + $0x70] sm:$0xff] %vm678, %v1191
      %1297 = vst.msk [vmem:[#allocation3 + $0x78] sm:$0xff] %vm678, %v1193
      %1298 = vst.msk [vmem:[#allocation3 + $0x80] sm:$0xff] %vm678, %v1195
      %1299 = vst.msk [vmem:[#allocation3 + $0x88] sm:$0xff] %vm678, %v1197
      %1300 = vst.msk [vmem:[#allocation3 + $0x90] sm:$0xff] %vm678, %v1199
      %1301 = vst.msk [vmem:[#allocation3 + $0x98] sm:$0xff] %vm678, %v1201
      %1302 = vst.msk [vmem:[#allocation3 + $0xa0] sm:$0xff] %vm678, %v1203
      %1303 = vst.msk [vmem:[#allocation3 + $0xa8] sm:$0xff] %vm678, %v1205
      %1304 = vst.msk [vmem:[#allocation3 + $0xb0] sm:$0xff] %vm678, %v1207
      %1305 = vst.msk [vmem:[#allocation3 + $0xb8] sm:$0xff] %vm678, %v1209
      %1306 = vst.msk [vmem:[#allocation3 + $0xc0] sm:$0xff] %vm678, %v1211
      %1307 = vst.msk [vmem:[#allocation3 + $0xc8] sm:$0xff] %vm678, %v1213
      %1308 = vst.msk [vmem:[#allocation3 + $0xd0] sm:$0xff] %vm678, %v1215
      %1309 = vst.msk [vmem:[#allocation3 + $0xd8] sm:$0xff] %vm678, %v1217
      %1310 = vst.msk [vmem:[#allocation3 + $0xe0] sm:$0xff] %vm678, %v1219
      %1311 = vst.msk [vmem:[#allocation3 + $0xe8] sm:$0xff] %vm678, %v1221
      %1312 = vst.msk [vmem:[#allocation3 + $0xf0] sm:$0xff] %vm678, %v1223
      %1313 = vst.msk [vmem:[#allocation3 + $0xf8] sm:$0xff] %vm678, %v1225
      %1314 = vst.msk [vmem:[#allocation3 + $0x100] sm:$0xff] %vm678, %v1227
      %1315 = vst.msk [vmem:[#allocation3 + $0x108] sm:$0xff] %vm678, %v1229
      %1316 = vst.msk [vmem:[#allocation3 + $0x110] sm:$0xff] %vm678, %v1231
      %1317 = vst.msk [vmem:[#allocation3 + $0x118] sm:$0xff] %vm678, %v1233
      %1318 = vst.msk [vmem:[#allocation3 + $0x120] sm:$0xff] %vm678, %v1235
      %1319 = vst.msk [vmem:[#allocation3 + $0x128] sm:$0xff] %vm678, %v1237
      %1320 = vst.msk [vmem:[#allocation3 + $0x130] sm:$0xff] %vm678, %v1239
      %1321 = vst.msk [vmem:[#allocation3 + $0x138] sm:$0xff] %vm678, %v1241
      %v1322 = vld [vmem:[#allocation2 + $0x14] sm:$0xff]
      %v1323 = vld [vmem:[#allocation2 + $0x1c] sm:$0xff]
      %v1324 = vld [vmem:[#allocation2 + $0x24] sm:$0xff]
      %v1325 = vld [vmem:[#allocation2 + $0x2c] sm:$0xff]
      %v1326 = vld [vmem:[#allocation2 + $0x34] sm:$0xff]
      %v1327 = vld [vmem:[#allocation2 + $0x3c] sm:$0xff]
      %v1328 = vld [vmem:[#allocation2 + $0x44] sm:$0xff]
      %v1329 = vld [vmem:[#allocation2 + $0x4c] sm:$0xff]
      %v1330 = vld [vmem:[#allocation2 + $0x54] sm:$0xff]
      %v1331 = vld [vmem:[#allocation2 + $0x5c] sm:$0xff]
      %v1332 = vld [vmem:[#allocation2 + $0x64] sm:$0xff]
      %v1333 = vld [vmem:[#allocation2 + $0x6c] sm:$0xff]
      %v1334 = vld [vmem:[#allocation2 + $0x74] sm:$0xff]
      %v1335 = vld [vmem:[#allocation2 + $0x7c] sm:$0xff]
      %v1336 = vld [vmem:[#allocation2 + $0x84] sm:$0xff]
      %v1337 = vld [vmem:[#allocation2 + $0x8c] sm:$0xff]
      %v1338 = vld [vmem:[#allocation2 + $0x94] sm:$0xff]
      %v1339 = vld [vmem:[#allocation2 + $0x9c] sm:$0xff]
      %v1340 = vld [vmem:[#allocation2 + $0xa4] sm:$0xff]
      %v1341 = vld [vmem:[#allocation2 + $0xac] sm:$0xff]
      %v1342 = vld [vmem:[#allocation2 + $0xb4] sm:$0xff]
      %v1343 = vld [vmem:[#allocation2 + $0xbc] sm:$0xff]
      %v1344 = vld [vmem:[#allocation2 + $0xc4] sm:$0xff]
      %v1345 = vld [vmem:[#allocation2 + $0xcc] sm:$0xff]
      %v1346 = vld [vmem:[#allocation2 + $0xd4] sm:$0xff]
      %v1347 = vld [vmem:[#allocation2 + $0xdc] sm:$0xff]
      %v1348 = vld [vmem:[#allocation2 + $0xe4] sm:$0xff]
      %v1349 = vld [vmem:[#allocation2 + $0xec] sm:$0xff]
      %v1350 = vld [vmem:[#allocation2 + $0xf4] sm:$0xff]
      %v1351 = vld [vmem:[#allocation2 + $0xfc] sm:$0xff]
      %v1352 = vld [vmem:[#allocation2 + $0x104] sm:$0xff]
      %v1353 = vld [vmem:[#allocation2 + $0x10c] sm:$0xff]
      %v1354 = vld [vmem:[#allocation2 + $0x114] sm:$0xff]
      %v1355 = vld [vmem:[#allocation2 + $0x11c] sm:$0xff]
      %v1356 = vld [vmem:[#allocation2 + $0x124] sm:$0xff]
      %v1357 = vld [vmem:[#allocation2 + $0x12c] sm:$0xff]
      %v1358 = vld [vmem:[#allocation2 + $0x134] sm:$0xff]
      %v1359 = vld [vmem:[#allocation2 + $0x13c] sm:$0xff]
      %v1360 = vld [vmem:[#allocation2 + $0x144] sm:$0xff]
      %v1361 = vld [vmem:[#allocation2 + $0x14c] sm:$0xff]
      %1402 = vrot.lane.b32.xlu0 %v1322, 8
      %v1403 = vpop.permute.xlu0 %1402
      %1404 = vrot.lane.b32.xlu0 %v1323, 8
      %v1405 = vpop.permute.xlu0 %1404
      %1406 = vrot.lane.b32.xlu0 %v1324, 8
      %v1407 = vpop.permute.xlu0 %1406
      %1408 = vrot.lane.b32.xlu0 %v1325, 8
      %v1409 = vpop.permute.xlu0 %1408
      %1410 = vrot.lane.b32.xlu0 %v1326, 8
      %v1411 = vpop.permute.xlu0 %1410
      %1412 = vrot.lane.b32.xlu0 %v1327, 8
      %v1413 = vpop.permute.xlu0 %1412
      %1414 = vrot.lane.b32.xlu0 %v1328, 8
      %v1415 = vpop.permute.xlu0 %1414
      %1416 = vrot.lane.b32.xlu0 %v1329, 8
      %v1417 = vpop.permute.xlu0 %1416
      %1418 = vrot.lane.b32.xlu0 %v1330, 8
      %v1419 = vpop.permute.xlu0 %1418
      %1420 = vrot.lane.b32.xlu0 %v1331, 8
      %v1421 = vpop.permute.xlu0 %1420
      %1422 = vrot.lane.b32.xlu0 %v1332, 8
      %v1423 = vpop.permute.xlu0 %1422
      %1424 = vrot.lane.b32.xlu0 %v1333, 8
      %v1425 = vpop.permute.xlu0 %1424
      %1426 = vrot.lane.b32.xlu0 %v1334, 8
      %v1427 = vpop.permute.xlu0 %1426
      %1428 = vrot.lane.b32.xlu0 %v1335, 8
      %v1429 = vpop.permute.xlu0 %1428
      %1430 = vrot.lane.b32.xlu0 %v1336, 8
      %v1431 = vpop.permute.xlu0 %1430
      %1432 = vrot.lane.b32.xlu0 %v1337, 8
      %v1433 = vpop.permute.xlu0 %1432
      %1434 = vrot.lane.b32.xlu0 %v1338, 8
      %v1435 = vpop.permute.xlu0 %1434
      %1436 = vrot.lane.b32.xlu0 %v1339, 8
      %v1437 = vpop.permute.xlu0 %1436
      %1438 = vrot.lane.b32.xlu0 %v1340, 8
      %v1439 = vpop.permute.xlu0 %1438
      %1440 = vrot.lane.b32.xlu0 %v1341, 8
      %v1441 = vpop.permute.xlu0 %1440
      %1442 = vrot.lane.b32.xlu0 %v1342, 8
      %v1443 = vpop.permute.xlu0 %1442
      %1444 = vrot.lane.b32.xlu0 %v1343, 8
      %v1445 = vpop.permute.xlu0 %1444
      %1446 = vrot.lane.b32.xlu0 %v1344, 8
      %v1447 = vpop.permute.xlu0 %1446
      %1448 = vrot.lane.b32.xlu0 %v1345, 8
      %v1449 = vpop.permute.xlu0 %1448
      %1450 = vrot.lane.b32.xlu0 %v1346, 8
      %v1451 = vpop.permute.xlu0 %1450
      %1452 = vrot.lane.b32.xlu0 %v1347, 8
      %v1453 = vpop.permute.xlu0 %1452
      %1454 = vrot.lane.b32.xlu0 %v1348, 8
      %v1455 = vpop.permute.xlu0 %1454
      %1456 = vrot.lane.b32.xlu0 %v1349, 8
      %v1457 = vpop.permute.xlu0 %1456
      %1458 = vrot.lane.b32.xlu0 %v1350, 8
      %v1459 = vpop.permute.xlu0 %1458
      %1460 = vrot.lane.b32.xlu0 %v1351, 8
      %v1461 = vpop.permute.xlu0 %1460
      %1462 = vrot.lane.b32.xlu0 %v1352, 8
      %v1463 = vpop.permute.xlu0 %1462
      %1464 = vrot.lane.b32.xlu0 %v1353, 8
      %v1465 = vpop.permute.xlu0 %1464
      %1466 = vrot.lane.b32.xlu0 %v1354, 8
      %v1467 = vpop.permute.xlu0 %1466
      %1468 = vrot.lane.b32.xlu0 %v1355, 8
      %v1469 = vpop.permute.xlu0 %1468
      %1470 = vrot.lane.b32.xlu0 %v1356, 8
      %v1471 = vpop.permute.xlu0 %1470
      %1472 = vrot.lane.b32.xlu0 %v1357, 8
      %v1473 = vpop.permute.xlu0 %1472
      %1474 = vrot.lane.b32.xlu0 %v1358, 8
      %v1475 = vpop.permute.xlu0 %1474
      %1476 = vrot.lane.b32.xlu0 %v1359, 8
      %v1477 = vpop.permute.xlu0 %1476
      %1478 = vrot.lane.b32.xlu0 %v1360, 8
      %v1479 = vpop.permute.xlu0 %1478
      %1480 = vrot.lane.b32.xlu0 %v1361, 8
      %v1481 = vpop.permute.xlu0 %1480
      %1522 = vst.msk [vmem:[#allocation3] sm:$0xff] %vm919, %v1403
      %1523 = vst.msk [vmem:[#allocation3 + $0x8] sm:$0xff] %vm919, %v1405
      %1524 = vst.msk [vmem:[#allocation3 + $0x10] sm:$0xff] %vm919, %v1407
      %1525 = vst.msk [vmem:[#allocation3 + $0x18] sm:$0xff] %vm919, %v1409
      %1526 = vst.msk [vmem:[#allocation3 + $0x20] sm:$0xff] %vm919, %v1411
      %1527 = vst.msk [vmem:[#allocation3 + $0x28] sm:$0xff] %vm919, %v1413
      %1528 = vst.msk [vmem:[#allocation3 + $0x30] sm:$0xff] %vm919, %v1415
      %1529 = vst.msk [vmem:[#allocation3 + $0x38] sm:$0xff] %vm919, %v1417
      %1530 = vst.msk [vmem:[#allocation3 + $0x40] sm:$0xff] %vm919, %v1419
      %1531 = vst.msk [vmem:[#allocation3 + $0x48] sm:$0xff] %vm919, %v1421
      %1532 = vst.msk [vmem:[#allocation3 + $0x50] sm:$0xff] %vm919, %v1423
      %1533 = vst.msk [vmem:[#allocation3 + $0x58] sm:$0xff] %vm919, %v1425
      %1534 = vst.msk [vmem:[#allocation3 + $0x60] sm:$0xff] %vm919, %v1427
      %1535 = vst.msk [vmem:[#allocation3 + $0x68] sm:$0xff] %vm919, %v1429
      %1536 = vst.msk [vmem:[#allocation3 + $0x70] sm:$0xff] %vm919, %v1431
      %1537 = vst.msk [vmem:[#allocation3 + $0x78] sm:$0xff] %vm919, %v1433
      %1538 = vst.msk [vmem:[#allocation3 + $0x80] sm:$0xff] %vm919, %v1435
      %1539 = vst.msk [vmem:[#allocation3 + $0x88] sm:$0xff] %vm919, %v1437
      %1540 = vst.msk [vmem:[#allocation3 + $0x90] sm:$0xff] %vm919, %v1439
      %1541 = vst.msk [vmem:[#allocation3 + $0x98] sm:$0xff] %vm919, %v1441
      %1542 = vst.msk [vmem:[#allocation3 + $0xa0] sm:$0xff] %vm919, %v1443
      %1543 = vst.msk [vmem:[#allocation3 + $0xa8] sm:$0xff] %vm919, %v1445
      %1544 = vst.msk [vmem:[#allocation3 + $0xb0] sm:$0xff] %vm919, %v1447
      %1545 = vst.msk [vmem:[#allocation3 + $0xb8] sm:$0xff] %vm919, %v1449
      %1546 = vst.msk [vmem:[#allocation3 + $0xc0] sm:$0xff] %vm919, %v1451
      %1547 = vst.msk [vmem:[#allocation3 + $0xc8] sm:$0xff] %vm919, %v1453
      %1548 = vst.msk [vmem:[#allocation3 + $0xd0] sm:$0xff] %vm919, %v1455
      %1549 = vst.msk [vmem:[#allocation3 + $0xd8] sm:$0xff] %vm919, %v1457
      %1550 = vst.msk [vmem:[#allocation3 + $0xe0] sm:$0xff] %vm919, %v1459
      %1551 = vst.msk [vmem:[#allocation3 + $0xe8] sm:$0xff] %vm919, %v1461
      %1552 = vst.msk [vmem:[#allocation3 + $0xf0] sm:$0xff] %vm919, %v1463
      %1553 = vst.msk [vmem:[#allocation3 + $0xf8] sm:$0xff] %vm919, %v1465
      %1554 = vst.msk [vmem:[#allocation3 + $0x100] sm:$0xff] %vm919, %v1467
      %1555 = vst.msk [vmem:[#allocation3 + $0x108] sm:$0xff] %vm919, %v1469
      %1556 = vst.msk [vmem:[#allocation3 + $0x110] sm:$0xff] %vm919, %v1471
      %1557 = vst.msk [vmem:[#allocation3 + $0x118] sm:$0xff] %vm919, %v1473
      %1558 = vst.msk [vmem:[#allocation3 + $0x120] sm:$0xff] %vm919, %v1475
      %1559 = vst.msk [vmem:[#allocation3 + $0x128] sm:$0xff] %vm919, %v1477
      %1560 = vst.msk [vmem:[#allocation3 + $0x130] sm:$0xff] %vm919, %v1479
      %1561 = vst.msk [vmem:[#allocation3 + $0x138] sm:$0xff] %vm919, %v1481
      %v1562 = vld [vmem:[#allocation3] sm:$0xff]
      %v1563 = vld [vmem:[#allocation3 + $0x8] sm:$0xff]
      %v1564 = vld [vmem:[#allocation3 + $0x10] sm:$0xff]
      %v1565 = vld [vmem:[#allocation3 + $0x18] sm:$0xff]
      %v1566 = vld [vmem:[#allocation3 + $0x20] sm:$0xff]
      %v1567 = vld [vmem:[#allocation3 + $0x28] sm:$0xff]
      %v1568 = vld [vmem:[#allocation3 + $0x30] sm:$0xff]
      %v1569 = vld [vmem:[#allocation3 + $0x38] sm:$0xff]
      %v1570 = vld [vmem:[#allocation3 + $0x40] sm:$0xff]
      %v1571 = vld [vmem:[#allocation3 + $0x48] sm:$0xff]
      %v1572 = vld [vmem:[#allocation3 + $0x50] sm:$0xff]
      %v1573 = vld [vmem:[#allocation3 + $0x58] sm:$0xff]
      %v1574 = vld [vmem:[#allocation3 + $0x60] sm:$0xff]
      %v1575 = vld [vmem:[#allocation3 + $0x68] sm:$0xff]
      %v1576 = vld [vmem:[#allocation3 + $0x70] sm:$0xff]
      %v1577 = vld [vmem:[#allocation3 + $0x78] sm:$0xff]
      %v1578 = vld [vmem:[#allocation3 + $0x80] sm:$0xff]
      %v1579 = vld [vmem:[#allocation3 + $0x88] sm:$0xff]
      %v1580 = vld [vmem:[#allocation3 + $0x90] sm:$0xff]
      %v1581 = vld [vmem:[#allocation3 + $0x98] sm:$0xff]
      %v1582 = vld [vmem:[#allocation3 + $0xa0] sm:$0xff]
      %v1583 = vld [vmem:[#allocation3 + $0xa8] sm:$0xff]
      %v1584 = vld [vmem:[#allocation3 + $0xb0] sm:$0xff]
      %v1585 = vld [vmem:[#allocation3 + $0xb8] sm:$0xff]
      %v1586 = vld [vmem:[#allocation3 + $0xc0] sm:$0xff]
      %v1587 = vld [vmem:[#allocation3 + $0xc8] sm:$0xff]
      %v1588 = vld [vmem:[#allocation3 + $0xd0] sm:$0xff]
      %v1589 = vld [vmem:[#allocation3 + $0xd8] sm:$0xff]
      %v1590 = vld [vmem:[#allocation3 + $0xe0] sm:$0xff]
      %v1591 = vld [vmem:[#allocation3 + $0xe8] sm:$0xff]
      %v1592 = vld [vmem:[#allocation3 + $0xf0] sm:$0xff]
      %v1593 = vld [vmem:[#allocation3 + $0xf8] sm:$0xff]
      %v1594 = vld [vmem:[#allocation3 + $0x100] sm:$0xff]
      %v1595 = vld [vmem:[#allocation3 + $0x108] sm:$0xff]
      %v1596 = vld [vmem:[#allocation3 + $0x110] sm:$0xff]
      %v1597 = vld [vmem:[#allocation3 + $0x118] sm:$0xff]
      %v1598 = vld [vmem:[#allocation3 + $0x120] sm:$0xff]
      %v1599 = vld [vmem:[#allocation3 + $0x128] sm:$0xff]
      %v1600 = vld [vmem:[#allocation3 + $0x130] sm:$0xff]
      %v1601 = vld [vmem:[#allocation3 + $0x138] sm:$0xff]
      %s1602 = scalar_lea.vmem %s2, 16
      %v1603 = vld [vmem:[%s1602] sm:$0xff]
      %v1604 = vld [vmem:[%s1602 + $0x8] sm:$0xf]
      %vm1605 = vcmask 97280
      %v1607 = vsel %vm1605, %v1562, 0
      %v1610 = vsel %vm1605, %v1563, 0
      %v1613 = vsel %vm1605, %v1564, 0
      %v1616 = vsel %vm1605, %v1565, 0
      %v1619 = vsel %vm1605, %v1566, 0
      %v1622 = vsel %vm1605, %v1567, 0
      %v1625 = vsel %vm1605, %v1568, 0
      %v1628 = vsel %vm1605, %v1569, 0
      %v1631 = vsel %vm1605, %v1570, 0
      %v1634 = vsel %vm1605, %v1571, 0
      %v1637 = vsel %vm1605, %v1572, 0
      %v1640 = vsel %vm1605, %v1573, 0
      %v1643 = vsel %vm1605, %v1574, 0
      %v1646 = vsel %vm1605, %v1575, 0
      %v1649 = vsel %vm1605, %v1576, 0
      %v1652 = vsel %vm1605, %v1577, 0
      %v1655 = vsel %vm1605, %v1578, 0
      %v1658 = vsel %vm1605, %v1579, 0
      %v1661 = vsel %vm1605, %v1580, 0
      %v1664 = vsel %vm1605, %v1581, 0
      %v1667 = vsel %vm1605, %v1582, 0
      %v1670 = vsel %vm1605, %v1583, 0
      %v1673 = vsel %vm1605, %v1584, 0
      %v1676 = vsel %vm1605, %v1585, 0
      %v1679 = vsel %vm1605, %v1586, 0
      %v1682 = vsel %vm1605, %v1587, 0
      %v1685 = vsel %vm1605, %v1588, 0
      %v1688 = vsel %vm1605, %v1589, 0
      %v1691 = vsel %vm1605, %v1590, 0
      %v1694 = vsel %vm1605, %v1591, 0
      %v1697 = vsel %vm1605, %v1592, 0
      %v1700 = vsel %vm1605, %v1593, 0
      %v1703 = vsel %vm1605, %v1594, 0
      %v1706 = vsel %vm1605, %v1595, 0
      %v1709 = vsel %vm1605, %v1596, 0
      %v1712 = vsel %vm1605, %v1597, 0
      %v1715 = vsel %vm1605, %v1598, 0
      %v1718 = vsel %vm1605, %v1599, 0
      %v1721 = vsel %vm1605, %v1600, 0
      %v1724 = vsel %vm1605, %v1601, 0
      %vm1726 = vcmask 1043456
      %v1728 = vsel %vm1726, %v1604, 0
      %1730 = vmatprep.subr.mxu0 0.0
      %1731 = vmatpush1.msra.mxu0 0.0
      %1732 = vmatprep.subr.mxu0 0.0
      %1733 = vmatpush1.msra.mxu0 0.0
      %1734 = vmatprep.subr.mxu0 0.0
      %1735 = vmatpush1.msra.mxu0 0.0
      %1736 = vmatprep.subr.mxu0 0.0
      %1737 = vmatpush1.msra.mxu0 0.0
      %1738 = vmatprep.subr.mxu0 0.0
      %1739 = vmatpush1.msra.mxu0 0.0
      %1740 = vmatprep.subr.mxu0 0.0
      %1741 = vmatpush1.msra.mxu0 0.0
      %1742 = vmatprep.subr.mxu0 0.0
      %1743 = vmatpush1.msra.mxu0 0.0
      %1744 = vmatprep.subr.mxu0 0.0
      %1745 = vmatpush1.msra.mxu0 0.0
      %1746 = vmatprep.subr.mxu0 0.0
      %1747 = vmatpush1.msra.mxu0 0.0
      %1748 = vmatprep.subr.mxu0 0.0
      %1749 = vmatpush1.msra.mxu0 0.0
      %1750 = vmatprep.subr.mxu0 0.0
      %1751 = vmatpush1.msra.mxu0 0.0
      %1752 = vmatprep.subr.mxu0 0.0
      %1753 = vmatpush1.msra.mxu0 0.0
      %1754 = vmatprep.subr.mxu0 0.0
      %1755 = vmatpush1.msra.mxu0 0.0
      %1756 = vmatprep.subr.mxu0 0.0
      %1757 = vmatpush1.msra.mxu0 0.0
      %1758 = vmatprep.subr.mxu0 0.0
      %1759 = vmatpush1.msra.mxu0 %v1728
      %1760 = vmatprep.subr.mxu0 0.0
      %1761 = vmatpush1.msra.mxu0 %v1603
      %1762 = vmatprep.subr.mxu0 0.0
      %1763 = vmatpush2.msra.mxu0 0.0
      %1764 = vmatprep.subr.mxu0 0.0
      %1765 = vmatpush2.msra.mxu0 0.0
      %1766 = vmatprep.subr.mxu0 0.0
      %1767 = vmatpush2.msra.mxu0 0.0
      %1768 = vmatprep.subr.mxu0 0.0
      %1769 = vmatpush2.msra.mxu0 0.0
      %1770 = vmatprep.subr.mxu0 0.0
      %1771 = vmatpush2.msra.mxu0 0.0
      %1772 = vmatprep.subr.mxu0 0.0
      %1773 = vmatpush2.msra.mxu0 0.0
      %1774 = vmatprep.subr.mxu0 0.0
      %1775 = vmatpush2.msra.mxu0 0.0
      %1776 = vmatprep.subr.mxu0 0.0
      %1777 = vmatpush2.msra.mxu0 0.0
      %1778 = vmatprep.subr.mxu0 0.0
      %1779 = vmatpush2.msra.mxu0 0.0
      %1780 = vmatprep.subr.mxu0 0.0
      %1781 = vmatpush2.msra.mxu0 0.0
      %1782 = vmatprep.subr.mxu0 0.0
      %1783 = vmatpush2.msra.mxu0 0.0
      %1784 = vmatprep.subr.mxu0 0.0
      %1785 = vmatpush2.msra.mxu0 0.0
      %1786 = vmatprep.subr.mxu0 0.0
      %1787 = vmatpush2.msra.mxu0 0.0
      %1788 = vmatprep.subr.mxu0 0.0
      %1789 = vmatpush2.msra.mxu0 0.0
      %1790 = vmatprep.subr.mxu0 0.0
      %1791 = vmatpush2.msra.mxu0 0.0
      %1792 = vmatprep.subr.mxu0 0.0
      %1793 = vmatpush2.msra.mxu0 0.0
      %1794 = vmatprep.mubr.f32.mxu0 0.0
      %1795 = vmatmul.mubr.f32.gmra.mxu0 %v1607
      %v1796 = vpop.f32.mrf.mxu0
      %v1797 = vadd.f32 0.0, %v1796
      %v1798 = vpop.f32.mrf.mxu0
      %1799 = vmatprep.mubr.f32.mxu0 0.0
      %1800 = vmatmul.mubr.f32.gmra.mxu0 %v1610
      %v1801 = vpop.f32.mrf.mxu0
      %v1802 = vadd.f32 0.0, %v1801
      %v1803 = vpop.f32.mrf.mxu0
      %1804 = vmatprep.mubr.f32.mxu0 0.0
      %1805 = vmatmul.mubr.f32.gmra.mxu0 %v1613
      %v1806 = vpop.f32.mrf.mxu0
      %v1807 = vadd.f32 0.0, %v1806
      %v1808 = vpop.f32.mrf.mxu0
      %1809 = vmatprep.mubr.f32.mxu0 0.0
      %1810 = vmatmul.mubr.f32.gmra.mxu0 %v1616
      %v1811 = vpop.f32.mrf.mxu0
      %v1812 = vadd.f32 0.0, %v1811
      %v1813 = vpop.f32.mrf.mxu0
      %1814 = vmatprep.mubr.f32.mxu0 0.0
      %1815 = vmatmul.mubr.f32.gmra.mxu0 %v1619
      %v1816 = vpop.f32.mrf.mxu0
      %v1817 = vadd.f32 0.0, %v1816
      %v1818 = vpop.f32.mrf.mxu0
      %1819 = vmatprep.mubr.f32.mxu0 0.0
      %1820 = vmatmul.mubr.f32.gmra.mxu0 %v1622
      %v1821 = vpop.f32.mrf.mxu0
      %v1822 = vadd.f32 0.0, %v1821
      %v1823 = vpop.f32.mrf.mxu0
      %1824 = vmatprep.mubr.f32.mxu0 0.0
      %1825 = vmatmul.mubr.f32.gmra.mxu0 %v1625
      %v1826 = vpop.f32.mrf.mxu0
      %v1827 = vadd.f32 0.0, %v1826
      %v1828 = vpop.f32.mrf.mxu0
      %1829 = vmatprep.mubr.f32.mxu0 0.0
      %1830 = vmatmul.mubr.f32.gmra.mxu0 %v1628
      %v1831 = vpop.f32.mrf.mxu0
      %v1832 = vadd.f32 0.0, %v1831
      %v1833 = vpop.f32.mrf.mxu0
      %1834 = vmatprep.mubr.f32.mxu0 0.0
      %1835 = vmatmul.mubr.f32.gmra.mxu0 %v1631
      %v1836 = vpop.f32.mrf.mxu0
      %v1837 = vadd.f32 0.0, %v1836
      %v1838 = vpop.f32.mrf.mxu0
      %1839 = vmatprep.mubr.f32.mxu0 0.0
      %1840 = vmatmul.mubr.f32.gmra.mxu0 %v1634
      %v1841 = vpop.f32.mrf.mxu0
      %v1842 = vadd.f32 0.0, %v1841
      %v1843 = vpop.f32.mrf.mxu0
      %1844 = vmatprep.mubr.f32.mxu0 0.0
      %1845 = vmatmul.mubr.f32.gmra.mxu0 %v1637
      %v1846 = vpop.f32.mrf.mxu0
      %v1847 = vadd.f32 0.0, %v1846
      %v1848 = vpop.f32.mrf.mxu0
      %1849 = vmatprep.mubr.f32.mxu0 0.0
      %1850 = vmatmul.mubr.f32.gmra.mxu0 %v1640
      %v1851 = vpop.f32.mrf.mxu0
      %v1852 = vadd.f32 0.0, %v1851
      %v1853 = vpop.f32.mrf.mxu0
      %1854 = vmatprep.mubr.f32.mxu0 0.0
      %1855 = vmatmul.mubr.f32.gmra.mxu0 %v1643
      %v1856 = vpop.f32.mrf.mxu0
      %v1857 = vadd.f32 0.0, %v1856
      %v1858 = vpop.f32.mrf.mxu0
      %1859 = vmatprep.mubr.f32.mxu0 0.0
      %1860 = vmatmul.mubr.f32.gmra.mxu0 %v1646
      %v1861 = vpop.f32.mrf.mxu0
      %v1862 = vadd.f32 0.0, %v1861
      %v1863 = vpop.f32.mrf.mxu0
      %1864 = vmatprep.mubr.f32.mxu0 0.0
      %1865 = vmatmul.mubr.f32.gmra.mxu0 %v1649
      %v1866 = vpop.f32.mrf.mxu0
      %v1867 = vadd.f32 0.0, %v1866
      %v1868 = vpop.f32.mrf.mxu0
      %1869 = vmatprep.mubr.f32.mxu0 0.0
      %1870 = vmatmul.mubr.f32.gmra.mxu0 %v1652
      %v1871 = vpop.f32.mrf.mxu0
      %v1872 = vadd.f32 0.0, %v1871
      %v1873 = vpop.f32.mrf.mxu0
      %1874 = vmatprep.mubr.f32.mxu0 0.0
      %1875 = vmatmul.mubr.f32.gmra.mxu0 %v1655
      %v1876 = vpop.f32.mrf.mxu0
      %v1877 = vadd.f32 0.0, %v1876
      %v1878 = vpop.f32.mrf.mxu0
      %1879 = vmatprep.mubr.f32.mxu0 0.0
      %1880 = vmatmul.mubr.f32.gmra.mxu0 %v1658
      %v1881 = vpop.f32.mrf.mxu0
      %v1882 = vadd.f32 0.0, %v1881
      %v1883 = vpop.f32.mrf.mxu0
      %1884 = vmatprep.mubr.f32.mxu0 0.0
      %1885 = vmatmul.mubr.f32.gmra.mxu0 %v1661
      %v1886 = vpop.f32.mrf.mxu0
      %v1887 = vadd.f32 0.0, %v1886
      %v1888 = vpop.f32.mrf.mxu0
      %1889 = vmatprep.mubr.f32.mxu0 0.0
      %1890 = vmatmul.mubr.f32.gmra.mxu0 %v1664
      %v1891 = vpop.f32.mrf.mxu0
      %v1892 = vadd.f32 0.0, %v1891
      %v1893 = vpop.f32.mrf.mxu0
      %1894 = vmatprep.mubr.f32.mxu0 0.0
      %1895 = vmatmul.mubr.f32.gmra.mxu0 %v1667
      %v1896 = vpop.f32.mrf.mxu0
      %v1897 = vadd.f32 0.0, %v1896
      %v1898 = vpop.f32.mrf.mxu0
      %1899 = vmatprep.mubr.f32.mxu0 0.0
      %1900 = vmatmul.mubr.f32.gmra.mxu0 %v1670
      %v1901 = vpop.f32.mrf.mxu0
      %v1902 = vadd.f32 0.0, %v1901
      %v1903 = vpop.f32.mrf.mxu0
      %1904 = vmatprep.mubr.f32.mxu0 0.0
      %1905 = vmatmul.mubr.f32.gmra.mxu0 %v1673
      %v1906 = vpop.f32.mrf.mxu0
      %v1907 = vadd.f32 0.0, %v1906
      %v1908 = vpop.f32.mrf.mxu0
      %1909 = vmatprep.mubr.f32.mxu0 0.0
      %1910 = vmatmul.mubr.f32.gmra.mxu0 %v1676
      %v1911 = vpop.f32.mrf.mxu0
      %v1912 = vadd.f32 0.0, %v1911
      %v1913 = vpop.f32.mrf.mxu0
      %1914 = vmatprep.mubr.f32.mxu0 0.0
      %1915 = vmatmul.mubr.f32.gmra.mxu0 %v1679
      %v1916 = vpop.f32.mrf.mxu0
      %v1917 = vadd.f32 0.0, %v1916
      %v1918 = vpop.f32.mrf.mxu0
      %1919 = vmatprep.mubr.f32.mxu0 0.0
      %1920 = vmatmul.mubr.f32.gmra.mxu0 %v1682
      %v1921 = vpop.f32.mrf.mxu0
      %v1922 = vadd.f32 0.0, %v1921
      %v1923 = vpop.f32.mrf.mxu0
      %1924 = vmatprep.mubr.f32.mxu0 0.0
      %1925 = vmatmul.mubr.f32.gmra.mxu0 %v1685
      %v1926 = vpop.f32.mrf.mxu0
      %v1927 = vadd.f32 0.0, %v1926
      %v1928 = vpop.f32.mrf.mxu0
      %1929 = vmatprep.mubr.f32.mxu0 0.0
      %1930 = vmatmul.mubr.f32.gmra.mxu0 %v1688
      %v1931 = vpop.f32.mrf.mxu0
      %v1932 = vadd.f32 0.0, %v1931
      %v1933 = vpop.f32.mrf.mxu0
      %1934 = vmatprep.mubr.f32.mxu0 0.0
      %1935 = vmatmul.mubr.f32.gmra.mxu0 %v1691
      %v1936 = vpop.f32.mrf.mxu0
      %v1937 = vadd.f32 0.0, %v1936
      %v1938 = vpop.f32.mrf.mxu0
      %1939 = vmatprep.mubr.f32.mxu0 0.0
      %1940 = vmatmul.mubr.f32.gmra.mxu0 %v1694
      %v1941 = vpop.f32.mrf.mxu0
      %v1942 = vadd.f32 0.0, %v1941
      %v1943 = vpop.f32.mrf.mxu0
      %1944 = vmatprep.mubr.f32.mxu0 0.0
      %1945 = vmatmul.mubr.f32.gmra.mxu0 %v1697
      %v1946 = vpop.f32.mrf.mxu0
      %v1947 = vadd.f32 0.0, %v1946
      %v1948 = vpop.f32.mrf.mxu0
      %1949 = vmatprep.mubr.f32.mxu0 0.0
      %1950 = vmatmul.mubr.f32.gmra.mxu0 %v1700
      %v1951 = vpop.f32.mrf.mxu0
      %v1952 = vadd.f32 0.0, %v1951
      %v1953 = vpop.f32.mrf.mxu0
      %1954 = vmatprep.mubr.f32.mxu0 0.0
      %1955 = vmatmul.mubr.f32.gmra.mxu0 %v1703
      %v1956 = vpop.f32.mrf.mxu0
      %v1957 = vadd.f32 0.0, %v1956
      %v1958 = vpop.f32.mrf.mxu0
      %1959 = vmatprep.mubr.f32.mxu0 0.0
      %1960 = vmatmul.mubr.f32.gmra.mxu0 %v1706
      %v1961 = vpop.f32.mrf.mxu0
      %v1962 = vadd.f32 0.0, %v1961
      %v1963 = vpop.f32.mrf.mxu0
      %1964 = vmatprep.mubr.f32.mxu0 0.0
      %1965 = vmatmul.mubr.f32.gmra.mxu0 %v1709
      %v1966 = vpop.f32.mrf.mxu0
      %v1967 = vadd.f32 0.0, %v1966
      %v1968 = vpop.f32.mrf.mxu0
      %1969 = vmatprep.mubr.f32.mxu0 0.0
      %1970 = vmatmul.mubr.f32.gmra.mxu0 %v1712
      %v1971 = vpop.f32.mrf.mxu0
      %v1972 = vadd.f32 0.0, %v1971
      %v1973 = vpop.f32.mrf.mxu0
      %1974 = vmatprep.mubr.f32.mxu0 0.0
      %1975 = vmatmul.mubr.f32.gmra.mxu0 %v1715
      %v1976 = vpop.f32.mrf.mxu0
      %v1977 = vadd.f32 0.0, %v1976
      %v1978 = vpop.f32.mrf.mxu0
      %1979 = vmatprep.mubr.f32.mxu0 0.0
      %1980 = vmatmul.mubr.f32.gmra.mxu0 %v1718
      %v1981 = vpop.f32.mrf.mxu0
      %v1982 = vadd.f32 0.0, %v1981
      %v1983 = vpop.f32.mrf.mxu0
      %1984 = vmatprep.mubr.f32.mxu0 0.0
      %1985 = vmatmul.mubr.f32.gmra.mxu0 %v1721
      %v1986 = vpop.f32.mrf.mxu0
      %v1987 = vadd.f32 0.0, %v1986
      %v1988 = vpop.f32.mrf.mxu0
      %1989 = vmatprep.mubr.f32.mxu0 0.0
      %1990 = vmatmul.mubr.f32.gmra.mxu0 %v1724
      %v1991 = vpop.f32.mrf.mxu0
      %v1992 = vadd.f32 0.0, %v1991
      %v1993 = vpop.f32.mrf.mxu0
      %1994 = vdwg.mxu0
      %v1996 = vsel %vm1605, %v960, 0
      %v1999 = vsel %vm1605, %v961, 0
      %v2002 = vsel %vm1605, %v962, 0
      %v2005 = vsel %vm1605, %v963, 0
      %v2008 = vsel %vm1605, %v964, 0
      %v2011 = vsel %vm1605, %v965, 0
      %v2014 = vsel %vm1605, %v966, 0
      %v2017 = vsel %vm1605, %v967, 0
      %v2020 = vsel %vm1605, %v968, 0
      %v2023 = vsel %vm1605, %v969, 0
      %v2026 = vsel %vm1605, %v970, 0
      %v2029 = vsel %vm1605, %v971, 0
      %v2032 = vsel %vm1605, %v972, 0
      %v2035 = vsel %vm1605, %v973, 0
      %v2038 = vsel %vm1605, %v974, 0
      %v2041 = vsel %vm1605, %v975, 0
      %v2044 = vsel %vm1605, %v976, 0
      %v2047 = vsel %vm1605, %v977, 0
      %v2050 = vsel %vm1605, %v978, 0
      %v2053 = vsel %vm1605, %v979, 0
      %v2056 = vsel %vm1605, %v980, 0
      %v2059 = vsel %vm1605, %v981, 0
      %v2062 = vsel %vm1605, %v982, 0
      %v2065 = vsel %vm1605, %v983, 0
      %v2068 = vsel %vm1605, %v984, 0
      %v2071 = vsel %vm1605, %v985, 0
      %v2074 = vsel %vm1605, %v986, 0
      %v2077 = vsel %vm1605, %v987, 0
      %v2080 = vsel %vm1605, %v988, 0
      %v2083 = vsel %vm1605, %v989, 0
      %v2086 = vsel %vm1605, %v990, 0
      %v2089 = vsel %vm1605, %v991, 0
      %v2092 = vsel %vm1605, %v992, 0
      %v2095 = vsel %vm1605, %v993, 0
      %v2098 = vsel %vm1605, %v994, 0
      %v2101 = vsel %vm1605, %v995, 0
      %v2104 = vsel %vm1605, %v996, 0
      %v2107 = vsel %vm1605, %v997, 0
      %v2110 = vsel %vm1605, %v998, 0
      %v2113 = vsel %vm1605, %v999, 0
      %v2116 = vsel %vm1726, %v1001, 0
      %2118 = vmatprep.subr.mxu0 0.0
      %2119 = vmatpush1.msra.mxu0 0.0
      %2120 = vmatprep.subr.mxu0 0.0
      %2121 = vmatpush1.msra.mxu0 0.0
      %2122 = vmatprep.subr.mxu0 0.0
      %2123 = vmatpush1.msra.mxu0 0.0
      %2124 = vmatprep.subr.mxu0 0.0
      %2125 = vmatpush1.msra.mxu0 0.0
      %2126 = vmatprep.subr.mxu0 0.0
      %2127 = vmatpush1.msra.mxu0 0.0
      %2128 = vmatprep.subr.mxu0 0.0
      %2129 = vmatpush1.msra.mxu0 0.0
      %2130 = vmatprep.subr.mxu0 0.0
      %2131 = vmatpush1.msra.mxu0 0.0
      %2132 = vmatprep.subr.mxu0 0.0
      %2133 = vmatpush1.msra.mxu0 0.0
      %2134 = vmatprep.subr.mxu0 0.0
      %2135 = vmatpush1.msra.mxu0 0.0
      %2136 = vmatprep.subr.mxu0 0.0
      %2137 = vmatpush1.msra.mxu0 0.0
      %2138 = vmatprep.subr.mxu0 0.0
      %2139 = vmatpush1.msra.mxu0 0.0
      %2140 = vmatprep.subr.mxu0 0.0
      %2141 = vmatpush1.msra.mxu0 0.0
      %2142 = vmatprep.subr.mxu0 0.0
      %2143 = vmatpush1.msra.mxu0 0.0
      %2144 = vmatprep.subr.mxu0 0.0
      %2145 = vmatpush1.msra.mxu0 0.0
      %2146 = vmatprep.subr.mxu0 0.0
      %2147 = vmatpush1.msra.mxu0 %v2116
      %2148 = vmatprep.subr.mxu0 0.0
      %2149 = vmatpush1.msra.mxu0 %v1000
      %2150 = vmatprep.subr.mxu0 0.0
      %2151 = vmatpush2.msra.mxu0 0.0
      %2152 = vmatprep.subr.mxu0 0.0
      %2153 = vmatpush2.msra.mxu0 0.0
      %2154 = vmatprep.subr.mxu0 0.0
      %2155 = vmatpush2.msra.mxu0 0.0
      %2156 = vmatprep.subr.mxu0 0.0
      %2157 = vmatpush2.msra.mxu0 0.0
      %2158 = vmatprep.subr.mxu0 0.0
      %2159 = vmatpush2.msra.mxu0 0.0
      %2160 = vmatprep.subr.mxu0 0.0
      %2161 = vmatpush2.msra.mxu0 0.0
      %2162 = vmatprep.subr.mxu0 0.0
      %2163 = vmatpush2.msra.mxu0 0.0
      %2164 = vmatprep.subr.mxu0 0.0
      %2165 = vmatpush2.msra.mxu0 0.0
      %2166 = vmatprep.subr.mxu0 0.0
      %2167 = vmatpush2.msra.mxu0 0.0
      %2168 = vmatprep.subr.mxu0 0.0
      %2169 = vmatpush2.msra.mxu0 0.0
      %2170 = vmatprep.subr.mxu0 0.0
      %2171 = vmatpush2.msra.mxu0 0.0
      %2172 = vmatprep.subr.mxu0 0.0
      %2173 = vmatpush2.msra.mxu0 0.0
      %2174 = vmatprep.subr.mxu0 0.0
      %2175 = vmatpush2.msra.mxu0 0.0
      %2176 = vmatprep.subr.mxu0 0.0
      %2177 = vmatpush2.msra.mxu0 0.0
      %2178 = vmatprep.subr.mxu0 0.0
      %2179 = vmatpush2.msra.mxu0 0.0
      %2180 = vmatprep.subr.mxu0 0.0
      %2181 = vmatpush2.msra.mxu0 0.0
      %2182 = vmatprep.mubr.f32.mxu0 0.0
      %2183 = vmatmul.mubr.f32.gmra.mxu0 %v1996
      %v2184 = vpop.f32.mrf.mxu0
      %v2185 = vadd.f32 %v1797, %v2184
      %v2186 = vpop.f32.mrf.mxu0
      %2187 = vmatprep.mubr.f32.mxu0 0.0
      %2188 = vmatmul.mubr.f32.gmra.mxu0 %v1999
      %v2189 = vpop.f32.mrf.mxu0
      %v2190 = vadd.f32 %v1802, %v2189
      %v2191 = vpop.f32.mrf.mxu0
      %2192 = vmatprep.mubr.f32.mxu0 0.0
      %2193 = vmatmul.mubr.f32.gmra.mxu0 %v2002
      %v2194 = vpop.f32.mrf.mxu0
      %v2195 = vadd.f32 %v1807, %v2194
      %v2196 = vpop.f32.mrf.mxu0
      %2197 = vmatprep.mubr.f32.mxu0 0.0
      %2198 = vmatmul.mubr.f32.gmra.mxu0 %v2005
      %v2199 = vpop.f32.mrf.mxu0
      %v2200 = vadd.f32 %v1812, %v2199
      %v2201 = vpop.f32.mrf.mxu0
      %2202 = vmatprep.mubr.f32.mxu0 0.0
      %2203 = vmatmul.mubr.f32.gmra.mxu0 %v2008
      %v2204 = vpop.f32.mrf.mxu0
      %v2205 = vadd.f32 %v1817, %v2204
      %v2206 = vpop.f32.mrf.mxu0
      %2207 = vmatprep.mubr.f32.mxu0 0.0
      %2208 = vmatmul.mubr.f32.gmra.mxu0 %v2011
      %v2209 = vpop.f32.mrf.mxu0
      %v2210 = vadd.f32 %v1822, %v2209
      %v2211 = vpop.f32.mrf.mxu0
      %2212 = vmatprep.mubr.f32.mxu0 0.0
      %2213 = vmatmul.mubr.f32.gmra.mxu0 %v2014
      %v2214 = vpop.f32.mrf.mxu0
      %v2215 = vadd.f32 %v1827, %v2214
      %v2216 = vpop.f32.mrf.mxu0
      %2217 = vmatprep.mubr.f32.mxu0 0.0
      %2218 = vmatmul.mubr.f32.gmra.mxu0 %v2017
      %v2219 = vpop.f32.mrf.mxu0
      %v2220 = vadd.f32 %v1832, %v2219
      %v2221 = vpop.f32.mrf.mxu0
      %2222 = vmatprep.mubr.f32.mxu0 0.0
      %2223 = vmatmul.mubr.f32.gmra.mxu0 %v2020
      %v2224 = vpop.f32.mrf.mxu0
      %v2225 = vadd.f32 %v1837, %v2224
      %v2226 = vpop.f32.mrf.mxu0
      %2227 = vmatprep.mubr.f32.mxu0 0.0
      %2228 = vmatmul.mubr.f32.gmra.mxu0 %v2023
      %v2229 = vpop.f32.mrf.mxu0
      %v2230 = vadd.f32 %v1842, %v2229
      %v2231 = vpop.f32.mrf.mxu0
      %2232 = vmatprep.mubr.f32.mxu0 0.0
      %2233 = vmatmul.mubr.f32.gmra.mxu0 %v2026
      %v2234 = vpop.f32.mrf.mxu0
      %v2235 = vadd.f32 %v1847, %v2234
      %v2236 = vpop.f32.mrf.mxu0
      %2237 = vmatprep.mubr.f32.mxu0 0.0
      %2238 = vmatmul.mubr.f32.gmra.mxu0 %v2029
      %v2239 = vpop.f32.mrf.mxu0
      %v2240 = vadd.f32 %v1852, %v2239
      %v2241 = vpop.f32.mrf.mxu0
      %2242 = vmatprep.mubr.f32.mxu0 0.0
      %2243 = vmatmul.mubr.f32.gmra.mxu0 %v2032
      %v2244 = vpop.f32.mrf.mxu0
      %v2245 = vadd.f32 %v1857, %v2244
      %v2246 = vpop.f32.mrf.mxu0
      %2247 = vmatprep.mubr.f32.mxu0 0.0
      %2248 = vmatmul.mubr.f32.gmra.mxu0 %v2035
      %v2249 = vpop.f32.mrf.mxu0
      %v2250 = vadd.f32 %v1862, %v2249
      %v2251 = vpop.f32.mrf.mxu0
      %2252 = vmatprep.mubr.f32.mxu0 0.0
      %2253 = vmatmul.mubr.f32.gmra.mxu0 %v2038
      %v2254 = vpop.f32.mrf.mxu0
      %v2255 = vadd.f32 %v1867, %v2254
      %v2256 = vpop.f32.mrf.mxu0
      %2257 = vmatprep.mubr.f32.mxu0 0.0
      %2258 = vmatmul.mubr.f32.gmra.mxu0 %v2041
      %v2259 = vpop.f32.mrf.mxu0
      %v2260 = vadd.f32 %v1872, %v2259
      %v2261 = vpop.f32.mrf.mxu0
      %2262 = vmatprep.mubr.f32.mxu0 0.0
      %2263 = vmatmul.mubr.f32.gmra.mxu0 %v2044
      %v2264 = vpop.f32.mrf.mxu0
      %v2265 = vadd.f32 %v1877, %v2264
      %v2266 = vpop.f32.mrf.mxu0
      %2267 = vmatprep.mubr.f32.mxu0 0.0
      %2268 = vmatmul.mubr.f32.gmra.mxu0 %v2047
      %v2269 = vpop.f32.mrf.mxu0
      %v2270 = vadd.f32 %v1882, %v2269
      %v2271 = vpop.f32.mrf.mxu0
      %2272 = vmatprep.mubr.f32.mxu0 0.0
      %2273 = vmatmul.mubr.f32.gmra.mxu0 %v2050
      %v2274 = vpop.f32.mrf.mxu0
      %v2275 = vadd.f32 %v1887, %v2274
      %v2276 = vpop.f32.mrf.mxu0
      %2277 = vmatprep.mubr.f32.mxu0 0.0
      %2278 = vmatmul.mubr.f32.gmra.mxu0 %v2053
      %v2279 = vpop.f32.mrf.mxu0
      %v2280 = vadd.f32 %v1892, %v2279
      %v2281 = vpop.f32.mrf.mxu0
      %2282 = vmatprep.mubr.f32.mxu0 0.0
      %2283 = vmatmul.mubr.f32.gmra.mxu0 %v2056
      %v2284 = vpop.f32.mrf.mxu0
      %v2285 = vadd.f32 %v1897, %v2284
      %v2286 = vpop.f32.mrf.mxu0
      %2287 = vmatprep.mubr.f32.mxu0 0.0
      %2288 = vmatmul.mubr.f32.gmra.mxu0 %v2059
      %v2289 = vpop.f32.mrf.mxu0
      %v2290 = vadd.f32 %v1902, %v2289
      %v2291 = vpop.f32.mrf.mxu0
      %2292 = vmatprep.mubr.f32.mxu0 0.0
      %2293 = vmatmul.mubr.f32.gmra.mxu0 %v2062
      %v2294 = vpop.f32.mrf.mxu0
      %v2295 = vadd.f32 %v1907, %v2294
      %v2296 = vpop.f32.mrf.mxu0
      %2297 = vmatprep.mubr.f32.mxu0 0.0
      %2298 = vmatmul.mubr.f32.gmra.mxu0 %v2065
      %v2299 = vpop.f32.mrf.mxu0
      %v2300 = vadd.f32 %v1912, %v2299
      %v2301 = vpop.f32.mrf.mxu0
      %2302 = vmatprep.mubr.f32.mxu0 0.0
      %2303 = vmatmul.mubr.f32.gmra.mxu0 %v2068
      %v2304 = vpop.f32.mrf.mxu0
      %v2305 = vadd.f32 %v1917, %v2304
      %v2306 = vpop.f32.mrf.mxu0
      %2307 = vmatprep.mubr.f32.mxu0 0.0
      %2308 = vmatmul.mubr.f32.gmra.mxu0 %v2071
      %v2309 = vpop.f32.mrf.mxu0
      %v2310 = vadd.f32 %v1922, %v2309
      %v2311 = vpop.f32.mrf.mxu0
      %2312 = vmatprep.mubr.f32.mxu0 0.0
      %2313 = vmatmul.mubr.f32.gmra.mxu0 %v2074
      %v2314 = vpop.f32.mrf.mxu0
      %v2315 = vadd.f32 %v1927, %v2314
      %v2316 = vpop.f32.mrf.mxu0
      %2317 = vmatprep.mubr.f32.mxu0 0.0
      %2318 = vmatmul.mubr.f32.gmra.mxu0 %v2077
      %v2319 = vpop.f32.mrf.mxu0
      %v2320 = vadd.f32 %v1932, %v2319
      %v2321 = vpop.f32.mrf.mxu0
      %2322 = vmatprep.mubr.f32.mxu0 0.0
      %2323 = vmatmul.mubr.f32.gmra.mxu0 %v2080
      %v2324 = vpop.f32.mrf.mxu0
      %v2325 = vadd.f32 %v1937, %v2324
      %v2326 = vpop.f32.mrf.mxu0
      %2327 = vmatprep.mubr.f32.mxu0 0.0
      %2328 = vmatmul.mubr.f32.gmra.mxu0 %v2083
      %v2329 = vpop.f32.mrf.mxu0
      %v2330 = vadd.f32 %v1942, %v2329
      %v2331 = vpop.f32.mrf.mxu0
      %2332 = vmatprep.mubr.f32.mxu0 0.0
      %2333 = vmatmul.mubr.f32.gmra.mxu0 %v2086
      %v2334 = vpop.f32.mrf.mxu0
      %v2335 = vadd.f32 %v1947, %v2334
      %v2336 = vpop.f32.mrf.mxu0
      %2337 = vmatprep.mubr.f32.mxu0 0.0
      %2338 = vmatmul.mubr.f32.gmra.mxu0 %v2089
      %v2339 = vpop.f32.mrf.mxu0
      %v2340 = vadd.f32 %v1952, %v2339
      %v2341 = vpop.f32.mrf.mxu0
      %2342 = vmatprep.mubr.f32.mxu0 0.0
      %2343 = vmatmul.mubr.f32.gmra.mxu0 %v2092
      %v2344 = vpop.f32.mrf.mxu0
      %v2345 = vadd.f32 %v1957, %v2344
      %v2346 = vpop.f32.mrf.mxu0
      %2347 = vmatprep.mubr.f32.mxu0 0.0
      %2348 = vmatmul.mubr.f32.gmra.mxu0 %v2095
      %v2349 = vpop.f32.mrf.mxu0
      %v2350 = vadd.f32 %v1962, %v2349
      %v2351 = vpop.f32.mrf.mxu0
      %2352 = vmatprep.mubr.f32.mxu0 0.0
      %2353 = vmatmul.mubr.f32.gmra.mxu0 %v2098
      %v2354 = vpop.f32.mrf.mxu0
      %v2355 = vadd.f32 %v1967, %v2354
      %v2356 = vpop.f32.mrf.mxu0
      %2357 = vmatprep.mubr.f32.mxu0 0.0
      %2358 = vmatmul.mubr.f32.gmra.mxu0 %v2101
      %v2359 = vpop.f32.mrf.mxu0
      %v2360 = vadd.f32 %v1972, %v2359
      %v2361 = vpop.f32.mrf.mxu0
      %2362 = vmatprep.mubr.f32.mxu0 0.0
      %2363 = vmatmul.mubr.f32.gmra.mxu0 %v2104
      %v2364 = vpop.f32.mrf.mxu0
      %v2365 = vadd.f32 %v1977, %v2364
      %v2366 = vpop.f32.mrf.mxu0
      %2367 = vmatprep.mubr.f32.mxu0 0.0
      %2368 = vmatmul.mubr.f32.gmra.mxu0 %v2107
      %v2369 = vpop.f32.mrf.mxu0
      %v2370 = vadd.f32 %v1982, %v2369
      %v2371 = vpop.f32.mrf.mxu0
      %2372 = vmatprep.mubr.f32.mxu0 0.0
      %2373 = vmatmul.mubr.f32.gmra.mxu0 %v2110
      %v2374 = vpop.f32.mrf.mxu0
      %v2375 = vadd.f32 %v1987, %v2374
      %v2376 = vpop.f32.mrf.mxu0
      %2377 = vmatprep.mubr.f32.mxu0 0.0
      %2378 = vmatmul.mubr.f32.gmra.mxu0 %v2113
      %v2379 = vpop.f32.mrf.mxu0
      %v2380 = vadd.f32 %v1992, %v2379
      %v2381 = vpop.f32.mrf.mxu0
      %2382 = vdwg.mxu0
      %v2383 = vld [vmem:[#allocation2 + $0x24] sm:$0xff]
      %v2384 = vld [vmem:[#allocation2 + $0x2c] sm:$0xff]
      %v2385 = vld [vmem:[#allocation2 + $0x34] sm:$0xff]
      %v2386 = vld [vmem:[#allocation2 + $0x3c] sm:$0xff]
      %v2387 = vld [vmem:[#allocation2 + $0x44] sm:$0xff]
      %v2388 = vld [vmem:[#allocation2 + $0x4c] sm:$0xff]
      %v2389 = vld [vmem:[#allocation2 + $0x54] sm:$0xff]
      %v2390 = vld [vmem:[#allocation2 + $0x5c] sm:$0xff]
      %v2391 = vld [vmem:[#allocation2 + $0x64] sm:$0xff]
      %v2392 = vld [vmem:[#allocation2 + $0x6c] sm:$0xff]
      %v2393 = vld [vmem:[#allocation2 + $0x74] sm:$0xff]
      %v2394 = vld [vmem:[#allocation2 + $0x7c] sm:$0xff]
      %v2395 = vld [vmem:[#allocation2 + $0x84] sm:$0xff]
      %v2396 = vld [vmem:[#allocation2 + $0x8c] sm:$0xff]
      %v2397 = vld [vmem:[#allocation2 + $0x94] sm:$0xff]
      %v2398 = vld [vmem:[#allocation2 + $0x9c] sm:$0xff]
      %v2399 = vld [vmem:[#allocation2 + $0xa4] sm:$0xff]
      %v2400 = vld [vmem:[#allocation2 + $0xac] sm:$0xff]
      %v2401 = vld [vmem:[#allocation2 + $0xb4] sm:$0xff]
      %v2402 = vld [vmem:[#allocation2 + $0xbc] sm:$0xff]
      %v2403 = vld [vmem:[#allocation2 + $0xc4] sm:$0xff]
      %v2404 = vld [vmem:[#allocation2 + $0xcc] sm:$0xff]
      %v2405 = vld [vmem:[#allocation2 + $0xd4] sm:$0xff]
      %v2406 = vld [vmem:[#allocation2 + $0xdc] sm:$0xff]
      %v2407 = vld [vmem:[#allocation2 + $0xe4] sm:$0xff]
      %v2408 = vld [vmem:[#allocation2 + $0xec] sm:$0xff]
      %v2409 = vld [vmem:[#allocation2 + $0xf4] sm:$0xff]
      %v2410 = vld [vmem:[#allocation2 + $0xfc] sm:$0xff]
      %v2411 = vld [vmem:[#allocation2 + $0x104] sm:$0xff]
      %v2412 = vld [vmem:[#allocation2 + $0x10c] sm:$0xff]
      %v2413 = vld [vmem:[#allocation2 + $0x114] sm:$0xff]
      %v2414 = vld [vmem:[#allocation2 + $0x11c] sm:$0xff]
      %v2415 = vld [vmem:[#allocation2 + $0x124] sm:$0xff]
      %v2416 = vld [vmem:[#allocation2 + $0x12c] sm:$0xff]
      %v2417 = vld [vmem:[#allocation2 + $0x134] sm:$0xff]
      %v2418 = vld [vmem:[#allocation2 + $0x13c] sm:$0xff]
      %v2419 = vld [vmem:[#allocation2 + $0x144] sm:$0xff]
      %v2420 = vld [vmem:[#allocation2 + $0x14c] sm:$0xff]
      %v2421 = vld [vmem:[#allocation2 + $0x154] sm:$0xff]
      %v2422 = vld [vmem:[#allocation2 + $0x15c] sm:$0xff]
      %2423 = vst.msk [vmem:[#allocation3] sm:$0xff] %vm437, %v2383
      %2424 = vst.msk [vmem:[#allocation3 + $0x8] sm:$0xff] %vm437, %v2384
      %2425 = vst.msk [vmem:[#allocation3 + $0x10] sm:$0xff] %vm437, %v2385
      %2426 = vst.msk [vmem:[#allocation3 + $0x18] sm:$0xff] %vm437, %v2386
      %2427 = vst.msk [vmem:[#allocation3 + $0x20] sm:$0xff] %vm437, %v2387
      %2428 = vst.msk [vmem:[#allocation3 + $0x28] sm:$0xff] %vm437, %v2388
      %2429 = vst.msk [vmem:[#allocation3 + $0x30] sm:$0xff] %vm437, %v2389
      %2430 = vst.msk [vmem:[#allocation3 + $0x38] sm:$0xff] %vm437, %v2390
      %2431 = vst.msk [vmem:[#allocation3 + $0x40] sm:$0xff] %vm437, %v2391
      %2432 = vst.msk [vmem:[#allocation3 + $0x48] sm:$0xff] %vm437, %v2392
      %2433 = vst.msk [vmem:[#allocation3 + $0x50] sm:$0xff] %vm437, %v2393
      %2434 = vst.msk [vmem:[#allocation3 + $0x58] sm:$0xff] %vm437, %v2394
      %2435 = vst.msk [vmem:[#allocation3 + $0x60] sm:$0xff] %vm437, %v2395
      %2436 = vst.msk [vmem:[#allocation3 + $0x68] sm:$0xff] %vm437, %v2396
      %2437 = vst.msk [vmem:[#allocation3 + $0x70] sm:$0xff] %vm437, %v2397
      %2438 = vst.msk [vmem:[#allocation3 + $0x78] sm:$0xff] %vm437, %v2398
      %2439 = vst.msk [vmem:[#allocation3 + $0x80] sm:$0xff] %vm437, %v2399
      %2440 = vst.msk [vmem:[#allocation3 + $0x88] sm:$0xff] %vm437, %v2400
      %2441 = vst.msk [vmem:[#allocation3 + $0x90] sm:$0xff] %vm437, %v2401
      %2442 = vst.msk [vmem:[#allocation3 + $0x98] sm:$0xff] %vm437, %v2402
      %2443 = vst.msk [vmem:[#allocation3 + $0xa0] sm:$0xff] %vm437, %v2403
      %2444 = vst.msk [vmem:[#allocation3 + $0xa8] sm:$0xff] %vm437, %v2404
      %2445 = vst.msk [vmem:[#allocation3 + $0xb0] sm:$0xff] %vm437, %v2405
      %2446 = vst.msk [vmem:[#allocation3 + $0xb8] sm:$0xff] %vm437, %v2406
      %2447 = vst.msk [vmem:[#allocation3 + $0xc0] sm:$0xff] %vm437, %v2407
      %2448 = vst.msk [vmem:[#allocation3 + $0xc8] sm:$0xff] %vm437, %v2408
      %2449 = vst.msk [vmem:[#allocation3 + $0xd0] sm:$0xff] %vm437, %v2409
      %2450 = vst.msk [vmem:[#allocation3 + $0xd8] sm:$0xff] %vm437, %v2410
      %2451 = vst.msk [vmem:[#allocation3 + $0xe0] sm:$0xff] %vm437, %v2411
      %2452 = vst.msk [vmem:[#allocation3 + $0xe8] sm:$0xff] %vm437, %v2412
      %2453 = vst.msk [vmem:[#allocation3 + $0xf0] sm:$0xff] %vm437, %v2413
      %2454 = vst.msk [vmem:[#allocation3 + $0xf8] sm:$0xff] %vm437, %v2414
      %2455 = vst.msk [vmem:[#allocation3 + $0x100] sm:$0xff] %vm437, %v2415
      %2456 = vst.msk [vmem:[#allocation3 + $0x108] sm:$0xff] %vm437, %v2416
      %2457 = vst.msk [vmem:[#allocation3 + $0x110] sm:$0xff] %vm437, %v2417
      %2458 = vst.msk [vmem:[#allocation3 + $0x118] sm:$0xff] %vm437, %v2418
      %2459 = vst.msk [vmem:[#allocation3 + $0x120] sm:$0xff] %vm437, %v2419
      %2460 = vst.msk [vmem:[#allocation3 + $0x128] sm:$0xff] %vm437, %v2420
      %2461 = vst.msk [vmem:[#allocation3 + $0x130] sm:$0xff] %vm437, %v2421
      %2462 = vst.msk [vmem:[#allocation3 + $0x138] sm:$0xff] %vm437, %v2422
      %v2463 = vld [vmem:[#allocation2 + $0x25] sm:$0xff]
      %v2464 = vld [vmem:[#allocation2 + $0x2d] sm:$0xff]
      %v2465 = vld [vmem:[#allocation2 + $0x35] sm:$0xff]
      %v2466 = vld [vmem:[#allocation2 + $0x3d] sm:$0xff]
      %v2467 = vld [vmem:[#allocation2 + $0x45] sm:$0xff]
      %v2468 = vld [vmem:[#allocation2 + $0x4d] sm:$0xff]
      %v2469 = vld [vmem:[#allocation2 + $0x55] sm:$0xff]
      %v2470 = vld [vmem:[#allocation2 + $0x5d] sm:$0xff]
      %v2471 = vld [vmem:[#allocation2 + $0x65] sm:$0xff]
      %v2472 = vld [vmem:[#allocation2 + $0x6d] sm:$0xff]
      %v2473 = vld [vmem:[#allocation2 + $0x75] sm:$0xff]
      %v2474 = vld [vmem:[#allocation2 + $0x7d] sm:$0xff]
      %v2475 = vld [vmem:[#allocation2 + $0x85] sm:$0xff]
      %v2476 = vld [vmem:[#allocation2 + $0x8d] sm:$0xff]
      %v2477 = vld [vmem:[#allocation2 + $0x95] sm:$0xff]
      %v2478 = vld [vmem:[#allocation2 + $0x9d] sm:$0xff]
      %v2479 = vld [vmem:[#allocation2 + $0xa5] sm:$0xff]
      %v2480 = vld [vmem:[#allocation2 + $0xad] sm:$0xff]
      %v2481 = vld [vmem:[#allocation2 + $0xb5] sm:$0xff]
      %v2482 = vld [vmem:[#allocation2 + $0xbd] sm:$0xff]
      %v2483 = vld [vmem:[#allocation2 + $0xc5] sm:$0xff]
      %v2484 = vld [vmem:[#allocation2 + $0xcd] sm:$0xff]
      %v2485 = vld [vmem:[#allocation2 + $0xd5] sm:$0xff]
      %v2486 = vld [vmem:[#allocation2 + $0xdd] sm:$0xff]
      %v2487 = vld [vmem:[#allocation2 + $0xe5] sm:$0xff]
      %v2488 = vld [vmem:[#allocation2 + $0xed] sm:$0xff]
      %v2489 = vld [vmem:[#allocation2 + $0xf5] sm:$0xff]
      %v2490 = vld [vmem:[#allocation2 + $0xfd] sm:$0xff]
      %v2491 = vld [vmem:[#allocation2 + $0x105] sm:$0xff]
      %v2492 = vld [vmem:[#allocation2 + $0x10d] sm:$0xff]
      %v2493 = vld [vmem:[#allocation2 + $0x115] sm:$0xff]
      %v2494 = vld [vmem:[#allocation2 + $0x11d] sm:$0xff]
      %v2495 = vld [vmem:[#allocation2 + $0x125] sm:$0xff]
      %v2496 = vld [vmem:[#allocation2 + $0x12d] sm:$0xff]
      %v2497 = vld [vmem:[#allocation2 + $0x135] sm:$0xff]
      %v2498 = vld [vmem:[#allocation2 + $0x13d] sm:$0xff]
      %v2499 = vld [vmem:[#allocation2 + $0x145] sm:$0xff]
      %v2500 = vld [vmem:[#allocation2 + $0x14d] sm:$0xff]
      %v2501 = vld [vmem:[#allocation2 + $0x155] sm:$0xff]
      %v2502 = vld [vmem:[#allocation2 + $0x15d] sm:$0xff]
      %2543 = vrot.lane.b32.xlu0 %v2463, 4
      %v2544 = vpop.permute.xlu0 %2543
      %2545 = vrot.lane.b32.xlu0 %v2464, 4
      %v2546 = vpop.permute.xlu0 %2545
      %2547 = vrot.lane.b32.xlu0 %v2465, 4
      %v2548 = vpop.permute.xlu0 %2547
      %2549 = vrot.lane.b32.xlu0 %v2466, 4
      %v2550 = vpop.permute.xlu0 %2549
      %2551 = vrot.lane.b32.xlu0 %v2467, 4
      %v2552 = vpop.permute.xlu0 %2551
      %2553 = vrot.lane.b32.xlu0 %v2468, 4
      %v2554 = vpop.permute.xlu0 %2553
      %2555 = vrot.lane.b32.xlu0 %v2469, 4
      %v2556 = vpop.permute.xlu0 %2555
      %2557 = vrot.lane.b32.xlu0 %v2470, 4
      %v2558 = vpop.permute.xlu0 %2557
      %2559 = vrot.lane.b32.xlu0 %v2471, 4
      %v2560 = vpop.permute.xlu0 %2559
      %2561 = vrot.lane.b32.xlu0 %v2472, 4
      %v2562 = vpop.permute.xlu0 %2561
      %2563 = vrot.lane.b32.xlu0 %v2473, 4
      %v2564 = vpop.permute.xlu0 %2563
      %2565 = vrot.lane.b32.xlu0 %v2474, 4
      %v2566 = vpop.permute.xlu0 %2565
      %2567 = vrot.lane.b32.xlu0 %v2475, 4
      %v2568 = vpop.permute.xlu0 %2567
      %2569 = vrot.lane.b32.xlu0 %v2476, 4
      %v2570 = vpop.permute.xlu0 %2569
      %2571 = vrot.lane.b32.xlu0 %v2477, 4
      %v2572 = vpop.permute.xlu0 %2571
      %2573 = vrot.lane.b32.xlu0 %v2478, 4
      %v2574 = vpop.permute.xlu0 %2573
      %2575 = vrot.lane.b32.xlu0 %v2479, 4
      %v2576 = vpop.permute.xlu0 %2575
      %2577 = vrot.lane.b32.xlu0 %v2480, 4
      %v2578 = vpop.permute.xlu0 %2577
      %2579 = vrot.lane.b32.xlu0 %v2481, 4
      %v2580 = vpop.permute.xlu0 %2579
      %2581 = vrot.lane.b32.xlu0 %v2482, 4
      %v2582 = vpop.permute.xlu0 %2581
      %2583 = vrot.lane.b32.xlu0 %v2483, 4
      %v2584 = vpop.permute.xlu0 %2583
      %2585 = vrot.lane.b32.xlu0 %v2484, 4
      %v2586 = vpop.permute.xlu0 %2585
      %2587 = vrot.lane.b32.xlu0 %v2485, 4
      %v2588 = vpop.permute.xlu0 %2587
      %2589 = vrot.lane.b32.xlu0 %v2486, 4
      %v2590 = vpop.permute.xlu0 %2589
      %2591 = vrot.lane.b32.xlu0 %v2487, 4
      %v2592 = vpop.permute.xlu0 %2591
      %2593 = vrot.lane.b32.xlu0 %v2488, 4
      %v2594 = vpop.permute.xlu0 %2593
      %2595 = vrot.lane.b32.xlu0 %v2489, 4
      %v2596 = vpop.permute.xlu0 %2595
      %2597 = vrot.lane.b32.xlu0 %v2490, 4
      %v2598 = vpop.permute.xlu0 %2597
      %2599 = vrot.lane.b32.xlu0 %v2491, 4
      %v2600 = vpop.permute.xlu0 %2599
      %2601 = vrot.lane.b32.xlu0 %v2492, 4
      %v2602 = vpop.permute.xlu0 %2601
      %2603 = vrot.lane.b32.xlu0 %v2493, 4
      %v2604 = vpop.permute.xlu0 %2603
      %2605 = vrot.lane.b32.xlu0 %v2494, 4
      %v2606 = vpop.permute.xlu0 %2605
      %2607 = vrot.lane.b32.xlu0 %v2495, 4
      %v2608 = vpop.permute.xlu0 %2607
      %2609 = vrot.lane.b32.xlu0 %v2496, 4
      %v2610 = vpop.permute.xlu0 %2609
      %2611 = vrot.lane.b32.xlu0 %v2497, 4
      %v2612 = vpop.permute.xlu0 %2611
      %2613 = vrot.lane.b32.xlu0 %v2498, 4
      %v2614 = vpop.permute.xlu0 %2613
      %2615 = vrot.lane.b32.xlu0 %v2499, 4
      %v2616 = vpop.permute.xlu0 %2615
      %2617 = vrot.lane.b32.xlu0 %v2500, 4
      %v2618 = vpop.permute.xlu0 %2617
      %2619 = vrot.lane.b32.xlu0 %v2501, 4
      %v2620 = vpop.permute.xlu0 %2619
      %2621 = vrot.lane.b32.xlu0 %v2502, 4
      %v2622 = vpop.permute.xlu0 %2621
      %2663 = vst.msk [vmem:[#allocation3] sm:$0xff] %vm678, %v2544
      %2664 = vst.msk [vmem:[#allocation3 + $0x8] sm:$0xff] %vm678, %v2546
      %2665 = vst.msk [vmem:[#allocation3 + $0x10] sm:$0xff] %vm678, %v2548
      %2666 = vst.msk [vmem:[#allocation3 + $0x18] sm:$0xff] %vm678, %v2550
      %2667 = vst.msk [vmem:[#allocation3 + $0x20] sm:$0xff] %vm678, %v2552
      %2668 = vst.msk [vmem:[#allocation3 + $0x28] sm:$0xff] %vm678, %v2554
      %2669 = vst.msk [vmem:[#allocation3 + $0x30] sm:$0xff] %vm678, %v2556
      %2670 = vst.msk [vmem:[#allocation3 + $0x38] sm:$0xff] %vm678, %v2558
      %2671 = vst.msk [vmem:[#allocation3 + $0x40] sm:$0xff] %vm678, %v2560
      %2672 = vst.msk [vmem:[#allocation3 + $0x48] sm:$0xff] %vm678, %v2562
      %2673 = vst.msk [vmem:[#allocation3 + $0x50] sm:$0xff] %vm678, %v2564
      %2674 = vst.msk [vmem:[#allocation3 + $0x58] sm:$0xff] %vm678, %v2566
      %2675 = vst.msk [vmem:[#allocation3 + $0x60] sm:$0xff] %vm678, %v2568
      %2676 = vst.msk [vmem:[#allocation3 + $0x68] sm:$0xff] %vm678, %v2570
      %2677 = vst.msk [vmem:[#allocation3 + $0x70] sm:$0xff] %vm678, %v2572
      %2678 = vst.msk [vmem:[#allocation3 + $0x78] sm:$0xff] %vm678, %v2574
      %2679 = vst.msk [vmem:[#allocation3 + $0x80] sm:$0xff] %vm678, %v2576
      %2680 = vst.msk [vmem:[#allocation3 + $0x88] sm:$0xff] %vm678, %v2578
      %2681 = vst.msk [vmem:[#allocation3 + $0x90] sm:$0xff] %vm678, %v2580
      %2682 = vst.msk [vmem:[#allocation3 + $0x98] sm:$0xff] %vm678, %v2582
      %2683 = vst.msk [vmem:[#allocation3 + $0xa0] sm:$0xff] %vm678, %v2584
      %2684 = vst.msk [vmem:[#allocation3 + $0xa8] sm:$0xff] %vm678, %v2586
      %2685 = vst.msk [vmem:[#allocation3 + $0xb0] sm:$0xff] %vm678, %v2588
      %2686 = vst.msk [vmem:[#allocation3 + $0xb8] sm:$0xff] %vm678, %v2590
      %2687 = vst.msk [vmem:[#allocation3 + $0xc0] sm:$0xff] %vm678, %v2592
      %2688 = vst.msk [vmem:[#allocation3 + $0xc8] sm:$0xff] %vm678, %v2594
      %2689 = vst.msk [vmem:[#allocation3 + $0xd0] sm:$0xff] %vm678, %v2596
      %2690 = vst.msk [vmem:[#allocation3 + $0xd8] sm:$0xff] %vm678, %v2598
      %2691 = vst.msk [vmem:[#allocation3 + $0xe0] sm:$0xff] %vm678, %v2600
      %2692 = vst.msk [vmem:[#allocation3 + $0xe8] sm:$0xff] %vm678, %v2602
      %2693 = vst.msk [vmem:[#allocation3 + $0xf0] sm:$0xff] %vm678, %v2604
      %2694 = vst.msk [vmem:[#allocation3 + $0xf8] sm:$0xff] %vm678, %v2606
      %2695 = vst.msk [vmem:[#allocation3 + $0x100] sm:$0xff] %vm678, %v2608
      %2696 = vst.msk [vmem:[#allocation3 + $0x108] sm:$0xff] %vm678, %v2610
      %2697 = vst.msk [vmem:[#allocation3 + $0x110] sm:$0xff] %vm678, %v2612
      %2698 = vst.msk [vmem:[#allocation3 + $0x118] sm:$0xff] %vm678, %v2614
      %2699 = vst.msk [vmem:[#allocation3 + $0x120] sm:$0xff] %vm678, %v2616
      %2700 = vst.msk [vmem:[#allocation3 + $0x128] sm:$0xff] %vm678, %v2618
      %2701 = vst.msk [vmem:[#allocation3 + $0x130] sm:$0xff] %vm678, %v2620
      %2702 = vst.msk [vmem:[#allocation3 + $0x138] sm:$0xff] %vm678, %v2622
      %v2703 = vld [vmem:[#allocation2 + $0x26] sm:$0xff]
      %v2704 = vld [vmem:[#allocation2 + $0x2e] sm:$0xff]
      %v2705 = vld [vmem:[#allocation2 + $0x36] sm:$0xff]
      %v2706 = vld [vmem:[#allocation2 + $0x3e] sm:$0xff]
      %v2707 = vld [vmem:[#allocation2 + $0x46] sm:$0xff]
      %v2708 = vld [vmem:[#allocation2 + $0x4e] sm:$0xff]
      %v2709 = vld [vmem:[#allocation2 + $0x56] sm:$0xff]
      %v2710 = vld [vmem:[#allocation2 + $0x5e] sm:$0xff]
      %v2711 = vld [vmem:[#allocation2 + $0x66] sm:$0xff]
      %v2712 = vld [vmem:[#allocation2 + $0x6e] sm:$0xff]
      %v2713 = vld [vmem:[#allocation2 + $0x76] sm:$0xff]
      %v2714 = vld [vmem:[#allocation2 + $0x7e] sm:$0xff]
      %v2715 = vld [vmem:[#allocation2 + $0x86] sm:$0xff]
      %v2716 = vld [vmem:[#allocation2 + $0x8e] sm:$0xff]
      %v2717 = vld [vmem:[#allocation2 + $0x96] sm:$0xff]
      %v2718 = vld [vmem:[#allocation2 + $0x9e] sm:$0xff]
      %v2719 = vld [vmem:[#allocation2 + $0xa6] sm:$0xff]
      %v2720 = vld [vmem:[#allocation2 + $0xae] sm:$0xff]
      %v2721 = vld [vmem:[#allocation2 + $0xb6] sm:$0xff]
      %v2722 = vld [vmem:[#allocation2 + $0xbe] sm:$0xff]
      %v2723 = vld [vmem:[#allocation2 + $0xc6] sm:$0xff]
      %v2724 = vld [vmem:[#allocation2 + $0xce] sm:$0xff]
      %v2725 = vld [vmem:[#allocation2 + $0xd6] sm:$0xff]
      %v2726 = vld [vmem:[#allocation2 + $0xde] sm:$0xff]
      %v2727 = vld [vmem:[#allocation2 + $0xe6] sm:$0xff]
      %v2728 = vld [vmem:[#allocation2 + $0xee] sm:$0xff]
      %v2729 = vld [vmem:[#allocation2 + $0xf6] sm:$0xff]
      %v2730 = vld [vmem:[#allocation2 + $0xfe] sm:$0xff]
      %v2731 = vld [vmem:[#allocation2 + $0x106] sm:$0xff]
      %v2732 = vld [vmem:[#allocation2 + $0x10e] sm:$0xff]
      %v2733 = vld [vmem:[#allocation2 + $0x116] sm:$0xff]
      %v2734 = vld [vmem:[#allocation2 + $0x11e] sm:$0xff]
      %v2735 = vld [vmem:[#allocation2 + $0x126] sm:$0xff]
      %v2736 = vld [vmem:[#allocation2 + $0x12e] sm:$0xff]
      %v2737 = vld [vmem:[#allocation2 + $0x136] sm:$0xff]
      %v2738 = vld [vmem:[#allocation2 + $0x13e] sm:$0xff]
      %v2739 = vld [vmem:[#allocation2 + $0x146] sm:$0xff]
      %v2740 = vld [vmem:[#allocation2 + $0x14e] sm:$0xff]
      %v2741 = vld [vmem:[#allocation2 + $0x156] sm:$0xff]
      %v2742 = vld [vmem:[#allocation2 + $0x15e] sm:$0xff]
      %2783 = vrot.lane.b32.xlu0 %v2703, 8
      %v2784 = vpop.permute.xlu0 %2783
      %2785 = vrot.lane.b32.xlu0 %v2704, 8
      %v2786 = vpop.permute.xlu0 %2785
      %2787 = vrot.lane.b32.xlu0 %v2705, 8
      %v2788 = vpop.permute.xlu0 %2787
      %2789 = vrot.lane.b32.xlu0 %v2706, 8
      %v2790 = vpop.permute.xlu0 %2789
      %2791 = vrot.lane.b32.xlu0 %v2707, 8
      %v2792 = vpop.permute.xlu0 %2791
      %2793 = vrot.lane.b32.xlu0 %v2708, 8
      %v2794 = vpop.permute.xlu0 %2793
      %2795 = vrot.lane.b32.xlu0 %v2709, 8
      %v2796 = vpop.permute.xlu0 %2795
      %2797 = vrot.lane.b32.xlu0 %v2710, 8
      %v2798 = vpop.permute.xlu0 %2797
      %2799 = vrot.lane.b32.xlu0 %v2711, 8
      %v2800 = vpop.permute.xlu0 %2799
      %2801 = vrot.lane.b32.xlu0 %v2712, 8
      %v2802 = vpop.permute.xlu0 %2801
      %2803 = vrot.lane.b32.xlu0 %v2713, 8
      %v2804 = vpop.permute.xlu0 %2803
      %2805 = vrot.lane.b32.xlu0 %v2714, 8
      %v2806 = vpop.permute.xlu0 %2805
      %2807 = vrot.lane.b32.xlu0 %v2715, 8
      %v2808 = vpop.permute.xlu0 %2807
      %2809 = vrot.lane.b32.xlu0 %v2716, 8
      %v2810 = vpop.permute.xlu0 %2809
      %2811 = vrot.lane.b32.xlu0 %v2717, 8
      %v2812 = vpop.permute.xlu0 %2811
      %2813 = vrot.lane.b32.xlu0 %v2718, 8
      %v2814 = vpop.permute.xlu0 %2813
      %2815 = vrot.lane.b32.xlu0 %v2719, 8
      %v2816 = vpop.permute.xlu0 %2815
      %2817 = vrot.lane.b32.xlu0 %v2720, 8
      %v2818 = vpop.permute.xlu0 %2817
      %2819 = vrot.lane.b32.xlu0 %v2721, 8
      %v2820 = vpop.permute.xlu0 %2819
      %2821 = vrot.lane.b32.xlu0 %v2722, 8
      %v2822 = vpop.permute.xlu0 %2821
      %2823 = vrot.lane.b32.xlu0 %v2723, 8
      %v2824 = vpop.permute.xlu0 %2823
      %2825 = vrot.lane.b32.xlu0 %v2724, 8
      %v2826 = vpop.permute.xlu0 %2825
      %2827 = vrot.lane.b32.xlu0 %v2725, 8
      %v2828 = vpop.permute.xlu0 %2827
      %2829 = vrot.lane.b32.xlu0 %v2726, 8
      %v2830 = vpop.permute.xlu0 %2829
      %2831 = vrot.lane.b32.xlu0 %v2727, 8
      %v2832 = vpop.permute.xlu0 %2831
      %2833 = vrot.lane.b32.xlu0 %v2728, 8
      %v2834 = vpop.permute.xlu0 %2833
      %2835 = vrot.lane.b32.xlu0 %v2729, 8
      %v2836 = vpop.permute.xlu0 %2835
      %2837 = vrot.lane.b32.xlu0 %v2730, 8
      %v2838 = vpop.permute.xlu0 %2837
      %2839 = vrot.lane.b32.xlu0 %v2731, 8
      %v2840 = vpop.permute.xlu0 %2839
      %2841 = vrot.lane.b32.xlu0 %v2732, 8
      %v2842 = vpop.permute.xlu0 %2841
      %2843 = vrot.lane.b32.xlu0 %v2733, 8
      %v2844 = vpop.permute.xlu0 %2843
      %2845 = vrot.lane.b32.xlu0 %v2734, 8
      %v2846 = vpop.permute.xlu0 %2845
      %2847 = vrot.lane.b32.xlu0 %v2735, 8
      %v2848 = vpop.permute.xlu0 %2847
      %2849 = vrot.lane.b32.xlu0 %v2736, 8
      %v2850 = vpop.permute.xlu0 %2849
      %2851 = vrot.lane.b32.xlu0 %v2737, 8
      %v2852 = vpop.permute.xlu0 %2851
      %2853 = vrot.lane.b32.xlu0 %v2738, 8
      %v2854 = vpop.permute.xlu0 %2853
      %2855 = vrot.lane.b32.xlu0 %v2739, 8
      %v2856 = vpop.permute.xlu0 %2855
      %2857 = vrot.lane.b32.xlu0 %v2740, 8
      %v2858 = vpop.permute.xlu0 %2857
      %2859 = vrot.lane.b32.xlu0 %v2741, 8
      %v2860 = vpop.permute.xlu0 %2859
      %2861 = vrot.lane.b32.xlu0 %v2742, 8
      %v2862 = vpop.permute.xlu0 %2861
      %2903 = vst.msk [vmem:[#allocation3] sm:$0xff] %vm919, %v2784
      %2904 = vst.msk [vmem:[#allocation3 + $0x8] sm:$0xff] %vm919, %v2786
      %2905 = vst.msk [vmem:[#allocation3 + $0x10] sm:$0xff] %vm919, %v2788
      %2906 = vst.msk [vmem:[#allocation3 + $0x18] sm:$0xff] %vm919, %v2790
      %2907 = vst.msk [vmem:[#allocation3 + $0x20] sm:$0xff] %vm919, %v2792
      %2908 = vst.msk [vmem:[#allocation3 + $0x28] sm:$0xff] %vm919, %v2794
      %2909 = vst.msk [vmem:[#allocation3 + $0x30] sm:$0xff] %vm919, %v2796
      %2910 = vst.msk [vmem:[#allocation3 + $0x38] sm:$0xff] %vm919, %v2798
      %2911 = vst.msk [vmem:[#allocation3 + $0x40] sm:$0xff] %vm919, %v2800
      %2912 = vst.msk [vmem:[#allocation3 + $0x48] sm:$0xff] %vm919, %v2802
      %2913 = vst.msk [vmem:[#allocation3 + $0x50] sm:$0xff] %vm919, %v2804
      %2914 = vst.msk [vmem:[#allocation3 + $0x58] sm:$0xff] %vm919, %v2806
      %2915 = vst.msk [vmem:[#allocation3 + $0x60] sm:$0xff] %vm919, %v2808
      %2916 = vst.msk [vmem:[#allocation3 + $0x68] sm:$0xff] %vm919, %v2810
      %2917 = vst.msk [vmem:[#allocation3 + $0x70] sm:$0xff] %vm919, %v2812
      %2918 = vst.msk [vmem:[#allocation3 + $0x78] sm:$0xff] %vm919, %v2814
      %2919 = vst.msk [vmem:[#allocation3 + $0x80] sm:$0xff] %vm919, %v2816
      %2920 = vst.msk [vmem:[#allocation3 + $0x88] sm:$0xff] %vm919, %v2818
      %2921 = vst.msk [vmem:[#allocation3 + $0x90] sm:$0xff] %vm919, %v2820
      %2922 = vst.msk [vmem:[#allocation3 + $0x98] sm:$0xff] %vm919, %v2822
      %2923 = vst.msk [vmem:[#allocation3 + $0xa0] sm:$0xff] %vm919, %v2824
      %2924 = vst.msk [vmem:[#allocation3 + $0xa8] sm:$0xff] %vm919, %v2826
      %2925 = vst.msk [vmem:[#allocation3 + $0xb0] sm:$0xff] %vm919, %v2828
      %2926 = vst.msk [vmem:[#allocation3 + $0xb8] sm:$0xff] %vm919, %v2830
      %2927 = vst.msk [vmem:[#allocation3 + $0xc0] sm:$0xff] %vm919, %v2832
      %2928 = vst.msk [vmem:[#allocation3 + $0xc8] sm:$0xff] %vm919, %v2834
      %2929 = vst.msk [vmem:[#allocation3 + $0xd0] sm:$0xff] %vm919, %v2836
      %2930 = vst.msk [vmem:[#allocation3 + $0xd8] sm:$0xff] %vm919, %v2838
      %2931 = vst.msk [vmem:[#allocation3 + $0xe0] sm:$0xff] %vm919, %v2840
      %2932 = vst.msk [vmem:[#allocation3 + $0xe8] sm:$0xff] %vm919, %v2842
      %2933 = vst.msk [vmem:[#allocation3 + $0xf0] sm:$0xff] %vm919, %v2844
      %2934 = vst.msk [vmem:[#allocation3 + $0xf8] sm:$0xff] %vm919, %v2846
      %2935 = vst.msk [vmem:[#allocation3 + $0x100] sm:$0xff] %vm919, %v2848
      %2936 = vst.msk [vmem:[#allocation3 + $0x108] sm:$0xff] %vm919, %v2850
      %2937 = vst.msk [vmem:[#allocation3 + $0x110] sm:$0xff] %vm919, %v2852
      %2938 = vst.msk [vmem:[#allocation3 + $0x118] sm:$0xff] %vm919, %v2854
      %2939 = vst.msk [vmem:[#allocation3 + $0x120] sm:$0xff] %vm919, %v2856
      %2940 = vst.msk [vmem:[#allocation3 + $0x128] sm:$0xff] %vm919, %v2858
      %2941 = vst.msk [vmem:[#allocation3 + $0x130] sm:$0xff] %vm919, %v2860
      %2942 = vst.msk [vmem:[#allocation3 + $0x138] sm:$0xff] %vm919, %v2862
      %v2943 = vld [vmem:[#allocation3] sm:$0xff]
      %v2944 = vld [vmem:[#allocation3 + $0x8] sm:$0xff]
      %v2945 = vld [vmem:[#allocation3 + $0x10] sm:$0xff]
      %v2946 = vld [vmem:[#allocation3 + $0x18] sm:$0xff]
      %v2947 = vld [vmem:[#allocation3 + $0x20] sm:$0xff]
      %v2948 = vld [vmem:[#allocation3 + $0x28] sm:$0xff]
      %v2949 = vld [vmem:[#allocation3 + $0x30] sm:$0xff]
      %v2950 = vld [vmem:[#allocation3 + $0x38] sm:$0xff]
      %v2951 = vld [vmem:[#allocation3 + $0x40] sm:$0xff]
      %v2952 = vld [vmem:[#allocation3 + $0x48] sm:$0xff]
      %v2953 = vld [vmem:[#allocation3 + $0x50] sm:$0xff]
      %v2954 = vld [vmem:[#allocation3 + $0x58] sm:$0xff]
      %v2955 = vld [vmem:[#allocation3 + $0x60] sm:$0xff]
      %v2956 = vld [vmem:[#allocation3 + $0x68] sm:$0xff]
      %v2957 = vld [vmem:[#allocation3 + $0x70] sm:$0xff]
      %v2958 = vld [vmem:[#allocation3 + $0x78] sm:$0xff]
      %v2959 = vld [vmem:[#allocation3 + $0x80] sm:$0xff]
      %v2960 = vld [vmem:[#allocation3 + $0x88] sm:$0xff]
      %v2961 = vld [vmem:[#allocation3 + $0x90] sm:$0xff]
      %v2962 = vld [vmem:[#allocation3 + $0x98] sm:$0xff]
      %v2963 = vld [vmem:[#allocation3 + $0xa0] sm:$0xff]
      %v2964 = vld [vmem:[#allocation3 + $0xa8] sm:$0xff]
      %v2965 = vld [vmem:[#allocation3 + $0xb0] sm:$0xff]
      %v2966 = vld [vmem:[#allocation3 + $0xb8] sm:$0xff]
      %v2967 = vld [vmem:[#allocation3 + $0xc0] sm:$0xff]
      %v2968 = vld [vmem:[#allocation3 + $0xc8] sm:$0xff]
      %v2969 = vld [vmem:[#allocation3 + $0xd0] sm:$0xff]
      %v2970 = vld [vmem:[#allocation3 + $0xd8] sm:$0xff]
      %v2971 = vld [vmem:[#allocation3 + $0xe0] sm:$0xff]
      %v2972 = vld [vmem:[#allocation3 + $0xe8] sm:$0xff]
      %v2973 = vld [vmem:[#allocation3 + $0xf0] sm:$0xff]
      %v2974 = vld [vmem:[#allocation3 + $0xf8] sm:$0xff]
      %v2975 = vld [vmem:[#allocation3 + $0x100] sm:$0xff]
      %v2976 = vld [vmem:[#allocation3 + $0x108] sm:$0xff]
      %v2977 = vld [vmem:[#allocation3 + $0x110] sm:$0xff]
      %v2978 = vld [vmem:[#allocation3 + $0x118] sm:$0xff]
      %v2979 = vld [vmem:[#allocation3 + $0x120] sm:$0xff]
      %v2980 = vld [vmem:[#allocation3 + $0x128] sm:$0xff]
      %v2981 = vld [vmem:[#allocation3 + $0x130] sm:$0xff]
      %v2982 = vld [vmem:[#allocation3 + $0x138] sm:$0xff]
      %s2983 = scalar_lea.vmem %s2, 32
      %v2984 = vld [vmem:[%s2983] sm:$0xff]
      %v2985 = vld [vmem:[%s2983 + $0x8] sm:$0xf]
      %v2987 = vsel %vm1605, %v2943, 0
      %v2990 = vsel %vm1605, %v2944, 0
      %v2993 = vsel %vm1605, %v2945, 0
      %v2996 = vsel %vm1605, %v2946, 0
      %v2999 = vsel %vm1605, %v2947, 0
      %v3002 = vsel %vm1605, %v2948, 0
      %v3005 = vsel %vm1605, %v2949, 0
      %v3008 = vsel %vm1605, %v2950, 0
      %v3011 = vsel %vm1605, %v2951, 0
      %v3014 = vsel %vm1605, %v2952, 0
      %v3017 = vsel %vm1605, %v2953, 0
      %v3020 = vsel %vm1605, %v2954, 0
      %v3023 = vsel %vm1605, %v2955, 0
      %v3026 = vsel %vm1605, %v2956, 0
      %v3029 = vsel %vm1605, %v2957, 0
      %v3032 = vsel %vm1605, %v2958, 0
      %v3035 = vsel %vm1605, %v2959, 0
      %v3038 = vsel %vm1605, %v2960, 0
      %v3041 = vsel %vm1605, %v2961, 0
      %v3044 = vsel %vm1605, %v2962, 0
      %v3047 = vsel %vm1605, %v2963, 0
      %v3050 = vsel %vm1605, %v2964, 0
      %v3053 = vsel %vm1605, %v2965, 0
      %v3056 = vsel %vm1605, %v2966, 0
      %v3059 = vsel %vm1605, %v2967, 0
      %v3062 = vsel %vm1605, %v2968, 0
      %v3065 = vsel %vm1605, %v2969, 0
      %v3068 = vsel %vm1605, %v2970, 0
      %v3071 = vsel %vm1605, %v2971, 0
      %v3074 = vsel %vm1605, %v2972, 0
      %v3077 = vsel %vm1605, %v2973, 0
      %v3080 = vsel %vm1605, %v2974, 0
      %v3083 = vsel %vm1605, %v2975, 0
      %v3086 = vsel %vm1605, %v2976, 0
      %v3089 = vsel %vm1605, %v2977, 0
      %v3092 = vsel %vm1605, %v2978, 0
      %v3095 = vsel %vm1605, %v2979, 0
      %v3098 = vsel %vm1605, %v2980, 0
      %v3101 = vsel %vm1605, %v2981, 0
      %v3104 = vsel %vm1605, %v2982, 0
      %v3107 = vsel %vm1726, %v2985, 0
      %3109 = vmatprep.subr.mxu0 0.0
      %3110 = vmatpush1.msra.mxu0 0.0
      %3111 = vmatprep.subr.mxu0 0.0
      %3112 = vmatpush1.msra.mxu0 0.0
      %3113 = vmatprep.subr.mxu0 0.0
      %3114 = vmatpush1.msra.mxu0 0.0
      %3115 = vmatprep.subr.mxu0 0.0
      %3116 = vmatpush1.msra.mxu0 0.0
      %3117 = vmatprep.subr.mxu0 0.0
      %3118 = vmatpush1.msra.mxu0 0.0
      %3119 = vmatprep.subr.mxu0 0.0
      %3120 = vmatpush1.msra.mxu0 0.0
      %3121 = vmatprep.subr.mxu0 0.0
      %3122 = vmatpush1.msra.mxu0 0.0
      %3123 = vmatprep.subr.mxu0 0.0
      %3124 = vmatpush1.msra.mxu0 0.0
      %3125 = vmatprep.subr.mxu0 0.0
      %3126 = vmatpush1.msra.mxu0 0.0
      %3127 = vmatprep.subr.mxu0 0.0
      %3128 = vmatpush1.msra.mxu0 0.0
      %3129 = vmatprep.subr.mxu0 0.0
      %3130 = vmatpush1.msra.mxu0 0.0
      %3131 = vmatprep.subr.mxu0 0.0
      %3132 = vmatpush1.msra.mxu0 0.0
      %3133 = vmatprep.subr.mxu0 0.0
      %3134 = vmatpush1.msra.mxu0 0.0
      %3135 = vmatprep.subr.mxu0 0.0
      %3136 = vmatpush1.msra.mxu0 0.0
      %3137 = vmatprep.subr.mxu0 0.0
      %3138 = vmatpush1.msra.mxu0 %v3107
      %3139 = vmatprep.subr.mxu0 0.0
      %3140 = vmatpush1.msra.mxu0 %v2984
      %3141 = vmatprep.subr.mxu0 0.0
      %3142 = vmatpush2.msra.mxu0 0.0
      %3143 = vmatprep.subr.mxu0 0.0
      %3144 = vmatpush2.msra.mxu0 0.0
      %3145 = vmatprep.subr.mxu0 0.0
      %3146 = vmatpush2.msra.mxu0 0.0
      %3147 = vmatprep.subr.mxu0 0.0
      %3148 = vmatpush2.msra.mxu0 0.0
      %3149 = vmatprep.subr.mxu0 0.0
      %3150 = vmatpush2.msra.mxu0 0.0
      %3151 = vmatprep.subr.mxu0 0.0
      %3152 = vmatpush2.msra.mxu0 0.0
      %3153 = vmatprep.subr.mxu0 0.0
      %3154 = vmatpush2.msra.mxu0 0.0
      %3155 = vmatprep.subr.mxu0 0.0
      %3156 = vmatpush2.msra.mxu0 0.0
      %3157 = vmatprep.subr.mxu0 0.0
      %3158 = vmatpush2.msra.mxu0 0.0
      %3159 = vmatprep.subr.mxu0 0.0
      %3160 = vmatpush2.msra.mxu0 0.0
      %3161 = vmatprep.subr.mxu0 0.0
      %3162 = vmatpush2.msra.mxu0 0.0
      %3163 = vmatprep.subr.mxu0 0.0
      %3164 = vmatpush2.msra.mxu0 0.0
      %3165 = vmatprep.subr.mxu0 0.0
      %3166 = vmatpush2.msra.mxu0 0.0
      %3167 = vmatprep.subr.mxu0 0.0
      %3168 = vmatpush2.msra.mxu0 0.0
      %3169 = vmatprep.subr.mxu0 0.0
      %3170 = vmatpush2.msra.mxu0 0.0
      %3171 = vmatprep.subr.mxu0 0.0
      %3172 = vmatpush2.msra.mxu0 0.0
      %3173 = vmatprep.mubr.f32.mxu0 0.0
      %3174 = vmatmul.mubr.f32.gmra.mxu0 %v2987
      %v3175 = vpop.f32.mrf.mxu0
      %v3176 = vadd.f32 0.0, %v3175
      %v3177 = vpop.f32.mrf.mxu0
      %3178 = vmatprep.mubr.f32.mxu0 0.0
      %3179 = vmatmul.mubr.f32.gmra.mxu0 %v2990
      %v3180 = vpop.f32.mrf.mxu0
      %v3181 = vadd.f32 0.0, %v3180
      %v3182 = vpop.f32.mrf.mxu0
      %3183 = vmatprep.mubr.f32.mxu0 0.0
      %3184 = vmatmul.mubr.f32.gmra.mxu0 %v2993
      %v3185 = vpop.f32.mrf.mxu0
      %v3186 = vadd.f32 0.0, %v3185
      %v3187 = vpop.f32.mrf.mxu0
      %3188 = vmatprep.mubr.f32.mxu0 0.0
      %3189 = vmatmul.mubr.f32.gmra.mxu0 %v2996
      %v3190 = vpop.f32.mrf.mxu0
      %v3191 = vadd.f32 0.0, %v3190
      %v3192 = vpop.f32.mrf.mxu0
      %3193 = vmatprep.mubr.f32.mxu0 0.0
      %3194 = vmatmul.mubr.f32.gmra.mxu0 %v2999
      %v3195 = vpop.f32.mrf.mxu0
      %v3196 = vadd.f32 0.0, %v3195
      %v3197 = vpop.f32.mrf.mxu0
      %3198 = vmatprep.mubr.f32.mxu0 0.0
      %3199 = vmatmul.mubr.f32.gmra.mxu0 %v3002
      %v3200 = vpop.f32.mrf.mxu0
      %v3201 = vadd.f32 0.0, %v3200
      %v3202 = vpop.f32.mrf.mxu0
      %3203 = vmatprep.mubr.f32.mxu0 0.0
      %3204 = vmatmul.mubr.f32.gmra.mxu0 %v3005
      %v3205 = vpop.f32.mrf.mxu0
      %v3206 = vadd.f32 0.0, %v3205
      %v3207 = vpop.f32.mrf.mxu0
      %3208 = vmatprep.mubr.f32.mxu0 0.0
      %3209 = vmatmul.mubr.f32.gmra.mxu0 %v3008
      %v3210 = vpop.f32.mrf.mxu0
      %v3211 = vadd.f32 0.0, %v3210
      %v3212 = vpop.f32.mrf.mxu0
      %3213 = vmatprep.mubr.f32.mxu0 0.0
      %3214 = vmatmul.mubr.f32.gmra.mxu0 %v3011
      %v3215 = vpop.f32.mrf.mxu0
      %v3216 = vadd.f32 0.0, %v3215
      %v3217 = vpop.f32.mrf.mxu0
      %3218 = vmatprep.mubr.f32.mxu0 0.0
      %3219 = vmatmul.mubr.f32.gmra.mxu0 %v3014
      %v3220 = vpop.f32.mrf.mxu0
      %v3221 = vadd.f32 0.0, %v3220
      %v3222 = vpop.f32.mrf.mxu0
      %3223 = vmatprep.mubr.f32.mxu0 0.0
      %3224 = vmatmul.mubr.f32.gmra.mxu0 %v3017
      %v3225 = vpop.f32.mrf.mxu0
      %v3226 = vadd.f32 0.0, %v3225
      %v3227 = vpop.f32.mrf.mxu0
      %3228 = vmatprep.mubr.f32.mxu0 0.0
      %3229 = vmatmul.mubr.f32.gmra.mxu0 %v3020
      %v3230 = vpop.f32.mrf.mxu0
      %v3231 = vadd.f32 0.0, %v3230
      %v3232 = vpop.f32.mrf.mxu0
      %3233 = vmatprep.mubr.f32.mxu0 0.0
      %3234 = vmatmul.mubr.f32.gmra.mxu0 %v3023
      %v3235 = vpop.f32.mrf.mxu0
      %v3236 = vadd.f32 0.0, %v3235
      %v3237 = vpop.f32.mrf.mxu0
      %3238 = vmatprep.mubr.f32.mxu0 0.0
      %3239 = vmatmul.mubr.f32.gmra.mxu0 %v3026
      %v3240 = vpop.f32.mrf.mxu0
      %v3241 = vadd.f32 0.0, %v3240
      %v3242 = vpop.f32.mrf.mxu0
      %3243 = vmatprep.mubr.f32.mxu0 0.0
      %3244 = vmatmul.mubr.f32.gmra.mxu0 %v3029
      %v3245 = vpop.f32.mrf.mxu0
      %v3246 = vadd.f32 0.0, %v3245
      %v3247 = vpop.f32.mrf.mxu0
      %3248 = vmatprep.mubr.f32.mxu0 0.0
      %3249 = vmatmul.mubr.f32.gmra.mxu0 %v3032
      %v3250 = vpop.f32.mrf.mxu0
      %v3251 = vadd.f32 0.0, %v3250
      %v3252 = vpop.f32.mrf.mxu0
      %3253 = vmatprep.mubr.f32.mxu0 0.0
      %3254 = vmatmul.mubr.f32.gmra.mxu0 %v3035
      %v3255 = vpop.f32.mrf.mxu0
      %v3256 = vadd.f32 0.0, %v3255
      %v3257 = vpop.f32.mrf.mxu0
      %3258 = vmatprep.mubr.f32.mxu0 0.0
      %3259 = vmatmul.mubr.f32.gmra.mxu0 %v3038
      %v3260 = vpop.f32.mrf.mxu0
      %v3261 = vadd.f32 0.0, %v3260
      %v3262 = vpop.f32.mrf.mxu0
      %3263 = vmatprep.mubr.f32.mxu0 0.0
      %3264 = vmatmul.mubr.f32.gmra.mxu0 %v3041
      %v3265 = vpop.f32.mrf.mxu0
      %v3266 = vadd.f32 0.0, %v3265
      %v3267 = vpop.f32.mrf.mxu0
      %3268 = vmatprep.mubr.f32.mxu0 0.0
      %3269 = vmatmul.mubr.f32.gmra.mxu0 %v3044
      %v3270 = vpop.f32.mrf.mxu0
      %v3271 = vadd.f32 0.0, %v3270
      %v3272 = vpop.f32.mrf.mxu0
      %3273 = vmatprep.mubr.f32.mxu0 0.0
      %3274 = vmatmul.mubr.f32.gmra.mxu0 %v3047
      %v3275 = vpop.f32.mrf.mxu0
      %v3276 = vadd.f32 0.0, %v3275
      %v3277 = vpop.f32.mrf.mxu0
      %3278 = vmatprep.mubr.f32.mxu0 0.0
      %3279 = vmatmul.mubr.f32.gmra.mxu0 %v3050
      %v3280 = vpop.f32.mrf.mxu0
      %v3281 = vadd.f32 0.0, %v3280
      %v3282 = vpop.f32.mrf.mxu0
      %3283 = vmatprep.mubr.f32.mxu0 0.0
      %3284 = vmatmul.mubr.f32.gmra.mxu0 %v3053
      %v3285 = vpop.f32.mrf.mxu0
      %v3286 = vadd.f32 0.0, %v3285
      %v3287 = vpop.f32.mrf.mxu0
      %3288 = vmatprep.mubr.f32.mxu0 0.0
      %3289 = vmatmul.mubr.f32.gmra.mxu0 %v3056
      %v3290 = vpop.f32.mrf.mxu0
      %v3291 = vadd.f32 0.0, %v3290
      %v3292 = vpop.f32.mrf.mxu0
      %3293 = vmatprep.mubr.f32.mxu0 0.0
      %3294 = vmatmul.mubr.f32.gmra.mxu0 %v3059
      %v3295 = vpop.f32.mrf.mxu0
      %v3296 = vadd.f32 0.0, %v3295
      %v3297 = vpop.f32.mrf.mxu0
      %3298 = vmatprep.mubr.f32.mxu0 0.0
      %3299 = vmatmul.mubr.f32.gmra.mxu0 %v3062
      %v3300 = vpop.f32.mrf.mxu0
      %v3301 = vadd.f32 0.0, %v3300
      %v3302 = vpop.f32.mrf.mxu0
      %3303 = vmatprep.mubr.f32.mxu0 0.0
      %3304 = vmatmul.mubr.f32.gmra.mxu0 %v3065
      %v3305 = vpop.f32.mrf.mxu0
      %v3306 = vadd.f32 0.0, %v3305
      %v3307 = vpop.f32.mrf.mxu0
      %3308 = vmatprep.mubr.f32.mxu0 0.0
      %3309 = vmatmul.mubr.f32.gmra.mxu0 %v3068
      %v3310 = vpop.f32.mrf.mxu0
      %v3311 = vadd.f32 0.0, %v3310
      %v3312 = vpop.f32.mrf.mxu0
      %3313 = vmatprep.mubr.f32.mxu0 0.0
      %3314 = vmatmul.mubr.f32.gmra.mxu0 %v3071
      %v3315 = vpop.f32.mrf.mxu0
      %v3316 = vadd.f32 0.0, %v3315
      %v3317 = vpop.f32.mrf.mxu0
      %3318 = vmatprep.mubr.f32.mxu0 0.0
      %3319 = vmatmul.mubr.f32.gmra.mxu0 %v3074
      %v3320 = vpop.f32.mrf.mxu0
      %v3321 = vadd.f32 0.0, %v3320
      %v3322 = vpop.f32.mrf.mxu0
      %3323 = vmatprep.mubr.f32.mxu0 0.0
      %3324 = vmatmul.mubr.f32.gmra.mxu0 %v3077
      %v3325 = vpop.f32.mrf.mxu0
      %v3326 = vadd.f32 0.0, %v3325
      %v3327 = vpop.f32.mrf.mxu0
      %3328 = vmatprep.mubr.f32.mxu0 0.0
      %3329 = vmatmul.mubr.f32.gmra.mxu0 %v3080
      %v3330 = vpop.f32.mrf.mxu0
      %v3331 = vadd.f32 0.0, %v3330
      %v3332 = vpop.f32.mrf.mxu0
      %3333 = vmatprep.mubr.f32.mxu0 0.0
      %3334 = vmatmul.mubr.f32.gmra.mxu0 %v3083
      %v3335 = vpop.f32.mrf.mxu0
      %v3336 = vadd.f32 0.0, %v3335
      %v3337 = vpop.f32.mrf.mxu0
      %3338 = vmatprep.mubr.f32.mxu0 0.0
      %3339 = vmatmul.mubr.f32.gmra.mxu0 %v3086
      %v3340 = vpop.f32.mrf.mxu0
      %v3341 = vadd.f32 0.0, %v3340
      %v3342 = vpop.f32.mrf.mxu0
      %3343 = vmatprep.mubr.f32.mxu0 0.0
      %3344 = vmatmul.mubr.f32.gmra.mxu0 %v3089
      %v3345 = vpop.f32.mrf.mxu0
      %v3346 = vadd.f32 0.0, %v3345
      %v3347 = vpop.f32.mrf.mxu0
      %3348 = vmatprep.mubr.f32.mxu0 0.0
      %3349 = vmatmul.mubr.f32.gmra.mxu0 %v3092
      %v3350 = vpop.f32.mrf.mxu0
      %v3351 = vadd.f32 0.0, %v3350
      %v3352 = vpop.f32.mrf.mxu0
      %3353 = vmatprep.mubr.f32.mxu0 0.0
      %3354 = vmatmul.mubr.f32.gmra.mxu0 %v3095
      %v3355 = vpop.f32.mrf.mxu0
      %v3356 = vadd.f32 0.0, %v3355
      %v3357 = vpop.f32.mrf.mxu0
      %3358 = vmatprep.mubr.f32.mxu0 0.0
      %3359 = vmatmul.mubr.f32.gmra.mxu0 %v3098
      %v3360 = vpop.f32.mrf.mxu0
      %v3361 = vadd.f32 0.0, %v3360
      %v3362 = vpop.f32.mrf.mxu0
      %3363 = vmatprep.mubr.f32.mxu0 0.0
      %3364 = vmatmul.mubr.f32.gmra.mxu0 %v3101
      %v3365 = vpop.f32.mrf.mxu0
      %v3366 = vadd.f32 0.0, %v3365
      %v3367 = vpop.f32.mrf.mxu0
      %3368 = vmatprep.mubr.f32.mxu0 0.0
      %3369 = vmatmul.mubr.f32.gmra.mxu0 %v3104
      %v3370 = vpop.f32.mrf.mxu0
      %v3371 = vadd.f32 0.0, %v3370
      %v3372 = vpop.f32.mrf.mxu0
      %3373 = vdwg.mxu0
      %v3374 = vadd.f32 %v2185, %v3176
      %v3375 = vadd.f32 %v2190, %v3181
      %v3376 = vadd.f32 %v2195, %v3186
      %v3377 = vadd.f32 %v2200, %v3191
      %v3378 = vadd.f32 %v2205, %v3196
      %v3379 = vadd.f32 %v2210, %v3201
      %v3380 = vadd.f32 %v2215, %v3206
      %v3381 = vadd.f32 %v2220, %v3211
      %v3382 = vadd.f32 %v2225, %v3216
      %v3383 = vadd.f32 %v2230, %v3221
      %v3384 = vadd.f32 %v2235, %v3226
      %v3385 = vadd.f32 %v2240, %v3231
      %v3386 = vadd.f32 %v2245, %v3236
      %v3387 = vadd.f32 %v2250, %v3241
      %v3388 = vadd.f32 %v2255, %v3246
      %v3389 = vadd.f32 %v2260, %v3251
      %v3390 = vadd.f32 %v2265, %v3256
      %v3391 = vadd.f32 %v2270, %v3261
      %v3392 = vadd.f32 %v2275, %v3266
      %v3393 = vadd.f32 %v2280, %v3271
      %v3394 = vadd.f32 %v2285, %v3276
      %v3395 = vadd.f32 %v2290, %v3281
      %v3396 = vadd.f32 %v2295, %v3286
      %v3397 = vadd.f32 %v2300, %v3291
      %v3398 = vadd.f32 %v2305, %v3296
      %v3399 = vadd.f32 %v2310, %v3301
      %v3400 = vadd.f32 %v2315, %v3306
      %v3401 = vadd.f32 %v2320, %v3311
      %v3402 = vadd.f32 %v2325, %v3316
      %v3403 = vadd.f32 %v2330, %v3321
      %v3404 = vadd.f32 %v2335, %v3326
      %v3405 = vadd.f32 %v2340, %v3331
      %v3406 = vadd.f32 %v2345, %v3336
      %v3407 = vadd.f32 %v2350, %v3341
      %v3408 = vadd.f32 %v2355, %v3346
      %v3409 = vadd.f32 %v2360, %v3351
      %v3410 = vadd.f32 %v2365, %v3356
      %v3411 = vadd.f32 %v2370, %v3361
      %v3412 = vadd.f32 %v2375, %v3366
      %v3413 = vadd.f32 %v2380, %v3371
      %v3414 = vld [vmem:[%s3] sm:$0x1]
      %v3416 = vlaneseq
      %v3417 = vshrl.u32 %v3416, 7
      %v3418 = vsub.s32 0, %v3417
      %v3419 = vrot.slane %v3414, %v3418
      %v3421 = vadd.f32 %v3374, %v3419
      %v3422 = vadd.f32 %v3375, %v3419
      %v3423 = vadd.f32 %v3376, %v3419
      %v3424 = vadd.f32 %v3377, %v3419
      %v3425 = vadd.f32 %v3378, %v3419
      %v3426 = vadd.f32 %v3379, %v3419
      %v3427 = vadd.f32 %v3380, %v3419
      %v3428 = vadd.f32 %v3381, %v3419
      %v3429 = vadd.f32 %v3382, %v3419
      %v3430 = vadd.f32 %v3383, %v3419
      %v3431 = vadd.f32 %v3384, %v3419
      %v3432 = vadd.f32 %v3385, %v3419
      %v3433 = vadd.f32 %v3386, %v3419
      %v3434 = vadd.f32 %v3387, %v3419
      %v3435 = vadd.f32 %v3388, %v3419
      %v3436 = vadd.f32 %v3389, %v3419
      %v3437 = vadd.f32 %v3390, %v3419
      %v3438 = vadd.f32 %v3391, %v3419
      %v3439 = vadd.f32 %v3392, %v3419
      %v3440 = vadd.f32 %v3393, %v3419
      %v3441 = vadd.f32 %v3394, %v3419
      %v3442 = vadd.f32 %v3395, %v3419
      %v3443 = vadd.f32 %v3396, %v3419
      %v3444 = vadd.f32 %v3397, %v3419
      %v3445 = vadd.f32 %v3398, %v3419
      %v3446 = vadd.f32 %v3399, %v3419
      %v3447 = vadd.f32 %v3400, %v3419
      %v3448 = vadd.f32 %v3401, %v3419
      %v3449 = vadd.f32 %v3402, %v3419
      %v3450 = vadd.f32 %v3403, %v3419
      %v3451 = vadd.f32 %v3404, %v3419
      %v3452 = vadd.f32 %v3405, %v3419
      %v3453 = vadd.f32 %v3406, %v3419
      %v3454 = vadd.f32 %v3407, %v3419
      %v3455 = vadd.f32 %v3408, %v3419
      %v3456 = vadd.f32 %v3409, %v3419
      %v3457 = vadd.f32 %v3410, %v3419
      %v3458 = vadd.f32 %v3411, %v3419
      %v3459 = vadd.f32 %v3412, %v3419
      %v3460 = vadd.f32 %v3413, %v3419
      %3461 = vst [vmem:[%s300] sm:$0xff] %v3421
      %3462 = vst [vmem:[%s300 + $0x8] sm:$0xff] %v3422
      %3463 = vst [vmem:[%s300 + $0x10] sm:$0xff] %v3423
      %3464 = vst [vmem:[%s300 + $0x18] sm:$0xff] %v3424
      %3465 = vst [vmem:[%s300 + $0x20] sm:$0xff] %v3425
      %3466 = vst [vmem:[%s300 + $0x28] sm:$0xff] %v3426
      %3467 = vst [vmem:[%s300 + $0x30] sm:$0xff] %v3427
      %3468 = vst [vmem:[%s300 + $0x38] sm:$0xff] %v3428
      %3469 = vst [vmem:[%s300 + $0x40] sm:$0xff] %v3429
      %3470 = vst [vmem:[%s300 + $0x48] sm:$0xff] %v3430
      %3471 = vst [vmem:[%s300 + $0x50] sm:$0xff] %v3431
      %3472 = vst [vmem:[%s300 + $0x58] sm:$0xff] %v3432
      %3473 = vst [vmem:[%s300 + $0x60] sm:$0xff] %v3433
      %3474 = vst [vmem:[%s300 + $0x68] sm:$0xff] %v3434
      %3475 = vst [vmem:[%s300 + $0x70] sm:$0xff] %v3435
      %3476 = vst [vmem:[%s300 + $0x78] sm:$0xff] %v3436
      %3477 = vst [vmem:[%s300 + $0x80] sm:$0xff] %v3437
      %3478 = vst [vmem:[%s300 + $0x88] sm:$0xff] %v3438
      %3479 = vst [vmem:[%s300 + $0x90] sm:$0xff] %v3439
      %3480 = vst [vmem:[%s300 + $0x98] sm:$0xff] %v3440
      %3481 = vst [vmem:[%s300 + $0xa0] sm:$0xff] %v3441
      %3482 = vst [vmem:[%s300 + $0xa8] sm:$0xff] %v3442
      %3483 = vst [vmem:[%s300 + $0xb0] sm:$0xff] %v3443
      %3484 = vst [vmem:[%s300 + $0xb8] sm:$0xff] %v3444
      %3485 = vst [vmem:[%s300 + $0xc0] sm:$0xff] %v3445
      %3486 = vst [vmem:[%s300 + $0xc8] sm:$0xff] %v3446
      %3487 = vst [vmem:[%s300 + $0xd0] sm:$0xff] %v3447
      %3488 = vst [vmem:[%s300 + $0xd8] sm:$0xff] %v3448
      %3489 = vst [vmem:[%s300 + $0xe0] sm:$0xff] %v3449
      %3490 = vst [vmem:[%s300 + $0xe8] sm:$0xff] %v3450
      %3491 = vst [vmem:[%s300 + $0xf0] sm:$0xff] %v3451
      %3492 = vst [vmem:[%s300 + $0xf8] sm:$0xff] %v3452
      %3493 = vst [vmem:[%s300 + $0x100] sm:$0xff] %v3453
      %3494 = vst [vmem:[%s300 + $0x108] sm:$0xff] %v3454
      %3495 = vst [vmem:[%s300 + $0x110] sm:$0xff] %v3455
      %3496 = vst [vmem:[%s300 + $0x118] sm:$0xff] %v3456
      %3497 = vst [vmem:[%s300 + $0x120] sm:$0xff] %v3457
      %3498 = vst [vmem:[%s300 + $0x128] sm:$0xff] %v3458
      %3499 = vst [vmem:[%s300 + $0x130] sm:$0xff] %v3459
      %3500 = vst [vmem:[%s300 + $0x138] sm:$0xff] %v3460
      %s3501 = smul.u32 40, %s21
      %p3502 = scmp.lt.s32.totalorder %s20, 1
      %s3503 = scalar_select %p3502, %s20, 1
      %p3504 = scmp.lt.s32.totalorder %s3501, 39
      %s3505 = scalar_select %p3504, %s3501, 39
      %p3506 = scmp.lt.s32.totalorder %s22, 0
      %s3507 = scalar_select %p3506, %s22, 0
      %s3508 = sadd.s32 %s3507, %s3505
      %s3509 = smul.addr %s3503, 40
      %s3510 = sadd.s32 %s3508, %s3509
      %s3511 = smul.addr %s3510, 8
      %s3512 = scalar_lea.vmem %s4, %s3511
      // Predicated region
      $region41: #{conv2d_forward_nhwc.1} parent=35 // pred_check
        %p3513 = pneg %p158
      $region42: #{conv2d_forward_nhwc.1} parent=35 // pred_check_branch
        %3515 = sbr.rel (%p3513) target = $region44
      $region43: #{conv2d_forward_nhwc.1} parent=35 // pred_region
        %s3516 = smul.u32 40, %s21
      $region44: #{conv2d_forward_nhwc.1} parent=35 // pred_fallthru
        _
    $region36: #{conv2d_forward_nhwc.1} parent=5 // pred_fallthru
      _
    %p3517 = scmp.le.s32.totalorder 2, %s10
    // Predicated region
    $region45: #{conv2d_forward_nhwc.1} parent=5 // pred_check
      %p3518 = pneg %p3517
    $region46: #{conv2d_forward_nhwc.1} parent=5 // pred_check_branch
      %3520 = sbr.rel (%p3518) target = $region48
    $region47: #{conv2d_forward_nhwc.1} parent=5 // pred_region
      %s3521 = ssub.s32 %s10, 2
      // Predicated region
      $region49: #{conv2d_forward_nhwc.1} parent=47 // pred_check
        %p3522 = pneg %p164
      $region50: #{conv2d_forward_nhwc.1} parent=47 // pred_check_branch
        %3524 = sbr.rel (%p3522) target = $region52
      $region51: #{conv2d_forward_nhwc.1} parent=47 // pred_region
        %s3525 = smul.u32 40, %s24
        %p3526 = scmp.lt.s32.totalorder %s23, 1
        %s3527 = scalar_select %p3526, %s23, 1
        %p3528 = scmp.lt.s32.totalorder %s3525, 39
        %s3529 = scalar_select %p3528, %s3525, 39
        %p3530 = scmp.lt.s32.totalorder %s25, 0
        %s3531 = scalar_select %p3530, %s25, 0
        %s3532 = sadd.s32 %s3531, %s3529
        %s3533 = smul.addr %s3527, 40
        %s3534 = sadd.s32 %s3532, %s3533
        %s3535 = smul.addr %s3534, 8
        %s3536 = scalar_lea.vmem %s4, %s3535
      $region52: #{conv2d_forward_nhwc.1} parent=47 // pred_fallthru
        _
    $region48: #{conv2d_forward_nhwc.1} parent=5 // pred_fallthru
      _
  $region6: #{conv2d_forward_nhwc.1} parent=0 // loop_footer
    %s14 = sadd.s32 1, %s10
  $region7: #{conv2d_forward_nhwc.1} parent=0 // loop_footer_branch
    %9 = sbr.rel target = $region3
  $region8: #{conv2d_forward_nhwc.1} parent=0 // loop_exit
    _

</llo_original>
